<compile_context>
chip_gen: v7x
topology: tpu7x:2x2x1
jax: 0.10.0
libtpu: 0.0.40
codegen_flags: <defaults>
</compile_context>

<pallas_src>
import functools
import math

import jax
import jax.numpy as jnp
from jax.experimental import pallas as pl
from jax.experimental.pallas import tpu as pltpu


# ------------------------------- fused kernel ------------------------------- #

def _decoder_kernel(
    # activations (batch-flattened 2-D slabs)
    tgt_ref, mem_ref, pos_ref, qpos_ref,
    # self-attention (q/k fused, 1/sqrt(Dh) folded into q)
    sa_wqk_ref, sa_bqk_ref, sa_wv_ref, sa_bv_ref, sa_wo_ref, sa_bo_ref,
    # cross-attention
    ca_wq_ref, ca_bq_ref, ca_wk_ref, ca_bk_ref, ca_wv_ref, ca_bv_ref,
    ca_wo_ref, ca_bo_ref,
    # FFN
    l1w_ref, l1b_ref, l2w_ref, l2b_ref,
    # LayerNorms (norm1, norm2, norm3, final)
    ng_ref, nb_ref,
    # outputs
    inter_ref, out_ref,
    # scratch
    x_scr, ao_scr,
    *, nhead, bblk, L, Lm, eps, num_layers, add_pos, add_qpos, mxu_dtype):
  """All decoder layers for one batch block; grid = (batch blocks, layers)."""
  f32 = jnp.float32
  l = pl.program_id(1)

  D = out_ref.shape[-1]
  Dh = D // nhead
  R = bblk * L

  def mm(a, w):                        # a @ w : MXU-dtype operands, f32 accumulate
    return jnp.dot(a.astype(w.dtype), w, preferred_element_type=f32)

  def mm_nt(a, b):                     # a @ b.T (contract last dims, no transpose)
    return jax.lax.dot_general(a, b, (((1,), (1,)), ((), ())),
                               preferred_element_type=f32)

  def layer_norm(xv, idx):             # f32 LayerNorm over the last axis
    g = ng_ref[0, idx]                 # (1, D) f32
    b = nb_ref[0, idx]
    mu = jnp.mean(xv, axis=-1, keepdims=True)
    xc = xv - mu
    var = jnp.mean(xc * xc, axis=-1, keepdims=True)
    return xc * jax.lax.rsqrt(var + eps) * g + b

  def attn(q, k, v, Lk, wo, bo):
    """q:(R,D) pre-scaled; k/v:(bblk*Lk,D).  Heads -> ao_scr, then ONE full-K
    (K=D) output projection instead of nhead narrow-K (K=Dh) matmuls."""
    qb = q.astype(mxu_dtype)           # cast once, reused across heads
    kb = k.astype(mxu_dtype)
    vb = v.astype(mxu_dtype)
    for bi in range(bblk):             # static unroll over batch elements
      q_b = qb[bi * L:(bi + 1) * L]
      k_b = kb[bi * Lk:(bi + 1) * Lk]
      v_b = vb[bi * Lk:(bi + 1) * Lk]
      for h in range(nhead):           # static unroll over heads
        lo = h * Dh
        s = mm_nt(q_b[:, lo:lo + Dh], k_b[:, lo:lo + Dh])      # (L, Lk) f32
        s = s - jnp.max(s, axis=-1, keepdims=True)
        p = jnp.exp(s)
        p = p * pl.reciprocal(jnp.sum(p, axis=-1, keepdims=True))   # exact
        ao_scr[bi * L:(bi + 1) * L, lo:lo + Dh] = mm(p, v_b[:, lo:lo + Dh])
    return mm(ao_scr[...], wo) + bo

  # residual carry: initialize from tgt at the first layer of each batch block
  @pl.when(l == 0)
  def _():
    x_scr[...] = tgt_ref[...].astype(f32)

  x = x_scr[...]                                   # (R, D) f32
  mem = mem_ref[...].astype(f32)                   # (bblk*Lm, D)
  memp = mem + pos_ref[...].astype(f32) if add_pos else mem
  qpos = qpos_ref[0].astype(f32) if add_qpos else None

  # ---- self-attention + add & norm1 ----------------------------------------
  q_in = x + qpos if add_qpos else x
  qk = mm(q_in, sa_wqk_ref[0]) + sa_bqk_ref[0]     # (R, 2D); q half pre-scaled
  v_sa = mm(x, sa_wv_ref[0]) + sa_bv_ref[0]
  sa = attn(qk[:, :D], qk[:, D:], v_sa, L, sa_wo_ref[0], sa_bo_ref[0])
  x = layer_norm(x + sa, 0)

  # ---- cross-attention + add & norm2 ----------------------------------------
  q_ca = mm(x + qpos if add_qpos else x, ca_wq_ref[0]) + ca_bq_ref[0]
  k_ca = mm(memp, ca_wk_ref[0]) + ca_bk_ref[0]
  v_ca = mm(mem, ca_wv_ref[0]) + ca_bv_ref[0]
  ca = attn(q_ca, k_ca, v_ca, Lm, ca_wo_ref[0], ca_bo_ref[0])
  x = layer_norm(x + ca, 1)

  # ---- FFN + add & norm3 (hidden never leaves VMEM/vregs) --------------------
  h = jnp.maximum(mm(x, l1w_ref[0]) + l1b_ref[0], 0.0)
  y = mm(h, l2w_ref[0]) + l2b_ref[0]
  x = layer_norm(x + y, 2)

  # ---- write-back ------------------------------------------------------------
  x_scr[...] = x                                              # carry to layer l+1
  inter_ref[0] = layer_norm(x, 3).astype(inter_ref.dtype)     # fused final norm

  @pl.when(l == num_layers - 1)
  def _():
    out_ref[...] = x.astype(out_ref.dtype)                    # raw final output


# -------------------- one-time host-side parameter packing ------------------ #

def prepare_decoder_params(params, *, nhead, mxu_dtype=jnp.bfloat16):
  """Pack once (outside the per-forward path): transpose to (in,out), fuse the
  self-attn q/k projections, fold the 1/sqrt(Dh) scale into q, stack over
  layers, and pre-cast matmul weights to bf16 (biases / norms stay f32)."""
  layers = params["layers"]
  D = layers[0]["norm1_g"].shape[0]
  dff = layers[0]["linear1_b"].shape[0]
  scale = 1.0 / math.sqrt(D // nhead)

  norm_g = params.get("norm_g")
  norm_g = jnp.ones((D,), jnp.float32) if norm_g is None else norm_g
  norm_b = params.get("norm_b")
  norm_b = jnp.zeros((D,), jnp.float32) if norm_b is None else norm_b

  def pack(lp):
    sa, ca = lp["self_attn"], lp["cross_attn"]
    wq, wk, wv = jnp.split(sa["in_proj_w"], 3, axis=0)        # torch (out, in)
    bq, bk, bv = jnp.split(sa["in_proj_b"], 3, axis=0)
    cwq, cwk, cwv = jnp.split(ca["in_proj_w"], 3, axis=0)
    cbq, cbk, cbv = jnp.split(ca["in_proj_b"], 3, axis=0)
    return dict(
        sa_wqk=jnp.concatenate([wq.T * scale, wk.T], axis=1),        # (D, 2D)
        sa_bqk=jnp.concatenate([bq * scale, bk]).reshape(1, 2 * D),
        sa_wv=wv.T, sa_bv=bv.reshape(1, D),
        sa_wo=sa["out_proj_w"].T, sa_bo=sa["out_proj_b"].reshape(1, D),
        ca_wq=cwq.T * scale, ca_bq=(cbq * scale).reshape(1, D),
        ca_wk=cwk.T, ca_bk=cbk.reshape(1, D),
        ca_wv=cwv.T, ca_bv=cbv.reshape(1, D),
        ca_wo=ca["out_proj_w"].T, ca_bo=ca["out_proj_b"].reshape(1, D),
        l1w=lp["linear1_w"].T, l1b=lp["linear1_b"].reshape(1, dff),
        l2w=lp["linear2_w"].T, l2b=lp["linear2_b"].reshape(1, D),
        ng=jnp.stack([lp["norm1_g"], lp["norm2_g"], lp["norm3_g"], norm_g]
                     ).reshape(4, 1, D),
        nb=jnp.stack([lp["norm1_b"], lp["norm2_b"], lp["norm3_b"], norm_b]
                     ).reshape(4, 1, D),
    )

  per_layer = [pack(lp) for lp in layers]
  stacked = {k: jnp.stack([p[k] for p in per_layer]) for k in per_layer[0]}
  weight_keys = ("sa_wqk", "sa_wv", "sa_wo", "ca_wq", "ca_wk", "ca_wv",
                 "ca_wo", "l1w", "l2w")
  for k in stacked:
    stacked[k] = stacked[k].astype(mxu_dtype if k in weight_keys else jnp.float32)
  return stacked


# ----------------------- PyTorch-equivalent decoder ------------------------- #

def _choose_bblk(B, L, Lm):
  """Batch elements per grid step (2 improves MXU M-fill on v6e/v7x); keep the
  second-to-last block dims 8-aligned or full."""
  for cand in (2, 1):
    if B % cand == 0 and (cand * L) % 8 == 0 and (cand * Lm) % 8 == 0:
      return cand
  return B                                        # full-batch block always legal


def transformer_decoder_forward(tgt, memory, weights, *, nhead, has_norm=True,
                                clip_visual=None, pos=None, query_pos=None,
                                return_intermediate=True, bblk=None):
  """Mirrors TransformerDecoder.forward (masks None, eval mode).
  tgt/query_pos: (L, B, D); memory/pos: (Lm, B, D); `weights` from
  prepare_decoder_params()."""
  # TODO(synk): tgt/memory masks and clip_visual are unused (None in the provided
  # module's call path); standard DETR decoder-layer semantics are implemented.
  L, B, D = tgt.shape
  Lm = memory.shape[0]
  NL = weights["sa_wqk"].shape[0]
  dff = weights["l1w"].shape[-1]
  mxu_dtype = weights["sa_wqk"].dtype
  if return_intermediate and not has_norm:
    raise ValueError("return_intermediate=True requires a final norm "
                     "(PyTorch would fail here too).")

  add_pos = pos is not None
  add_qpos = query_pos is not None
  per_layer_qpos = add_qpos and query_pos.ndim == 4
  if bblk is None:
    bblk = _choose_bblk(B, L, Lm)
  nb_blocks = B // bblk

  # batch-first, batch-flattened 2-D slabs (one transpose per tensor per forward)
  tgt2 = tgt.transpose(1, 0, 2).reshape(B * L, D)
  mem2 = memory.transpose(1, 0, 2).reshape(B * Lm, D)
  pos2 = (pos.transpose(1, 0, 2).reshape(B * Lm, D) if add_pos
          else jnp.zeros((8, D), tgt.dtype))                    # unread dummy
  if per_layer_qpos:                                            # (NL, L, B, D)
    qpos3 = query_pos.transpose(0, 2, 1, 3).reshape(NL, B * L, D)
  elif add_qpos:
    qpos3 = query_pos.transpose(1, 0, 2).reshape(1, B * L, D)   # shared, no dup
  else:
    qpos3 = jnp.zeros((1, 8, D), tgt.dtype)                     # unread dummy

  # -------------------------------- BlockSpecs --------------------------------
  seq_spec = pl.BlockSpec((bblk * L, D), lambda b, l: (b, 0))
  mem_spec = pl.BlockSpec((bblk * Lm, D), lambda b, l: (b, 0))
  pos_spec = mem_spec if add_pos else pl.BlockSpec((8, D), lambda b, l: (0, 0))
  if per_layer_qpos:
    qpos_spec = pl.BlockSpec((1, bblk * L, D), lambda b, l: (l, b, 0))
  elif add_qpos:
    qpos_spec = pl.BlockSpec((1, bblk * L, D), lambda b, l: (0, b, 0))
  else:
    qpos_spec = pl.BlockSpec((1, 8, D), lambda b, l: (0, 0, 0))

  def wspec(name):                     # per-layer weight block (pipelined over l)
    shape = weights[name].shape
    zeros = (0,) * (len(shape) - 1)
    return pl.BlockSpec((1,) + shape[1:], lambda b, l, _z=zeros: (l,) + _z)

  w_order = ("sa_wqk", "sa_bqk", "sa_wv", "sa_bv", "sa_wo", "sa_bo",
             "ca_wq", "ca_bq", "ca_wk", "ca_bk", "ca_wv", "ca_bv",
             "ca_wo", "ca_bo", "l1w", "l1b", "l2w", "l2b", "ng", "nb")
  in_specs = [seq_spec, mem_spec, pos_spec, qpos_spec] + [wspec(n) for n in w_order]

  out_specs = [pl.BlockSpec((1, bblk * L, D), lambda b, l: (l, b, 0)),
               pl.BlockSpec((bblk * L, D), lambda b, l: (b, 0))]
  out_shape = [jax.ShapeDtypeStruct((NL, B * L, D), tgt.dtype),
               jax.ShapeDtypeStruct((B * L, D), tgt.dtype)]
  scratch_shapes = [pltpu.VMEM((bblk * L, D), jnp.float32),     # residual carry
                    pltpu.VMEM((bblk * L, D), jnp.float32)]     # per-head attn out

  # ------------------------- explicit VMEM budget ------------------------------
  wbytes = jnp.dtype(mxu_dtype).itemsize
  abytes = jnp.dtype(tgt.dtype).itemsize
  R, Rm = bblk * L, bblk * Lm
  weight_blk = (8 * D * D + 2 * D * dff) * wbytes + (18 * D + dff) * 4
  act_blk = (R + Rm + (Rm if add_pos else 8) + (R if add_qpos else 8)) * D * abytes
  out_blk = 2 * R * D * abytes
  scratch_b = 2 * R * D * 4
  temps = (R * dff + 2 * R * D + 2 * L * max(L, Lm)) * 4
  vmem_limit = 2 * (weight_blk + act_blk + out_blk) + scratch_b + temps
  vmem_limit = int(min(max(2 * vmem_limit, 16 << 20), 64 << 20))

  kernel = functools.partial(
      _decoder_kernel, nhead=nhead, bblk=bblk, L=L, Lm=Lm, eps=1e-5,
      num_layers=NL, add_pos=add_pos, add_qpos=add_qpos, mxu_dtype=mxu_dtype)

  inter2, out2 = pl.pallas_call(
      kernel,
      grid=(nb_blocks, NL),            # layer axis innermost: layer l+1 weights
      in_specs=in_specs,               # are DMA'd behind layer l compute
      out_specs=out_specs,
      out_shape=out_shape,
      scratch_shapes=scratch_shapes,
      compiler_params=pltpu.CompilerParams(
          dimension_semantics=("parallel", "arbitrary"),
          vmem_limit_bytes=vmem_limit),
  )(tgt2, mem2, pos2, qpos3, *[weights[n] for n in w_order])

  if return_intermediate:
    # (NL, B, L, D) -> (NL, L, B, D); last entry == norm(final output), matching
    # PyTorch's pop/append of norm(output).
    return inter2.reshape(NL, B, L, D).transpose(0, 2, 1, 3)
  final2 = inter2[NL - 1] if has_norm else out2
  return final2.reshape(B, L, D).transpose(1, 0, 2)             # (L, B, D)


# ------------------------------ parameter init ------------------------------ #

def init_params(key, num_layers, d_model, dff):
  def nrm(k, shape, scale=0.05):
    return scale * jax.random.normal(k, shape, dtype=jnp.float32)

  layers = []
  for l in range(num_layers):
    ks = jax.random.split(jax.random.fold_in(key, l), 12)
    layers.append({
        "self_attn": {
            "in_proj_w": nrm(ks[0], (3 * d_model, d_model)),
            "in_proj_b": nrm(ks[1], (3 * d_model,)),
            "out_proj_w": nrm(ks[2], (d_model, d_model)),
            "out_proj_b": nrm(ks[3], (d_model,)),
        },
        "cross_attn": {
            "in_proj_w": nrm(ks[4], (3 * d_model, d_model)),
            "in_proj_b": nrm(ks[5], (3 * d_model,)),
            "out_proj_w": nrm(ks[6], (d_model, d_model)),
            "out_proj_b": nrm(ks[7], (d_model,)),
        },
        "linear1_w": nrm(ks[8], (dff, d_model)),
        "linear1_b": nrm(ks[9], (dff,)),
        "linear2_w": nrm(ks[10], (d_model, dff)),
        "linear2_b": nrm(ks[11], (d_model,)),
        "norm1_g": jnp.ones((d_model,), jnp.float32),
        "norm1_b": jnp.zeros((d_model,), jnp.float32),
        "norm2_g": jnp.ones((d_model,), jnp.float32),
        "norm2_b": jnp.zeros((d_model,), jnp.float32),
        "norm3_g": jnp.ones((d_model,), jnp.float32),
        "norm3_b": jnp.zeros((d_model,), jnp.float32),
    })
  return {"layers": layers,
          "norm_g": jnp.ones((d_model,), jnp.float32),
          "norm_b": jnp.zeros((d_model,), jnp.float32)}


# ---------------------------- pure-JAX reference ----------------------------- #

def _ref_linear(x, w, b, activation=None):
  y = x @ w.T + b
  return jnp.maximum(y, 0.0) if activation == "relu" else y


def _ref_ln(x, g, b, eps=1e-5):
  mu = x.mean(-1, keepdims=True)
  var = ((x - mu) ** 2).mean(-1, keepdims=True)
  return (x - mu) / jnp.sqrt(var + eps) * g + b


def _ref_mha(query, key, value, p, H):
  Lq, B, D = query.shape
  Lk = key.shape[0]
  Dh = D // H
  wq, wk, wv = jnp.split(p["in_proj_w"], 3, axis=0)
  bq, bk, bv = jnp.split(p["in_proj_b"], 3, axis=0)
  q = _ref_linear(query, wq, bq).reshape(Lq, B, H, Dh).transpose(1, 2, 0, 3)
  k = _ref_linear(key, wk, bk).reshape(Lk, B, H, Dh).transpose(1, 2, 0, 3)
  v = _ref_linear(value, wv, bv).reshape(Lk, B, H, Dh).transpose(1, 2, 0, 3)
  s = jnp.einsum("bhqd,bhkd->bhqk", q, k) / (Dh ** 0.5)
  a = jax.nn.softmax(s, axis=-1)
  o = jnp.einsum("bhqk,bhkd->bhqd", a, v).transpose(2, 0, 1, 3).reshape(Lq, B, D)
  return _ref_linear(o, p["out_proj_w"], p["out_proj_b"])


def _ref_layer(tgt, memory, p, *, nhead, pos, query_pos):
  q = tgt + query_pos
  tgt = _ref_ln(tgt + _ref_mha(q, q, tgt, p["self_attn"], nhead),
                p["norm1_g"], p["norm1_b"])
  tgt = _ref_ln(tgt + _ref_mha(tgt + query_pos, memory + pos, memory,
                               p["cross_attn"], nhead),
                p["norm2_g"], p["norm2_b"])
  h = _ref_linear(tgt, p["linear1_w"], p["linear1_b"], activation="relu")
  tgt = _ref_ln(tgt + _ref_linear(h, p["linear2_w"], p["linear2_b"]),
                p["norm3_g"], p["norm3_b"])
  return tgt


def _ref_decoder(tgt, memory, params, *, nhead, pos, query_pos,
                 return_intermediate=True):
  output = tgt
  inter = []
  for i, lp in enumerate(params["layers"]):
    qp = query_pos[i] if query_pos.ndim == 4 else query_pos
    output = _ref_layer(output, memory, lp, nhead=nhead, pos=pos, query_pos=qp)
    if return_intermediate:
      inter.append(_ref_ln(output, params["norm_g"], params["norm_b"]))
  output = _ref_ln(output, params["norm_g"], params["norm_b"])
  if return_intermediate:
    inter.pop()
    inter.append(output)
    return jnp.stack(inter)
  return output


# ----------------------------------- main ------------------------------------ #

if __name__ == "__main__":
  num_layers = 2
  d_model = 32
  nhead = 4
  dff = 64
  Lq = 8        # number of object queries (tgt length)
  Lm = 16       # memory length (flattened H*W)
  B = 2

  root = jax.random.PRNGKey(0)
  k_tgt, k_mem, k_pos, k_qpos, k_par = jax.random.split(root, 5)
  tgt = jax.random.normal(k_tgt, (Lq, B, d_model), dtype=jnp.float32)
  memory = jax.random.normal(k_mem, (Lm, B, d_model), dtype=jnp.float32)
  pos = jax.random.normal(k_pos, (Lm, B, d_model), dtype=jnp.float32)
  query_pos = jax.random.normal(k_qpos, (Lq, B, d_model), dtype=jnp.float32)

  params = init_params(k_par, num_layers, d_model, dff)
  weights = prepare_decoder_params(params, nhead=nhead)   # one-time packing

  fwd = jax.jit(functools.partial(transformer_decoder_forward, nhead=nhead,
                                  has_norm=True, return_intermediate=True))
  out = fwd(tgt, memory, weights, pos=pos, query_pos=query_pos)
  out = jax.block_until_ready(out)

  ref = _ref_decoder(tgt, memory, params, nhead=nhead, pos=pos,
                     query_pos=query_pos, return_intermediate=True)

  assert out.shape == (num_layers, Lq, B, d_model), out.shape
  assert bool(jnp.all(jnp.isfinite(out)))
  assert bool(jnp.allclose(out, ref, rtol=5e-2, atol=5e-2)), (
      float(jnp.max(jnp.abs(out - ref))))

  print("KERNEL_OK")
</pallas_src>

<mosaic_0001>
module attributes {stable_mosaic.version = 11 : i64} {
  func.func @_decoder_kernel(%arg0: i32, %arg1: i32, %arg2: memref<16x32xf32, #tpu.memory_space<vmem>>, %arg3: memref<32x32xf32, #tpu.memory_space<vmem>>, %arg4: memref<32x32xf32, #tpu.memory_space<vmem>>, %arg5: memref<1x16x32xf32, #tpu.memory_space<vmem>>, %arg6: memref<1x32x64xbf16, #tpu.memory_space<vmem>>, %arg7: memref<1x1x64xf32, #tpu.memory_space<vmem>>, %arg8: memref<1x32x32xbf16, #tpu.memory_space<vmem>>, %arg9: memref<1x1x32xf32, #tpu.memory_space<vmem>>, %arg10: memref<1x32x32xbf16, #tpu.memory_space<vmem>>, %arg11: memref<1x1x32xf32, #tpu.memory_space<vmem>>, %arg12: memref<1x32x32xbf16, #tpu.memory_space<vmem>>, %arg13: memref<1x1x32xf32, #tpu.memory_space<vmem>>, %arg14: memref<1x32x32xbf16, #tpu.memory_space<vmem>>, %arg15: memref<1x1x32xf32, #tpu.memory_space<vmem>>, %arg16: memref<1x32x32xbf16, #tpu.memory_space<vmem>>, %arg17: memref<1x1x32xf32, #tpu.memory_space<vmem>>, %arg18: memref<1x32x32xbf16, #tpu.memory_space<vmem>>, %arg19: memref<1x1x32xf32, #tpu.memory_space<vmem>>, %arg20: memref<1x32x64xbf16, #tpu.memory_space<vmem>>, %arg21: memref<1x1x64xf32, #tpu.memory_space<vmem>>, %arg22: memref<1x64x32xbf16, #tpu.memory_space<vmem>>, %arg23: memref<1x1x32xf32, #tpu.memory_space<vmem>>, %arg24: memref<1x4x1x32xf32, #tpu.memory_space<vmem>>, %arg25: memref<1x4x1x32xf32, #tpu.memory_space<vmem>>, %arg26: memref<1x16x32xf32, #tpu.memory_space<vmem>>, %arg27: memref<16x32xf32, #tpu.memory_space<vmem>>, %arg28: memref<16x32xf32, #tpu.memory_space<vmem>>, %arg29: memref<16x32xf32, #tpu.memory_space<vmem>>) attributes {dimension_semantics = [#tpu.dimension_semantics<parallel>, #tpu.dimension_semantics<arbitrary>], iteration_bounds = array<i64: 1, 2>, scalar_prefetch = 0 : i64, scratch_operands = 2 : i64, tpu.core_type = #tpu.core_type<tc>, window_params = [{transform_indices = @transform_0, window_bounds = array<i64: 16, 32>}, {transform_indices = @transform_1, window_bounds = array<i64: 32, 32>}, {transform_indices = @transform_2, window_bounds = array<i64: 32, 32>}, {transform_indices = @transform_3, window_bounds = array<i64: 1, 16, 32>}, {transform_indices = @transform_4, window_bounds = array<i64: 1, 32, 64>}, {transform_indices = @transform_5, window_bounds = array<i64: 1, 1, 64>}, {transform_indices = @transform_6, window_bounds = array<i64: 1, 32, 32>}, {transform_indices = @transform_7, window_bounds = array<i64: 1, 1, 32>}, {transform_indices = @transform_8, window_bounds = array<i64: 1, 32, 32>}, {transform_indices = @transform_9, window_bounds = array<i64: 1, 1, 32>}, {transform_indices = @transform_10, window_bounds = array<i64: 1, 32, 32>}, {transform_indices = @transform_11, window_bounds = array<i64: 1, 1, 32>}, {transform_indices = @transform_12, window_bounds = array<i64: 1, 32, 32>}, {transform_indices = @transform_13, window_bounds = array<i64: 1, 1, 32>}, {transform_indices = @transform_14, window_bounds = array<i64: 1, 32, 32>}, {transform_indices = @transform_15, window_bounds = array<i64: 1, 1, 32>}, {transform_indices = @transform_16, window_bounds = array<i64: 1, 32, 32>}, {transform_indices = @transform_17, window_bounds = array<i64: 1, 1, 32>}, {transform_indices = @transform_18, window_bounds = array<i64: 1, 32, 64>}, {transform_indices = @transform_19, window_bounds = array<i64: 1, 1, 64>}, {transform_indices = @transform_20, window_bounds = array<i64: 1, 64, 32>}, {transform_indices = @transform_21, window_bounds = array<i64: 1, 1, 32>}, {transform_indices = @transform_22, window_bounds = array<i64: 1, 4, 1, 32>}, {transform_indices = @transform_23, window_bounds = array<i64: 1, 4, 1, 32>}, {transform_indices = @transform_24, window_bounds = array<i64: 1, 16, 32>}, {transform_indices = @transform_25, window_bounds = array<i64: 16, 32>}]} {
    %c0_i32 = arith.constant 0 : i32
    %0 = arith.cmpi eq, %arg1, %c0_i32 : i32
    %1 = arith.extui %0 : i1 to i32
    %c0_i32_0 = arith.constant 0 : i32
    %2 = arith.cmpi ne, %1, %c0_i32_0 : i32
    scf.if %2 {
      %c0_224 = arith.constant 0 : index
      %c0_225 = arith.constant 0 : index
      %485 = vector.load %arg2[%c0_224, %c0_225] : memref<16x32xf32, #tpu.memory_space<vmem>>, vector<16x32xf32>
      %c0_226 = arith.constant 0 : index
      %c0_227 = arith.constant 0 : index
      %486 = vector.load %arg28[%c0_226, %c0_227] : memref<16x32xf32, #tpu.memory_space<vmem>>, vector<16x32xf32>
      tpu.vector_store %arg28[%c0_226, %c0_227], %485 {strides = array<i32>} : memref<16x32xf32, #tpu.memory_space<vmem>>, vector<16x32xf32>,
    } else {
    }
    %c0 = arith.constant 0 : index
    %c0_1 = arith.constant 0 : index
    %3 = vector.load %arg28[%c0, %c0_1] : memref<16x32xf32, #tpu.memory_space<vmem>>, vector<16x32xf32>
    %c0_2 = arith.constant 0 : index
    %c0_3 = arith.constant 0 : index
    %4 = vector.load %arg3[%c0_2, %c0_3] : memref<32x32xf32, #tpu.memory_space<vmem>>, vector<32x32xf32>
    %c0_4 = arith.constant 0 : index
    %c0_5 = arith.constant 0 : index
    %5 = vector.load %arg4[%c0_4, %c0_5] : memref<32x32xf32, #tpu.memory_space<vmem>>, vector<32x32xf32>
    %6 = arith.addf %4, %5 : vector<32x32xf32>
    %c0_6 = arith.constant 0 : index
    %c0_7 = arith.constant 0 : index
    %c0_8 = arith.constant 0 : index
    %7 = vector.load %arg5[%c0_6, %c0_7, %c0_8] : memref<1x16x32xf32, #tpu.memory_space<vmem>>, vector<1x16x32xf32>
    %8 = vector.shape_cast %7 : vector<1x16x32xf32> to vector<16x32xf32>
    %9 = arith.addf %3, %8 : vector<16x32xf32>
    %c0_9 = arith.constant 0 : index
    %c0_10 = arith.constant 0 : index
    %c0_11 = arith.constant 0 : index
    %10 = vector.load %arg6[%c0_9, %c0_10, %c0_11] : memref<1x32x64xbf16, #tpu.memory_space<vmem>>, vector<1x32x64xbf16>
    %11 = vector.shape_cast %10 : vector<1x32x64xbf16> to vector<32x64xbf16>
    %12 = arith.truncf %9 : vector<16x32xf32> to vector<16x32xbf16>
    %cst = arith.constant dense<0.000000e+00> : vector<16x64xf32>
    %13 = tpu.matmul %12, %11, %cst {dimension_numbers = #tpu.dot_dimension_numbers<[1], [0], [0], [1], [0, 0, 1, 1], [], []>} : vector<16x32xbf16>, vector<32x64xbf16>, vector<16x64xf32> -> vector<16x64xf32>
    %c0_12 = arith.constant 0 : index
    %c0_13 = arith.constant 0 : index
    %c0_14 = arith.constant 0 : index
    %14 = vector.load %arg7[%c0_12, %c0_13, %c0_14] : memref<1x1x64xf32, #tpu.memory_space<vmem>>, vector<1x1x64xf32>
    %15 = vector.shape_cast %14 : vector<1x1x64xf32> to vector<1x64xf32>
    %16 = vector.broadcast %15 : vector<1x64xf32> to vector<16x64xf32>
    %17 = arith.addf %13, %16 : vector<16x64xf32>
    %c0_15 = arith.constant 0 : index
    %c0_16 = arith.constant 0 : index
    %c0_17 = arith.constant 0 : index
    %18 = vector.load %arg8[%c0_15, %c0_16, %c0_17] : memref<1x32x32xbf16, #tpu.memory_space<vmem>>, vector<1x32x32xbf16>
    %19 = vector.shape_cast %18 : vector<1x32x32xbf16> to vector<32x32xbf16>
    %20 = arith.truncf %3 : vector<16x32xf32> to vector<16x32xbf16>
    %cst_18 = arith.constant dense<0.000000e+00> : vector<16x32xf32>
    %21 = tpu.matmul %20, %19, %cst_18 {dimension_numbers = #tpu.dot_dimension_numbers<[1], [0], [0], [1], [0, 0, 1, 1], [], []>} : vector<16x32xbf16>, vector<32x32xbf16>, vector<16x32xf32> -> vector<16x32xf32>
    %c0_19 = arith.constant 0 : index
    %c0_20 = arith.constant 0 : index
    %c0_21 = arith.constant 0 : index
    %22 = vector.load %arg9[%c0_19, %c0_20, %c0_21] : memref<1x1x32xf32, #tpu.memory_space<vmem>>, vector<1x1x32xf32>
    %23 = vector.shape_cast %22 : vector<1x1x32xf32> to vector<1x32xf32>
    %24 = vector.broadcast %23 : vector<1x32xf32> to vector<16x32xf32>
    %25 = arith.addf %21, %24 : vector<16x32xf32>
    %26 = vector.extract_strided_slice %17 {offsets = [0, 0], sizes = [16, 32], strides = [1, 1]} : vector<16x64xf32> to vector<16x32xf32>
    %27 = vector.extract_strided_slice %17 {offsets = [0, 32], sizes = [16, 32], strides = [1, 1]} : vector<16x64xf32> to vector<16x32xf32>
    %c0_22 = arith.constant 0 : index
    %c0_23 = arith.constant 0 : index
    %c0_24 = arith.constant 0 : index
    %28 = vector.load %arg10[%c0_22, %c0_23, %c0_24] : memref<1x32x32xbf16, #tpu.memory_space<vmem>>, vector<1x32x32xbf16>
    %29 = vector.shape_cast %28 : vector<1x32x32xbf16> to vector<32x32xbf16>
    %c0_25 = arith.constant 0 : index
    %c0_26 = arith.constant 0 : index
    %c0_27 = arith.constant 0 : index
    %30 = vector.load %arg11[%c0_25, %c0_26, %c0_27] : memref<1x1x32xf32, #tpu.memory_space<vmem>>, vector<1x1x32xf32>
    %31 = vector.shape_cast %30 : vector<1x1x32xf32> to vector<1x32xf32>
    %32 = arith.truncf %26 : vector<16x32xf32> to vector<16x32xbf16>
    %33 = arith.truncf %27 : vector<16x32xf32> to vector<16x32xbf16>
    %34 = arith.truncf %25 : vector<16x32xf32> to vector<16x32xbf16>
    %35 = vector.extract_strided_slice %32 {offsets = [0, 0], sizes = [8, 32], strides = [1, 1]} : vector<16x32xbf16> to vector<8x32xbf16>
    %36 = vector.extract_strided_slice %33 {offsets = [0, 0], sizes = [8, 32], strides = [1, 1]} : vector<16x32xbf16> to vector<8x32xbf16>
    %37 = vector.extract_strided_slice %34 {offsets = [0, 0], sizes = [8, 32], strides = [1, 1]} : vector<16x32xbf16> to vector<8x32xbf16>
    %38 = vector.extract_strided_slice %35 {offsets = [0, 0], sizes = [8, 8], strides = [1, 1]} : vector<8x32xbf16> to vector<8x8xbf16>
    %39 = vector.extract_strided_slice %36 {offsets = [0, 0], sizes = [8, 8], strides = [1, 1]} : vector<8x32xbf16> to vector<8x8xbf16>
    %cst_28 = arith.constant dense<0.000000e+00> : vector<8x8xf32>
    %40 = tpu.matmul %38, %39, %cst_28 {dimension_numbers = #tpu.dot_dimension_numbers<[1], [1], [0], [0], [0, 0, 1, 0], [], []>} : vector<8x8xbf16>, vector<8x8xbf16>, vector<8x8xf32> -> vector<8x8xf32>
    %cst_29 = arith.constant dense<0xFF800000> : vector<8xf32>
    %41 = vector.multi_reduction <maximumf>, %40, %cst_29 [1] : vector<8x8xf32> to vector<8xf32>
    %42 = vector.shape_cast %41 : vector<8xf32> to vector<8x1xf32>
    %43 = vector.broadcast %42 : vector<8x1xf32> to vector<8x8xf32>
    %44 = arith.subf %40, %43 : vector<8x8xf32>
    %45 = math.exp %44 : vector<8x8xf32>
    %cst_30 = arith.constant dense<0.000000e+00> : vector<8xf32>
    %46 = vector.multi_reduction <add>, %45, %cst_30 [1] : vector<8x8xf32> to vector<8xf32>
    %47 = vector.shape_cast %46 : vector<8xf32> to vector<8x1xf32>
    %48 = tpu.reciprocal %47 : vector<8x1xf32> -> vector<8x1xf32>
    %49 = vector.broadcast %48 : vector<8x1xf32> to vector<8x8xf32>
    %50 = arith.mulf %45, %49 : vector<8x8xf32>
    %51 = vector.extract_strided_slice %37 {offsets = [0, 0], sizes = [8, 8], strides = [1, 1]} : vector<8x32xbf16> to vector<8x8xbf16>
    %52 = arith.truncf %50 : vector<8x8xf32> to vector<8x8xbf16>
    %cst_31 = arith.constant dense<0.000000e+00> : vector<8x8xf32>
    %53 = tpu.matmul %52, %51, %cst_31 {dimension_numbers = #tpu.dot_dimension_numbers<[1], [0], [0], [1], [0, 0, 1, 1], [], []>} : vector<8x8xbf16>, vector<8x8xbf16>, vector<8x8xf32> -> vector<8x8xf32>
    %c0_32 = arith.constant 0 : index
    %c0_33 = arith.constant 0 : index
    %54 = vector.load %arg29[%c0_32, %c0_33] : memref<16x32xf32, #tpu.memory_space<vmem>>, vector<8x8xf32>
    tpu.vector_store %arg29[%c0_32, %c0_33], %53 {strides = array<i32>} : memref<16x32xf32, #tpu.memory_space<vmem>>, vector<8x8xf32>,
    %55 = vector.extract_strided_slice %35 {offsets = [0, 8], sizes = [8, 8], strides = [1, 1]} : vector<8x32xbf16> to vector<8x8xbf16>
    %56 = vector.extract_strided_slice %36 {offsets = [0, 8], sizes = [8, 8], strides = [1, 1]} : vector<8x32xbf16> to vector<8x8xbf16>
    %cst_34 = arith.constant dense<0.000000e+00> : vector<8x8xf32>
    %57 = tpu.matmul %55, %56, %cst_34 {dimension_numbers = #tpu.dot_dimension_numbers<[1], [1], [0], [0], [0, 0, 1, 0], [], []>} : vector<8x8xbf16>, vector<8x8xbf16>, vector<8x8xf32> -> vector<8x8xf32>
    %cst_35 = arith.constant dense<0xFF800000> : vector<8xf32>
    %58 = vector.multi_reduction <maximumf>, %57, %cst_35 [1] : vector<8x8xf32> to vector<8xf32>
    %59 = vector.shape_cast %58 : vector<8xf32> to vector<8x1xf32>
    %60 = vector.broadcast %59 : vector<8x1xf32> to vector<8x8xf32>
    %61 = arith.subf %57, %60 : vector<8x8xf32>
    %62 = math.exp %61 : vector<8x8xf32>
    %cst_36 = arith.constant dense<0.000000e+00> : vector<8xf32>
    %63 = vector.multi_reduction <add>, %62, %cst_36 [1] : vector<8x8xf32> to vector<8xf32>
    %64 = vector.shape_cast %63 : vector<8xf32> to vector<8x1xf32>
    %65 = tpu.reciprocal %64 : vector<8x1xf32> -> vector<8x1xf32>
    %66 = vector.broadcast %65 : vector<8x1xf32> to vector<8x8xf32>
    %67 = arith.mulf %62, %66 : vector<8x8xf32>
    %68 = vector.extract_strided_slice %37 {offsets = [0, 8], sizes = [8, 8], strides = [1, 1]} : vector<8x32xbf16> to vector<8x8xbf16>
    %69 = arith.truncf %67 : vector<8x8xf32> to vector<8x8xbf16>
    %cst_37 = arith.constant dense<0.000000e+00> : vector<8x8xf32>
    %70 = tpu.matmul %69, %68, %cst_37 {dimension_numbers = #tpu.dot_dimension_numbers<[1], [0], [0], [1], [0, 0, 1, 1], [], []>} : vector<8x8xbf16>, vector<8x8xbf16>, vector<8x8xf32> -> vector<8x8xf32>
    %c0_38 = arith.constant 0 : index
    %c8 = arith.constant 8 : index
    %71 = vector.load %arg29[%c0_38, %c8] : memref<16x32xf32, #tpu.memory_space<vmem>>, vector<8x8xf32>
    tpu.vector_store %arg29[%c0_38, %c8], %70 {strides = array<i32>} : memref<16x32xf32, #tpu.memory_space<vmem>>, vector<8x8xf32>,
    %72 = vector.extract_strided_slice %35 {offsets = [0, 16], sizes = [8, 8], strides = [1, 1]} : vector<8x32xbf16> to vector<8x8xbf16>
    %73 = vector.extract_strided_slice %36 {offsets = [0, 16], sizes = [8, 8], strides = [1, 1]} : vector<8x32xbf16> to vector<8x8xbf16>
    %cst_39 = arith.constant dense<0.000000e+00> : vector<8x8xf32>
    %74 = tpu.matmul %72, %73, %cst_39 {dimension_numbers = #tpu.dot_dimension_numbers<[1], [1], [0], [0], [0, 0, 1, 0], [], []>} : vector<8x8xbf16>, vector<8x8xbf16>, vector<8x8xf32> -> vector<8x8xf32>
    %cst_40 = arith.constant dense<0xFF800000> : vector<8xf32>
    %75 = vector.multi_reduction <maximumf>, %74, %cst_40 [1] : vector<8x8xf32> to vector<8xf32>
    %76 = vector.shape_cast %75 : vector<8xf32> to vector<8x1xf32>
    %77 = vector.broadcast %76 : vector<8x1xf32> to vector<8x8xf32>
    %78 = arith.subf %74, %77 : vector<8x8xf32>
    %79 = math.exp %78 : vector<8x8xf32>
    %cst_41 = arith.constant dense<0.000000e+00> : vector<8xf32>
    %80 = vector.multi_reduction <add>, %79, %cst_41 [1] : vector<8x8xf32> to vector<8xf32>
    %81 = vector.shape_cast %80 : vector<8xf32> to vector<8x1xf32>
    %82 = tpu.reciprocal %81 : vector<8x1xf32> -> vector<8x1xf32>
    %83 = vector.broadcast %82 : vector<8x1xf32> to vector<8x8xf32>
    %84 = arith.mulf %79, %83 : vector<8x8xf32>
    %85 = vector.extract_strided_slice %37 {offsets = [0, 16], sizes = [8, 8], strides = [1, 1]} : vector<8x32xbf16> to vector<8x8xbf16>
    %86 = arith.truncf %84 : vector<8x8xf32> to vector<8x8xbf16>
    %cst_42 = arith.constant dense<0.000000e+00> : vector<8x8xf32>
    %87 = tpu.matmul %86, %85, %cst_42 {dimension_numbers = #tpu.dot_dimension_numbers<[1], [0], [0], [1], [0, 0, 1, 1], [], []>} : vector<8x8xbf16>, vector<8x8xbf16>, vector<8x8xf32> -> vector<8x8xf32>
    %c0_43 = arith.constant 0 : index
    %c16 = arith.constant 16 : index
    %88 = vector.load %arg29[%c0_43, %c16] : memref<16x32xf32, #tpu.memory_space<vmem>>, vector<8x8xf32>
    tpu.vector_store %arg29[%c0_43, %c16], %87 {strides = array<i32>} : memref<16x32xf32, #tpu.memory_space<vmem>>, vector<8x8xf32>,
    %89 = vector.extract_strided_slice %35 {offsets = [0, 24], sizes = [8, 8], strides = [1, 1]} : vector<8x32xbf16> to vector<8x8xbf16>
    %90 = vector.extract_strided_slice %36 {offsets = [0, 24], sizes = [8, 8], strides = [1, 1]} : vector<8x32xbf16> to vector<8x8xbf16>
    %cst_44 = arith.constant dense<0.000000e+00> : vector<8x8xf32>
    %91 = tpu.matmul %89, %90, %cst_44 {dimension_numbers = #tpu.dot_dimension_numbers<[1], [1], [0], [0], [0, 0, 1, 0], [], []>} : vector<8x8xbf16>, vector<8x8xbf16>, vector<8x8xf32> -> vector<8x8xf32>
    %cst_45 = arith.constant dense<0xFF800000> : vector<8xf32>
    %92 = vector.multi_reduction <maximumf>, %91, %cst_45 [1] : vector<8x8xf32> to vector<8xf32>
    %93 = vector.shape_cast %92 : vector<8xf32> to vector<8x1xf32>
    %94 = vector.broadcast %93 : vector<8x1xf32> to vector<8x8xf32>
    %95 = arith.subf %91, %94 : vector<8x8xf32>
    %96 = math.exp %95 : vector<8x8xf32>
    %cst_46 = arith.constant dense<0.000000e+00> : vector<8xf32>
    %97 = vector.multi_reduction <add>, %96, %cst_46 [1] : vector<8x8xf32> to vector<8xf32>
    %98 = vector.shape_cast %97 : vector<8xf32> to vector<8x1xf32>
    %99 = tpu.reciprocal %98 : vector<8x1xf32> -> vector<8x1xf32>
    %100 = vector.broadcast %99 : vector<8x1xf32> to vector<8x8xf32>
    %101 = arith.mulf %96, %100 : vector<8x8xf32>
    %102 = vector.extract_strided_slice %37 {offsets = [0, 24], sizes = [8, 8], strides = [1, 1]} : vector<8x32xbf16> to vector<8x8xbf16>
    %103 = arith.truncf %101 : vector<8x8xf32> to vector<8x8xbf16>
    %cst_47 = arith.constant dense<0.000000e+00> : vector<8x8xf32>
    %104 = tpu.matmul %103, %102, %cst_47 {dimension_numbers = #tpu.dot_dimension_numbers<[1], [0], [0], [1], [0, 0, 1, 1], [], []>} : vector<8x8xbf16>, vector<8x8xbf16>, vector<8x8xf32> -> vector<8x8xf32>
    %c0_48 = arith.constant 0 : index
    %c24 = arith.constant 24 : index
    %105 = vector.load %arg29[%c0_48, %c24] : memref<16x32xf32, #tpu.memory_space<vmem>>, vector<8x8xf32>
    tpu.vector_store %arg29[%c0_48, %c24], %104 {strides = array<i32>} : memref<16x32xf32, #tpu.memory_space<vmem>>, vector<8x8xf32>,
    %106 = vector.extract_strided_slice %32 {offsets = [8, 0], sizes = [8, 32], strides = [1, 1]} : vector<16x32xbf16> to vector<8x32xbf16>
    %107 = vector.extract_strided_slice %33 {offsets = [8, 0], sizes = [8, 32], strides = [1, 1]} : vector<16x32xbf16> to vector<8x32xbf16>
    %108 = vector.extract_strided_slice %34 {offsets = [8, 0], sizes = [8, 32], strides = [1, 1]} : vector<16x32xbf16> to vector<8x32xbf16>
    %109 = vector.extract_strided_slice %106 {offsets = [0, 0], sizes = [8, 8], strides = [1, 1]} : vector<8x32xbf16> to vector<8x8xbf16>
    %110 = vector.extract_strided_slice %107 {offsets = [0, 0], sizes = [8, 8], strides = [1, 1]} : vector<8x32xbf16> to vector<8x8xbf16>
    %cst_49 = arith.constant dense<0.000000e+00> : vector<8x8xf32>
    %111 = tpu.matmul %109, %110, %cst_49 {dimension_numbers = #tpu.dot_dimension_numbers<[1], [1], [0], [0], [0, 0, 1, 0], [], []>} : vector<8x8xbf16>, vector<8x8xbf16>, vector<8x8xf32> -> vector<8x8xf32>
    %cst_50 = arith.constant dense<0xFF800000> : vector<8xf32>
    %112 = vector.multi_reduction <maximumf>, %111, %cst_50 [1] : vector<8x8xf32> to vector<8xf32>
    %113 = vector.shape_cast %112 : vector<8xf32> to vector<8x1xf32>
    %114 = vector.broadcast %113 : vector<8x1xf32> to vector<8x8xf32>
    %115 = arith.subf %111, %114 : vector<8x8xf32>
    %116 = math.exp %115 : vector<8x8xf32>
    %cst_51 = arith.constant dense<0.000000e+00> : vector<8xf32>
    %117 = vector.multi_reduction <add>, %116, %cst_51 [1] : vector<8x8xf32> to vector<8xf32>
    %118 = vector.shape_cast %117 : vector<8xf32> to vector<8x1xf32>
    %119 = tpu.reciprocal %118 : vector<8x1xf32> -> vector<8x1xf32>
    %120 = vector.broadcast %119 : vector<8x1xf32> to vector<8x8xf32>
    %121 = arith.mulf %116, %120 : vector<8x8xf32>
    %122 = vector.extract_strided_slice %108 {offsets = [0, 0], sizes = [8, 8], strides = [1, 1]} : vector<8x32xbf16> to vector<8x8xbf16>
    %123 = arith.truncf %121 : vector<8x8xf32> to vector<8x8xbf16>
    %cst_52 = arith.constant dense<0.000000e+00> : vector<8x8xf32>
    %124 = tpu.matmul %123, %122, %cst_52 {dimension_numbers = #tpu.dot_dimension_numbers<[1], [0], [0], [1], [0, 0, 1, 1], [], []>} : vector<8x8xbf16>, vector<8x8xbf16>, vector<8x8xf32> -> vector<8x8xf32>
    %c8_53 = arith.constant 8 : index
    %c0_54 = arith.constant 0 : index
    %125 = vector.load %arg29[%c8_53, %c0_54] : memref<16x32xf32, #tpu.memory_space<vmem>>, vector<8x8xf32>
    tpu.vector_store %arg29[%c8_53, %c0_54], %124 {strides = array<i32>} : memref<16x32xf32, #tpu.memory_space<vmem>>, vector<8x8xf32>,
    %126 = vector.extract_strided_slice %106 {offsets = [0, 8], sizes = [8, 8], strides = [1, 1]} : vector<8x32xbf16> to vector<8x8xbf16>
    %127 = vector.extract_strided_slice %107 {offsets = [0, 8], sizes = [8, 8], strides = [1, 1]} : vector<8x32xbf16> to vector<8x8xbf16>
    %cst_55 = arith.constant dense<0.000000e+00> : vector<8x8xf32>
    %128 = tpu.matmul %126, %127, %cst_55 {dimension_numbers = #tpu.dot_dimension_numbers<[1], [1], [0], [0], [0, 0, 1, 0], [], []>} : vector<8x8xbf16>, vector<8x8xbf16>, vector<8x8xf32> -> vector<8x8xf32>
    %cst_56 = arith.constant dense<0xFF800000> : vector<8xf32>
    %129 = vector.multi_reduction <maximumf>, %128, %cst_56 [1] : vector<8x8xf32> to vector<8xf32>
    %130 = vector.shape_cast %129 : vector<8xf32> to vector<8x1xf32>
    %131 = vector.broadcast %130 : vector<8x1xf32> to vector<8x8xf32>
    %132 = arith.subf %128, %131 : vector<8x8xf32>
    %133 = math.exp %132 : vector<8x8xf32>
    %cst_57 = arith.constant dense<0.000000e+00> : vector<8xf32>
    %134 = vector.multi_reduction <add>, %133, %cst_57 [1] : vector<8x8xf32> to vector<8xf32>
    %135 = vector.shape_cast %134 : vector<8xf32> to vector<8x1xf32>
    %136 = tpu.reciprocal %135 : vector<8x1xf32> -> vector<8x1xf32>
    %137 = vector.broadcast %136 : vector<8x1xf32> to vector<8x8xf32>
    %138 = arith.mulf %133, %137 : vector<8x8xf32>
    %139 = vector.extract_strided_slice %108 {offsets = [0, 8], sizes = [8, 8], strides = [1, 1]} : vector<8x32xbf16> to vector<8x8xbf16>
    %140 = arith.truncf %138 : vector<8x8xf32> to vector<8x8xbf16>
    %cst_58 = arith.constant dense<0.000000e+00> : vector<8x8xf32>
    %141 = tpu.matmul %140, %139, %cst_58 {dimension_numbers = #tpu.dot_dimension_numbers<[1], [0], [0], [1], [0, 0, 1, 1], [], []>} : vector<8x8xbf16>, vector<8x8xbf16>, vector<8x8xf32> -> vector<8x8xf32>
    %c8_59 = arith.constant 8 : index
    %c8_60 = arith.constant 8 : index
    %142 = vector.load %arg29[%c8_59, %c8_60] : memref<16x32xf32, #tpu.memory_space<vmem>>, vector<8x8xf32>
    tpu.vector_store %arg29[%c8_59, %c8_60], %141 {strides = array<i32>} : memref<16x32xf32, #tpu.memory_space<vmem>>, vector<8x8xf32>,
    %143 = vector.extract_strided_slice %106 {offsets = [0, 16], sizes = [8, 8], strides = [1, 1]} : vector<8x32xbf16> to vector<8x8xbf16>
    %144 = vector.extract_strided_slice %107 {offsets = [0, 16], sizes = [8, 8], strides = [1, 1]} : vector<8x32xbf16> to vector<8x8xbf16>
    %cst_61 = arith.constant dense<0.000000e+00> : vector<8x8xf32>
    %145 = tpu.matmul %143, %144, %cst_61 {dimension_numbers = #tpu.dot_dimension_numbers<[1], [1], [0], [0], [0, 0, 1, 0], [], []>} : vector<8x8xbf16>, vector<8x8xbf16>, vector<8x8xf32> -> vector<8x8xf32>
    %cst_62 = arith.constant dense<0xFF800000> : vector<8xf32>
    %146 = vector.multi_reduction <maximumf>, %145, %cst_62 [1] : vector<8x8xf32> to vector<8xf32>
    %147 = vector.shape_cast %146 : vector<8xf32> to vector<8x1xf32>
    %148 = vector.broadcast %147 : vector<8x1xf32> to vector<8x8xf32>
    %149 = arith.subf %145, %148 : vector<8x8xf32>
    %150 = math.exp %149 : vector<8x8xf32>
    %cst_63 = arith.constant dense<0.000000e+00> : vector<8xf32>
    %151 = vector.multi_reduction <add>, %150, %cst_63 [1] : vector<8x8xf32> to vector<8xf32>
    %152 = vector.shape_cast %151 : vector<8xf32> to vector<8x1xf32>
    %153 = tpu.reciprocal %152 : vector<8x1xf32> -> vector<8x1xf32>
    %154 = vector.broadcast %153 : vector<8x1xf32> to vector<8x8xf32>
    %155 = arith.mulf %150, %154 : vector<8x8xf32>
    %156 = vector.extract_strided_slice %108 {offsets = [0, 16], sizes = [8, 8], strides = [1, 1]} : vector<8x32xbf16> to vector<8x8xbf16>
    %157 = arith.truncf %155 : vector<8x8xf32> to vector<8x8xbf16>
    %cst_64 = arith.constant dense<0.000000e+00> : vector<8x8xf32>
    %158 = tpu.matmul %157, %156, %cst_64 {dimension_numbers = #tpu.dot_dimension_numbers<[1], [0], [0], [1], [0, 0, 1, 1], [], []>} : vector<8x8xbf16>, vector<8x8xbf16>, vector<8x8xf32> -> vector<8x8xf32>
    %c8_65 = arith.constant 8 : index
    %c16_66 = arith.constant 16 : index
    %159 = vector.load %arg29[%c8_65, %c16_66] : memref<16x32xf32, #tpu.memory_space<vmem>>, vector<8x8xf32>
    tpu.vector_store %arg29[%c8_65, %c16_66], %158 {strides = array<i32>} : memref<16x32xf32, #tpu.memory_space<vmem>>, vector<8x8xf32>,
    %160 = vector.extract_strided_slice %106 {offsets = [0, 24], sizes = [8, 8], strides = [1, 1]} : vector<8x32xbf16> to vector<8x8xbf16>
    %161 = vector.extract_strided_slice %107 {offsets = [0, 24], sizes = [8, 8], strides = [1, 1]} : vector<8x32xbf16> to vector<8x8xbf16>
    %cst_67 = arith.constant dense<0.000000e+00> : vector<8x8xf32>
    %162 = tpu.matmul %160, %161, %cst_67 {dimension_numbers = #tpu.dot_dimension_numbers<[1], [1], [0], [0], [0, 0, 1, 0], [], []>} : vector<8x8xbf16>, vector<8x8xbf16>, vector<8x8xf32> -> vector<8x8xf32>
    %cst_68 = arith.constant dense<0xFF800000> : vector<8xf32>
    %163 = vector.multi_reduction <maximumf>, %162, %cst_68 [1] : vector<8x8xf32> to vector<8xf32>
    %164 = vector.shape_cast %163 : vector<8xf32> to vector<8x1xf32>
    %165 = vector.broadcast %164 : vector<8x1xf32> to vector<8x8xf32>
    %166 = arith.subf %162, %165 : vector<8x8xf32>
    %167 = math.exp %166 : vector<8x8xf32>
    %cst_69 = arith.constant dense<0.000000e+00> : vector<8xf32>
    %168 = vector.multi_reduction <add>, %167, %cst_69 [1] : vector<8x8xf32> to vector<8xf32>
    %169 = vector.shape_cast %168 : vector<8xf32> to vector<8x1xf32>
    %170 = tpu.reciprocal %169 : vector<8x1xf32> -> vector<8x1xf32>
    %171 = vector.broadcast %170 : vector<8x1xf32> to vector<8x8xf32>
    %172 = arith.mulf %167, %171 : vector<8x8xf32>
    %173 = vector.extract_strided_slice %108 {offsets = [0, 24], sizes = [8, 8], strides = [1, 1]} : vector<8x32xbf16> to vector<8x8xbf16>
    %174 = arith.truncf %172 : vector<8x8xf32> to vector<8x8xbf16>
    %cst_70 = arith.constant dense<0.000000e+00> : vector<8x8xf32>
    %175 = tpu.matmul %174, %173, %cst_70 {dimension_numbers = #tpu.dot_dimension_numbers<[1], [0], [0], [1], [0, 0, 1, 1], [], []>} : vector<8x8xbf16>, vector<8x8xbf16>, vector<8x8xf32> -> vector<8x8xf32>
    %c8_71 = arith.constant 8 : index
    %c24_72 = arith.constant 24 : index
    %176 = vector.load %arg29[%c8_71, %c24_72] : memref<16x32xf32, #tpu.memory_space<vmem>>, vector<8x8xf32>
    tpu.vector_store %arg29[%c8_71, %c24_72], %175 {strides = array<i32>} : memref<16x32xf32, #tpu.memory_space<vmem>>, vector<8x8xf32>,
    %c0_73 = arith.constant 0 : index
    %c0_74 = arith.constant 0 : index
    %177 = vector.load %arg29[%c0_73, %c0_74] : memref<16x32xf32, #tpu.memory_space<vmem>>, vector<16x32xf32>
    %178 = arith.truncf %177 : vector<16x32xf32> to vector<16x32xbf16>
    %cst_75 = arith.constant dense<0.000000e+00> : vector<16x32xf32>
    %179 = tpu.matmul %178, %29, %cst_75 {dimension_numbers = #tpu.dot_dimension_numbers<[1], [0], [0], [1], [0, 0, 1, 1], [], []>} : vector<16x32xbf16>, vector<32x32xbf16>, vector<16x32xf32> -> vector<16x32xf32>
    %180 = vector.broadcast %31 : vector<1x32xf32> to vector<16x32xf32>
    %181 = arith.addf %179, %180 : vector<16x32xf32>
    %182 = arith.addf %3, %181 : vector<16x32xf32>
    %c0_76 = arith.constant 0 : index
    %c0_77 = arith.constant 0 : index
    %c0_78 = arith.constant 0 : index
    %c0_79 = arith.constant 0 : index
    %183 = vector.load %arg24[%c0_76, %c0_77, %c0_78, %c0_79] : memref<1x4x1x32xf32, #tpu.memory_space<vmem>>, vector<1x1x1x32xf32>
    %184 = vector.shape_cast %183 : vector<1x1x1x32xf32> to vector<1x32xf32>
    %c0_80 = arith.constant 0 : index
    %c0_81 = arith.constant 0 : index
    %c0_82 = arith.constant 0 : index
    %c0_83 = arith.constant 0 : index
    %185 = vector.load %arg25[%c0_80, %c0_81, %c0_82, %c0_83] : memref<1x4x1x32xf32, #tpu.memory_space<vmem>>, vector<1x1x1x32xf32>
    %186 = vector.shape_cast %185 : vector<1x1x1x32xf32> to vector<1x32xf32>
    %cst_84 = arith.constant dense<0.000000e+00> : vector<16xf32>
    %187 = vector.multi_reduction <add>, %182, %cst_84 [1] : vector<16x32xf32> to vector<16xf32>
    %188 = vector.shape_cast %187 : vector<16xf32> to vector<16x1xf32>
    %cst_85 = arith.constant 3.200000e+01 : f32
    %189 = vector.broadcast %cst_85 : f32 to vector<16x1xf32>
    %190 = arith.divf %188, %189 : vector<16x1xf32>
    %191 = vector.broadcast %190 : vector<16x1xf32> to vector<16x32xf32>
    %192 = arith.subf %182, %191 : vector<16x32xf32>
    %193 = arith.mulf %192, %192 : vector<16x32xf32>
    %cst_86 = arith.constant dense<0.000000e+00> : vector<16xf32>
    %194 = vector.multi_reduction <add>, %193, %cst_86 [1] : vector<16x32xf32> to vector<16xf32>
    %195 = vector.shape_cast %194 : vector<16xf32> to vector<16x1xf32>
    %cst_87 = arith.constant 3.200000e+01 : f32
    %196 = vector.broadcast %cst_87 : f32 to vector<16x1xf32>
    %197 = arith.divf %195, %196 : vector<16x1xf32>
    %cst_88 = arith.constant 9.99999974E-6 : f32
    %198 = vector.broadcast %cst_88 : f32 to vector<16x1xf32>
    %199 = arith.addf %197, %198 : vector<16x1xf32>
    %200 = math.rsqrt %199 : vector<16x1xf32>
    %201 = vector.broadcast %200 : vector<16x1xf32> to vector<16x32xf32>
    %202 = arith.mulf %192, %201 : vector<16x32xf32>
    %203 = vector.broadcast %184 : vector<1x32xf32> to vector<16x32xf32>
    %204 = arith.mulf %202, %203 : vector<16x32xf32>
    %205 = vector.broadcast %186 : vector<1x32xf32> to vector<16x32xf32>
    %206 = arith.addf %204, %205 : vector<16x32xf32>
    %207 = arith.addf %206, %8 : vector<16x32xf32>
    %c0_89 = arith.constant 0 : index
    %c0_90 = arith.constant 0 : index
    %c0_91 = arith.constant 0 : index
    %208 = vector.load %arg12[%c0_89, %c0_90, %c0_91] : memref<1x32x32xbf16, #tpu.memory_space<vmem>>, vector<1x32x32xbf16>
    %209 = vector.shape_cast %208 : vector<1x32x32xbf16> to vector<32x32xbf16>
    %210 = arith.truncf %207 : vector<16x32xf32> to vector<16x32xbf16>
    %cst_92 = arith.constant dense<0.000000e+00> : vector<16x32xf32>
    %211 = tpu.matmul %210, %209, %cst_92 {dimension_numbers = #tpu.dot_dimension_numbers<[1], [0], [0], [1], [0, 0, 1, 1], [], []>} : vector<16x32xbf16>, vector<32x32xbf16>, vector<16x32xf32> -> vector<16x32xf32>
    %c0_93 = arith.constant 0 : index
    %c0_94 = arith.constant 0 : index
    %c0_95 = arith.constant 0 : index
    %212 = vector.load %arg13[%c0_93, %c0_94, %c0_95] : memref<1x1x32xf32, #tpu.memory_space<vmem>>, vector<1x1x32xf32>
    %213 = vector.shape_cast %212 : vector<1x1x32xf32> to vector<1x32xf32>
    %214 = vector.broadcast %213 : vector<1x32xf32> to vector<16x32xf32>
    %215 = arith.addf %211, %214 : vector<16x32xf32>
    %c0_96 = arith.constant 0 : index
    %c0_97 = arith.constant 0 : index
    %c0_98 = arith.constant 0 : index
    %216 = vector.load %arg14[%c0_96, %c0_97, %c0_98] : memref<1x32x32xbf16, #tpu.memory_space<vmem>>, vector<1x32x32xbf16>
    %217 = vector.shape_cast %216 : vector<1x32x32xbf16> to vector<32x32xbf16>
    %218 = arith.truncf %6 : vector<32x32xf32> to vector<32x32xbf16>
    %cst_99 = arith.constant dense<0.000000e+00> : vector<32x32xf32>
    %219 = tpu.matmul %218, %217, %cst_99 {dimension_numbers = #tpu.dot_dimension_numbers<[1], [0], [0], [1], [0, 0, 1, 1], [], []>} : vector<32x32xbf16>, vector<32x32xbf16>, vector<32x32xf32> -> vector<32x32xf32>
    %c0_100 = arith.constant 0 : index
    %c0_101 = arith.constant 0 : index
    %c0_102 = arith.constant 0 : index
    %220 = vector.load %arg15[%c0_100, %c0_101, %c0_102] : memref<1x1x32xf32, #tpu.memory_space<vmem>>, vector<1x1x32xf32>
    %221 = vector.shape_cast %220 : vector<1x1x32xf32> to vector<1x32xf32>
    %222 = vector.broadcast %221 : vector<1x32xf32> to vector<32x32xf32>
    %223 = arith.addf %219, %222 : vector<32x32xf32>
    %c0_103 = arith.constant 0 : index
    %c0_104 = arith.constant 0 : index
    %c0_105 = arith.constant 0 : index
    %224 = vector.load %arg16[%c0_103, %c0_104, %c0_105] : memref<1x32x32xbf16, #tpu.memory_space<vmem>>, vector<1x32x32xbf16>
    %225 = vector.shape_cast %224 : vector<1x32x32xbf16> to vector<32x32xbf16>
    %226 = arith.truncf %4 : vector<32x32xf32> to vector<32x32xbf16>
    %cst_106 = arith.constant dense<0.000000e+00> : vector<32x32xf32>
    %227 = tpu.matmul %226, %225, %cst_106 {dimension_numbers = #tpu.dot_dimension_numbers<[1], [0], [0], [1], [0, 0, 1, 1], [], []>} : vector<32x32xbf16>, vector<32x32xbf16>, vector<32x32xf32> -> vector<32x32xf32>
    %c0_107 = arith.constant 0 : index
    %c0_108 = arith.constant 0 : index
    %c0_109 = arith.constant 0 : index
    %228 = vector.load %arg17[%c0_107, %c0_108, %c0_109] : memref<1x1x32xf32, #tpu.memory_space<vmem>>, vector<1x1x32xf32>
    %229 = vector.shape_cast %228 : vector<1x1x32xf32> to vector<1x32xf32>
    %230 = vector.broadcast %229 : vector<1x32xf32> to vector<32x32xf32>
    %231 = arith.addf %227, %230 : vector<32x32xf32>
    %c0_110 = arith.constant 0 : index
    %c0_111 = arith.constant 0 : index
    %c0_112 = arith.constant 0 : index
    %232 = vector.load %arg18[%c0_110, %c0_111, %c0_112] : memref<1x32x32xbf16, #tpu.memory_space<vmem>>, vector<1x32x32xbf16>
    %233 = vector.shape_cast %232 : vector<1x32x32xbf16> to vector<32x32xbf16>
    %c0_113 = arith.constant 0 : index
    %c0_114 = arith.constant 0 : index
    %c0_115 = arith.constant 0 : index
    %234 = vector.load %arg19[%c0_113, %c0_114, %c0_115] : memref<1x1x32xf32, #tpu.memory_space<vmem>>, vector<1x1x32xf32>
    %235 = vector.shape_cast %234 : vector<1x1x32xf32> to vector<1x32xf32>
    %236 = arith.truncf %215 : vector<16x32xf32> to vector<16x32xbf16>
    %237 = arith.truncf %223 : vector<32x32xf32> to vector<32x32xbf16>
    %238 = arith.truncf %231 : vector<32x32xf32> to vector<32x32xbf16>
    %239 = vector.extract_strided_slice %236 {offsets = [0, 0], sizes = [8, 32], strides = [1, 1]} : vector<16x32xbf16> to vector<8x32xbf16>
    %240 = vector.extract_strided_slice %237 {offsets = [0, 0], sizes = [16, 32], strides = [1, 1]} : vector<32x32xbf16> to vector<16x32xbf16>
    %241 = vector.extract_strided_slice %238 {offsets = [0, 0], sizes = [16, 32], strides = [1, 1]} : vector<32x32xbf16> to vector<16x32xbf16>
    %242 = vector.extract_strided_slice %239 {offsets = [0, 0], sizes = [8, 8], strides = [1, 1]} : vector<8x32xbf16> to vector<8x8xbf16>
    %243 = vector.extract_strided_slice %240 {offsets = [0, 0], sizes = [16, 8], strides = [1, 1]} : vector<16x32xbf16> to vector<16x8xbf16>
    %cst_116 = arith.constant dense<0.000000e+00> : vector<8x16xf32>
    %244 = tpu.matmul %242, %243, %cst_116 {dimension_numbers = #tpu.dot_dimension_numbers<[1], [1], [0], [0], [0, 0, 1, 0], [], []>} : vector<8x8xbf16>, vector<16x8xbf16>, vector<8x16xf32> -> vector<8x16xf32>
    %cst_117 = arith.constant dense<0xFF800000> : vector<8xf32>
    %245 = vector.multi_reduction <maximumf>, %244, %cst_117 [1] : vector<8x16xf32> to vector<8xf32>
    %246 = vector.shape_cast %245 : vector<8xf32> to vector<8x1xf32>
    %247 = vector.broadcast %246 : vector<8x1xf32> to vector<8x16xf32>
    %248 = arith.subf %244, %247 : vector<8x16xf32>
    %249 = math.exp %248 : vector<8x16xf32>
    %cst_118 = arith.constant dense<0.000000e+00> : vector<8xf32>
    %250 = vector.multi_reduction <add>, %249, %cst_118 [1] : vector<8x16xf32> to vector<8xf32>
    %251 = vector.shape_cast %250 : vector<8xf32> to vector<8x1xf32>
    %252 = tpu.reciprocal %251 : vector<8x1xf32> -> vector<8x1xf32>
    %253 = vector.broadcast %252 : vector<8x1xf32> to vector<8x16xf32>
    %254 = arith.mulf %249, %253 : vector<8x16xf32>
    %255 = vector.extract_strided_slice %241 {offsets = [0, 0], sizes = [16, 8], strides = [1, 1]} : vector<16x32xbf16> to vector<16x8xbf16>
    %256 = arith.truncf %254 : vector<8x16xf32> to vector<8x16xbf16>
    %cst_119 = arith.constant dense<0.000000e+00> : vector<8x8xf32>
    %257 = tpu.matmul %256, %255, %cst_119 {dimension_numbers = #tpu.dot_dimension_numbers<[1], [0], [0], [1], [0, 0, 1, 1], [], []>} : vector<8x16xbf16>, vector<16x8xbf16>, vector<8x8xf32> -> vector<8x8xf32>
    %c0_120 = arith.constant 0 : index
    %c0_121 = arith.constant 0 : index
    %258 = vector.load %arg29[%c0_120, %c0_121] : memref<16x32xf32, #tpu.memory_space<vmem>>, vector<8x8xf32>
    tpu.vector_store %arg29[%c0_120, %c0_121], %257 {strides = array<i32>} : memref<16x32xf32, #tpu.memory_space<vmem>>, vector<8x8xf32>,
    %259 = vector.extract_strided_slice %239 {offsets = [0, 8], sizes = [8, 8], strides = [1, 1]} : vector<8x32xbf16> to vector<8x8xbf16>
    %260 = vector.extract_strided_slice %240 {offsets = [0, 8], sizes = [16, 8], strides = [1, 1]} : vector<16x32xbf16> to vector<16x8xbf16>
    %cst_122 = arith.constant dense<0.000000e+00> : vector<8x16xf32>
    %261 = tpu.matmul %259, %260, %cst_122 {dimension_numbers = #tpu.dot_dimension_numbers<[1], [1], [0], [0], [0, 0, 1, 0], [], []>} : vector<8x8xbf16>, vector<16x8xbf16>, vector<8x16xf32> -> vector<8x16xf32>
    %cst_123 = arith.constant dense<0xFF800000> : vector<8xf32>
    %262 = vector.multi_reduction <maximumf>, %261, %cst_123 [1] : vector<8x16xf32> to vector<8xf32>
    %263 = vector.shape_cast %262 : vector<8xf32> to vector<8x1xf32>
    %264 = vector.broadcast %263 : vector<8x1xf32> to vector<8x16xf32>
    %265 = arith.subf %261, %264 : vector<8x16xf32>
    %266 = math.exp %265 : vector<8x16xf32>
    %cst_124 = arith.constant dense<0.000000e+00> : vector<8xf32>
    %267 = vector.multi_reduction <add>, %266, %cst_124 [1] : vector<8x16xf32> to vector<8xf32>
    %268 = vector.shape_cast %267 : vector<8xf32> to vector<8x1xf32>
    %269 = tpu.reciprocal %268 : vector<8x1xf32> -> vector<8x1xf32>
    %270 = vector.broadcast %269 : vector<8x1xf32> to vector<8x16xf32>
    %271 = arith.mulf %266, %270 : vector<8x16xf32>
    %272 = vector.extract_strided_slice %241 {offsets = [0, 8], sizes = [16, 8], strides = [1, 1]} : vector<16x32xbf16> to vector<16x8xbf16>
    %273 = arith.truncf %271 : vector<8x16xf32> to vector<8x16xbf16>
    %cst_125 = arith.constant dense<0.000000e+00> : vector<8x8xf32>
    %274 = tpu.matmul %273, %272, %cst_125 {dimension_numbers = #tpu.dot_dimension_numbers<[1], [0], [0], [1], [0, 0, 1, 1], [], []>} : vector<8x16xbf16>, vector<16x8xbf16>, vector<8x8xf32> -> vector<8x8xf32>
    %c0_126 = arith.constant 0 : index
    %c8_127 = arith.constant 8 : index
    %275 = vector.load %arg29[%c0_126, %c8_127] : memref<16x32xf32, #tpu.memory_space<vmem>>, vector<8x8xf32>
    tpu.vector_store %arg29[%c0_126, %c8_127], %274 {strides = array<i32>} : memref<16x32xf32, #tpu.memory_space<vmem>>, vector<8x8xf32>,
    %276 = vector.extract_strided_slice %239 {offsets = [0, 16], sizes = [8, 8], strides = [1, 1]} : vector<8x32xbf16> to vector<8x8xbf16>
    %277 = vector.extract_strided_slice %240 {offsets = [0, 16], sizes = [16, 8], strides = [1, 1]} : vector<16x32xbf16> to vector<16x8xbf16>
    %cst_128 = arith.constant dense<0.000000e+00> : vector<8x16xf32>
    %278 = tpu.matmul %276, %277, %cst_128 {dimension_numbers = #tpu.dot_dimension_numbers<[1], [1], [0], [0], [0, 0, 1, 0], [], []>} : vector<8x8xbf16>, vector<16x8xbf16>, vector<8x16xf32> -> vector<8x16xf32>
    %cst_129 = arith.constant dense<0xFF800000> : vector<8xf32>
    %279 = vector.multi_reduction <maximumf>, %278, %cst_129 [1] : vector<8x16xf32> to vector<8xf32>
    %280 = vector.shape_cast %279 : vector<8xf32> to vector<8x1xf32>
    %281 = vector.broadcast %280 : vector<8x1xf32> to vector<8x16xf32>
    %282 = arith.subf %278, %281 : vector<8x16xf32>
    %283 = math.exp %282 : vector<8x16xf32>
    %cst_130 = arith.constant dense<0.000000e+00> : vector<8xf32>
    %284 = vector.multi_reduction <add>, %283, %cst_130 [1] : vector<8x16xf32> to vector<8xf32>
    %285 = vector.shape_cast %284 : vector<8xf32> to vector<8x1xf32>
    %286 = tpu.reciprocal %285 : vector<8x1xf32> -> vector<8x1xf32>
    %287 = vector.broadcast %286 : vector<8x1xf32> to vector<8x16xf32>
    %288 = arith.mulf %283, %287 : vector<8x16xf32>
    %289 = vector.extract_strided_slice %241 {offsets = [0, 16], sizes = [16, 8], strides = [1, 1]} : vector<16x32xbf16> to vector<16x8xbf16>
    %290 = arith.truncf %288 : vector<8x16xf32> to vector<8x16xbf16>
    %cst_131 = arith.constant dense<0.000000e+00> : vector<8x8xf32>
    %291 = tpu.matmul %290, %289, %cst_131 {dimension_numbers = #tpu.dot_dimension_numbers<[1], [0], [0], [1], [0, 0, 1, 1], [], []>} : vector<8x16xbf16>, vector<16x8xbf16>, vector<8x8xf32> -> vector<8x8xf32>
    %c0_132 = arith.constant 0 : index
    %c16_133 = arith.constant 16 : index
    %292 = vector.load %arg29[%c0_132, %c16_133] : memref<16x32xf32, #tpu.memory_space<vmem>>, vector<8x8xf32>
    tpu.vector_store %arg29[%c0_132, %c16_133], %291 {strides = array<i32>} : memref<16x32xf32, #tpu.memory_space<vmem>>, vector<8x8xf32>,
    %293 = vector.extract_strided_slice %239 {offsets = [0, 24], sizes = [8, 8], strides = [1, 1]} : vector<8x32xbf16> to vector<8x8xbf16>
    %294 = vector.extract_strided_slice %240 {offsets = [0, 24], sizes = [16, 8], strides = [1, 1]} : vector<16x32xbf16> to vector<16x8xbf16>
    %cst_134 = arith.constant dense<0.000000e+00> : vector<8x16xf32>
    %295 = tpu.matmul %293, %294, %cst_134 {dimension_numbers = #tpu.dot_dimension_numbers<[1], [1], [0], [0], [0, 0, 1, 0], [], []>} : vector<8x8xbf16>, vector<16x8xbf16>, vector<8x16xf32> -> vector<8x16xf32>
    %cst_135 = arith.constant dense<0xFF800000> : vector<8xf32>
    %296 = vector.multi_reduction <maximumf>, %295, %cst_135 [1] : vector<8x16xf32> to vector<8xf32>
    %297 = vector.shape_cast %296 : vector<8xf32> to vector<8x1xf32>
    %298 = vector.broadcast %297 : vector<8x1xf32> to vector<8x16xf32>
    %299 = arith.subf %295, %298 : vector<8x16xf32>
    %300 = math.exp %299 : vector<8x16xf32>
    %cst_136 = arith.constant dense<0.000000e+00> : vector<8xf32>
    %301 = vector.multi_reduction <add>, %300, %cst_136 [1] : vector<8x16xf32> to vector<8xf32>
    %302 = vector.shape_cast %301 : vector<8xf32> to vector<8x1xf32>
    %303 = tpu.reciprocal %302 : vector<8x1xf32> -> vector<8x1xf32>
    %304 = vector.broadcast %303 : vector<8x1xf32> to vector<8x16xf32>
    %305 = arith.mulf %300, %304 : vector<8x16xf32>
    %306 = vector.extract_strided_slice %241 {offsets = [0, 24], sizes = [16, 8], strides = [1, 1]} : vector<16x32xbf16> to vector<16x8xbf16>
    %307 = arith.truncf %305 : vector<8x16xf32> to vector<8x16xbf16>
    %cst_137 = arith.constant dense<0.000000e+00> : vector<8x8xf32>
    %308 = tpu.matmul %307, %306, %cst_137 {dimension_numbers = #tpu.dot_dimension_numbers<[1], [0], [0], [1], [0, 0, 1, 1], [], []>} : vector<8x16xbf16>, vector<16x8xbf16>, vector<8x8xf32> -> vector<8x8xf32>
    %c0_138 = arith.constant 0 : index
    %c24_139 = arith.constant 24 : index
    %309 = vector.load %arg29[%c0_138, %c24_139] : memref<16x32xf32, #tpu.memory_space<vmem>>, vector<8x8xf32>
    tpu.vector_store %arg29[%c0_138, %c24_139], %308 {strides = array<i32>} : memref<16x32xf32, #tpu.memory_space<vmem>>, vector<8x8xf32>,
    %310 = vector.extract_strided_slice %236 {offsets = [8, 0], sizes = [8, 32], strides = [1, 1]} : vector<16x32xbf16> to vector<8x32xbf16>
    %311 = vector.extract_strided_slice %237 {offsets = [16, 0], sizes = [16, 32], strides = [1, 1]} : vector<32x32xbf16> to vector<16x32xbf16>
    %312 = vector.extract_strided_slice %238 {offsets = [16, 0], sizes = [16, 32], strides = [1, 1]} : vector<32x32xbf16> to vector<16x32xbf16>
    %313 = vector.extract_strided_slice %310 {offsets = [0, 0], sizes = [8, 8], strides = [1, 1]} : vector<8x32xbf16> to vector<8x8xbf16>
    %314 = vector.extract_strided_slice %311 {offsets = [0, 0], sizes = [16, 8], strides = [1, 1]} : vector<16x32xbf16> to vector<16x8xbf16>
    %cst_140 = arith.constant dense<0.000000e+00> : vector<8x16xf32>
    %315 = tpu.matmul %313, %314, %cst_140 {dimension_numbers = #tpu.dot_dimension_numbers<[1], [1], [0], [0], [0, 0, 1, 0], [], []>} : vector<8x8xbf16>, vector<16x8xbf16>, vector<8x16xf32> -> vector<8x16xf32>
    %cst_141 = arith.constant dense<0xFF800000> : vector<8xf32>
    %316 = vector.multi_reduction <maximumf>, %315, %cst_141 [1] : vector<8x16xf32> to vector<8xf32>
    %317 = vector.shape_cast %316 : vector<8xf32> to vector<8x1xf32>
    %318 = vector.broadcast %317 : vector<8x1xf32> to vector<8x16xf32>
    %319 = arith.subf %315, %318 : vector<8x16xf32>
    %320 = math.exp %319 : vector<8x16xf32>
    %cst_142 = arith.constant dense<0.000000e+00> : vector<8xf32>
    %321 = vector.multi_reduction <add>, %320, %cst_142 [1] : vector<8x16xf32> to vector<8xf32>
    %322 = vector.shape_cast %321 : vector<8xf32> to vector<8x1xf32>
    %323 = tpu.reciprocal %322 : vector<8x1xf32> -> vector<8x1xf32>
    %324 = vector.broadcast %323 : vector<8x1xf32> to vector<8x16xf32>
    %325 = arith.mulf %320, %324 : vector<8x16xf32>
    %326 = vector.extract_strided_slice %312 {offsets = [0, 0], sizes = [16, 8], strides = [1, 1]} : vector<16x32xbf16> to vector<16x8xbf16>
    %327 = arith.truncf %325 : vector<8x16xf32> to vector<8x16xbf16>
    %cst_143 = arith.constant dense<0.000000e+00> : vector<8x8xf32>
    %328 = tpu.matmul %327, %326, %cst_143 {dimension_numbers = #tpu.dot_dimension_numbers<[1], [0], [0], [1], [0, 0, 1, 1], [], []>} : vector<8x16xbf16>, vector<16x8xbf16>, vector<8x8xf32> -> vector<8x8xf32>
    %c8_144 = arith.constant 8 : index
    %c0_145 = arith.constant 0 : index
    %329 = vector.load %arg29[%c8_144, %c0_145] : memref<16x32xf32, #tpu.memory_space<vmem>>, vector<8x8xf32>
    tpu.vector_store %arg29[%c8_144, %c0_145], %328 {strides = array<i32>} : memref<16x32xf32, #tpu.memory_space<vmem>>, vector<8x8xf32>,
    %330 = vector.extract_strided_slice %310 {offsets = [0, 8], sizes = [8, 8], strides = [1, 1]} : vector<8x32xbf16> to vector<8x8xbf16>
    %331 = vector.extract_strided_slice %311 {offsets = [0, 8], sizes = [16, 8], strides = [1, 1]} : vector<16x32xbf16> to vector<16x8xbf16>
    %cst_146 = arith.constant dense<0.000000e+00> : vector<8x16xf32>
    %332 = tpu.matmul %330, %331, %cst_146 {dimension_numbers = #tpu.dot_dimension_numbers<[1], [1], [0], [0], [0, 0, 1, 0], [], []>} : vector<8x8xbf16>, vector<16x8xbf16>, vector<8x16xf32> -> vector<8x16xf32>
    %cst_147 = arith.constant dense<0xFF800000> : vector<8xf32>
    %333 = vector.multi_reduction <maximumf>, %332, %cst_147 [1] : vector<8x16xf32> to vector<8xf32>
    %334 = vector.shape_cast %333 : vector<8xf32> to vector<8x1xf32>
    %335 = vector.broadcast %334 : vector<8x1xf32> to vector<8x16xf32>
    %336 = arith.subf %332, %335 : vector<8x16xf32>
    %337 = math.exp %336 : vector<8x16xf32>
    %cst_148 = arith.constant dense<0.000000e+00> : vector<8xf32>
    %338 = vector.multi_reduction <add>, %337, %cst_148 [1] : vector<8x16xf32> to vector<8xf32>
    %339 = vector.shape_cast %338 : vector<8xf32> to vector<8x1xf32>
    %340 = tpu.reciprocal %339 : vector<8x1xf32> -> vector<8x1xf32>
    %341 = vector.broadcast %340 : vector<8x1xf32> to vector<8x16xf32>
    %342 = arith.mulf %337, %341 : vector<8x16xf32>
    %343 = vector.extract_strided_slice %312 {offsets = [0, 8], sizes = [16, 8], strides = [1, 1]} : vector<16x32xbf16> to vector<16x8xbf16>
    %344 = arith.truncf %342 : vector<8x16xf32> to vector<8x16xbf16>
    %cst_149 = arith.constant dense<0.000000e+00> : vector<8x8xf32>
    %345 = tpu.matmul %344, %343, %cst_149 {dimension_numbers = #tpu.dot_dimension_numbers<[1], [0], [0], [1], [0, 0, 1, 1], [], []>} : vector<8x16xbf16>, vector<16x8xbf16>, vector<8x8xf32> -> vector<8x8xf32>
    %c8_150 = arith.constant 8 : index
    %c8_151 = arith.constant 8 : index
    %346 = vector.load %arg29[%c8_150, %c8_151] : memref<16x32xf32, #tpu.memory_space<vmem>>, vector<8x8xf32>
    tpu.vector_store %arg29[%c8_150, %c8_151], %345 {strides = array<i32>} : memref<16x32xf32, #tpu.memory_space<vmem>>, vector<8x8xf32>,
    %347 = vector.extract_strided_slice %310 {offsets = [0, 16], sizes = [8, 8], strides = [1, 1]} : vector<8x32xbf16> to vector<8x8xbf16>
    %348 = vector.extract_strided_slice %311 {offsets = [0, 16], sizes = [16, 8], strides = [1, 1]} : vector<16x32xbf16> to vector<16x8xbf16>
    %cst_152 = arith.constant dense<0.000000e+00> : vector<8x16xf32>
    %349 = tpu.matmul %347, %348, %cst_152 {dimension_numbers = #tpu.dot_dimension_numbers<[1], [1], [0], [0], [0, 0, 1, 0], [], []>} : vector<8x8xbf16>, vector<16x8xbf16>, vector<8x16xf32> -> vector<8x16xf32>
    %cst_153 = arith.constant dense<0xFF800000> : vector<8xf32>
    %350 = vector.multi_reduction <maximumf>, %349, %cst_153 [1] : vector<8x16xf32> to vector<8xf32>
    %351 = vector.shape_cast %350 : vector<8xf32> to vector<8x1xf32>
    %352 = vector.broadcast %351 : vector<8x1xf32> to vector<8x16xf32>
    %353 = arith.subf %349, %352 : vector<8x16xf32>
    %354 = math.exp %353 : vector<8x16xf32>
    %cst_154 = arith.constant dense<0.000000e+00> : vector<8xf32>
    %355 = vector.multi_reduction <add>, %354, %cst_154 [1] : vector<8x16xf32> to vector<8xf32>
    %356 = vector.shape_cast %355 : vector<8xf32> to vector<8x1xf32>
    %357 = tpu.reciprocal %356 : vector<8x1xf32> -> vector<8x1xf32>
    %358 = vector.broadcast %357 : vector<8x1xf32> to vector<8x16xf32>
    %359 = arith.mulf %354, %358 : vector<8x16xf32>
    %360 = vector.extract_strided_slice %312 {offsets = [0, 16], sizes = [16, 8], strides = [1, 1]} : vector<16x32xbf16> to vector<16x8xbf16>
    %361 = arith.truncf %359 : vector<8x16xf32> to vector<8x16xbf16>
    %cst_155 = arith.constant dense<0.000000e+00> : vector<8x8xf32>
    %362 = tpu.matmul %361, %360, %cst_155 {dimension_numbers = #tpu.dot_dimension_numbers<[1], [0], [0], [1], [0, 0, 1, 1], [], []>} : vector<8x16xbf16>, vector<16x8xbf16>, vector<8x8xf32> -> vector<8x8xf32>
    %c8_156 = arith.constant 8 : index
    %c16_157 = arith.constant 16 : index
    %363 = vector.load %arg29[%c8_156, %c16_157] : memref<16x32xf32, #tpu.memory_space<vmem>>, vector<8x8xf32>
    tpu.vector_store %arg29[%c8_156, %c16_157], %362 {strides = array<i32>} : memref<16x32xf32, #tpu.memory_space<vmem>>, vector<8x8xf32>,
    %364 = vector.extract_strided_slice %310 {offsets = [0, 24], sizes = [8, 8], strides = [1, 1]} : vector<8x32xbf16> to vector<8x8xbf16>
    %365 = vector.extract_strided_slice %311 {offsets = [0, 24], sizes = [16, 8], strides = [1, 1]} : vector<16x32xbf16> to vector<16x8xbf16>
    %cst_158 = arith.constant dense<0.000000e+00> : vector<8x16xf32>
    %366 = tpu.matmul %364, %365, %cst_158 {dimension_numbers = #tpu.dot_dimension_numbers<[1], [1], [0], [0], [0, 0, 1, 0], [], []>} : vector<8x8xbf16>, vector<16x8xbf16>, vector<8x16xf32> -> vector<8x16xf32>
    %cst_159 = arith.constant dense<0xFF800000> : vector<8xf32>
    %367 = vector.multi_reduction <maximumf>, %366, %cst_159 [1] : vector<8x16xf32> to vector<8xf32>
    %368 = vector.shape_cast %367 : vector<8xf32> to vector<8x1xf32>
    %369 = vector.broadcast %368 : vector<8x1xf32> to vector<8x16xf32>
    %370 = arith.subf %366, %369 : vector<8x16xf32>
    %371 = math.exp %370 : vector<8x16xf32>
    %cst_160 = arith.constant dense<0.000000e+00> : vector<8xf32>
    %372 = vector.multi_reduction <add>, %371, %cst_160 [1] : vector<8x16xf32> to vector<8xf32>
    %373 = vector.shape_cast %372 : vector<8xf32> to vector<8x1xf32>
    %374 = tpu.reciprocal %373 : vector<8x1xf32> -> vector<8x1xf32>
    %375 = vector.broadcast %374 : vector<8x1xf32> to vector<8x16xf32>
    %376 = arith.mulf %371, %375 : vector<8x16xf32>
    %377 = vector.extract_strided_slice %312 {offsets = [0, 24], sizes = [16, 8], strides = [1, 1]} : vector<16x32xbf16> to vector<16x8xbf16>
    %378 = arith.truncf %376 : vector<8x16xf32> to vector<8x16xbf16>
    %cst_161 = arith.constant dense<0.000000e+00> : vector<8x8xf32>
    %379 = tpu.matmul %378, %377, %cst_161 {dimension_numbers = #tpu.dot_dimension_numbers<[1], [0], [0], [1], [0, 0, 1, 1], [], []>} : vector<8x16xbf16>, vector<16x8xbf16>, vector<8x8xf32> -> vector<8x8xf32>
    %c8_162 = arith.constant 8 : index
    %c24_163 = arith.constant 24 : index
    %380 = vector.load %arg29[%c8_162, %c24_163] : memref<16x32xf32, #tpu.memory_space<vmem>>, vector<8x8xf32>
    tpu.vector_store %arg29[%c8_162, %c24_163], %379 {strides = array<i32>} : memref<16x32xf32, #tpu.memory_space<vmem>>, vector<8x8xf32>,
    %c0_164 = arith.constant 0 : index
    %c0_165 = arith.constant 0 : index
    %381 = vector.load %arg29[%c0_164, %c0_165] : memref<16x32xf32, #tpu.memory_space<vmem>>, vector<16x32xf32>
    %382 = arith.truncf %381 : vector<16x32xf32> to vector<16x32xbf16>
    %cst_166 = arith.constant dense<0.000000e+00> : vector<16x32xf32>
    %383 = tpu.matmul %382, %233, %cst_166 {dimension_numbers = #tpu.dot_dimension_numbers<[1], [0], [0], [1], [0, 0, 1, 1], [], []>} : vector<16x32xbf16>, vector<32x32xbf16>, vector<16x32xf32> -> vector<16x32xf32>
    %384 = vector.broadcast %235 : vector<1x32xf32> to vector<16x32xf32>
    %385 = arith.addf %383, %384 : vector<16x32xf32>
    %386 = arith.addf %206, %385 : vector<16x32xf32>
    %c0_167 = arith.constant 0 : index
    %c1 = arith.constant 1 : index
    %c0_168 = arith.constant 0 : index
    %c0_169 = arith.constant 0 : index
    %387 = vector.load %arg24[%c0_167, %c1, %c0_168, %c0_169] : memref<1x4x1x32xf32, #tpu.memory_space<vmem>>, vector<1x1x1x32xf32>
    %388 = vector.shape_cast %387 : vector<1x1x1x32xf32> to vector<1x32xf32>
    %c0_170 = arith.constant 0 : index
    %c1_171 = arith.constant 1 : index
    %c0_172 = arith.constant 0 : index
    %c0_173 = arith.constant 0 : index
    %389 = vector.load %arg25[%c0_170, %c1_171, %c0_172, %c0_173] : memref<1x4x1x32xf32, #tpu.memory_space<vmem>>, vector<1x1x1x32xf32>
    %390 = vector.shape_cast %389 : vector<1x1x1x32xf32> to vector<1x32xf32>
    %cst_174 = arith.constant dense<0.000000e+00> : vector<16xf32>
    %391 = vector.multi_reduction <add>, %386, %cst_174 [1] : vector<16x32xf32> to vector<16xf32>
    %392 = vector.shape_cast %391 : vector<16xf32> to vector<16x1xf32>
    %cst_175 = arith.constant 3.200000e+01 : f32
    %393 = vector.broadcast %cst_175 : f32 to vector<16x1xf32>
    %394 = arith.divf %392, %393 : vector<16x1xf32>
    %395 = vector.broadcast %394 : vector<16x1xf32> to vector<16x32xf32>
    %396 = arith.subf %386, %395 : vector<16x32xf32>
    %397 = arith.mulf %396, %396 : vector<16x32xf32>
    %cst_176 = arith.constant dense<0.000000e+00> : vector<16xf32>
    %398 = vector.multi_reduction <add>, %397, %cst_176 [1] : vector<16x32xf32> to vector<16xf32>
    %399 = vector.shape_cast %398 : vector<16xf32> to vector<16x1xf32>
    %cst_177 = arith.constant 3.200000e+01 : f32
    %400 = vector.broadcast %cst_177 : f32 to vector<16x1xf32>
    %401 = arith.divf %399, %400 : vector<16x1xf32>
    %cst_178 = arith.constant 9.99999974E-6 : f32
    %402 = vector.broadcast %cst_178 : f32 to vector<16x1xf32>
    %403 = arith.addf %401, %402 : vector<16x1xf32>
    %404 = math.rsqrt %403 : vector<16x1xf32>
    %405 = vector.broadcast %404 : vector<16x1xf32> to vector<16x32xf32>
    %406 = arith.mulf %396, %405 : vector<16x32xf32>
    %407 = vector.broadcast %388 : vector<1x32xf32> to vector<16x32xf32>
    %408 = arith.mulf %406, %407 : vector<16x32xf32>
    %409 = vector.broadcast %390 : vector<1x32xf32> to vector<16x32xf32>
    %410 = arith.addf %408, %409 : vector<16x32xf32>
    %c0_179 = arith.constant 0 : index
    %c0_180 = arith.constant 0 : index
    %c0_181 = arith.constant 0 : index
    %411 = vector.load %arg20[%c0_179, %c0_180, %c0_181] : memref<1x32x64xbf16, #tpu.memory_space<vmem>>, vector<1x32x64xbf16>
    %412 = vector.shape_cast %411 : vector<1x32x64xbf16> to vector<32x64xbf16>
    %413 = arith.truncf %410 : vector<16x32xf32> to vector<16x32xbf16>
    %cst_182 = arith.constant dense<0.000000e+00> : vector<16x64xf32>
    %414 = tpu.matmul %413, %412, %cst_182 {dimension_numbers = #tpu.dot_dimension_numbers<[1], [0], [0], [1], [0, 0, 1, 1], [], []>} : vector<16x32xbf16>, vector<32x64xbf16>, vector<16x64xf32> -> vector<16x64xf32>
    %c0_183 = arith.constant 0 : index
    %c0_184 = arith.constant 0 : index
    %c0_185 = arith.constant 0 : index
    %415 = vector.load %arg21[%c0_183, %c0_184, %c0_185] : memref<1x1x64xf32, #tpu.memory_space<vmem>>, vector<1x1x64xf32>
    %416 = vector.shape_cast %415 : vector<1x1x64xf32> to vector<1x64xf32>
    %417 = vector.broadcast %416 : vector<1x64xf32> to vector<16x64xf32>
    %418 = arith.addf %414, %417 : vector<16x64xf32>
    %cst_186 = arith.constant 0.000000e+00 : f32
    %419 = vector.broadcast %cst_186 : f32 to vector<16x64xf32>
    %420 = arith.maximumf %418, %419 : vector<16x64xf32>
    %c0_187 = arith.constant 0 : index
    %c0_188 = arith.constant 0 : index
    %c0_189 = arith.constant 0 : index
    %421 = vector.load %arg22[%c0_187, %c0_188, %c0_189] : memref<1x64x32xbf16, #tpu.memory_space<vmem>>, vector<1x64x32xbf16>
    %422 = vector.shape_cast %421 : vector<1x64x32xbf16> to vector<64x32xbf16>
    %423 = arith.truncf %420 : vector<16x64xf32> to vector<16x64xbf16>
    %cst_190 = arith.constant dense<0.000000e+00> : vector<16x32xf32>
    %424 = tpu.matmul %423, %422, %cst_190 {dimension_numbers = #tpu.dot_dimension_numbers<[1], [0], [0], [1], [0, 0, 1, 1], [], []>} : vector<16x64xbf16>, vector<64x32xbf16>, vector<16x32xf32> -> vector<16x32xf32>
    %c0_191 = arith.constant 0 : index
    %c0_192 = arith.constant 0 : index
    %c0_193 = arith.constant 0 : index
    %425 = vector.load %arg23[%c0_191, %c0_192, %c0_193] : memref<1x1x32xf32, #tpu.memory_space<vmem>>, vector<1x1x32xf32>
    %426 = vector.shape_cast %425 : vector<1x1x32xf32> to vector<1x32xf32>
    %427 = vector.broadcast %426 : vector<1x32xf32> to vector<16x32xf32>
    %428 = arith.addf %424, %427 : vector<16x32xf32>
    %429 = arith.addf %410, %428 : vector<16x32xf32>
    %c0_194 = arith.constant 0 : index
    %c2 = arith.constant 2 : index
    %c0_195 = arith.constant 0 : index
    %c0_196 = arith.constant 0 : index
    %430 = vector.load %arg24[%c0_194, %c2, %c0_195, %c0_196] : memref<1x4x1x32xf32, #tpu.memory_space<vmem>>, vector<1x1x1x32xf32>
    %431 = vector.shape_cast %430 : vector<1x1x1x32xf32> to vector<1x32xf32>
    %c0_197 = arith.constant 0 : index
    %c2_198 = arith.constant 2 : index
    %c0_199 = arith.constant 0 : index
    %c0_200 = arith.constant 0 : index
    %432 = vector.load %arg25[%c0_197, %c2_198, %c0_199, %c0_200] : memref<1x4x1x32xf32, #tpu.memory_space<vmem>>, vector<1x1x1x32xf32>
    %433 = vector.shape_cast %432 : vector<1x1x1x32xf32> to vector<1x32xf32>
    %cst_201 = arith.constant dense<0.000000e+00> : vector<16xf32>
    %434 = vector.multi_reduction <add>, %429, %cst_201 [1] : vector<16x32xf32> to vector<16xf32>
    %435 = vector.shape_cast %434 : vector<16xf32> to vector<16x1xf32>
    %cst_202 = arith.constant 3.200000e+01 : f32
    %436 = vector.broadcast %cst_202 : f32 to vector<16x1xf32>
    %437 = arith.divf %435, %436 : vector<16x1xf32>
    %438 = vector.broadcast %437 : vector<16x1xf32> to vector<16x32xf32>
    %439 = arith.subf %429, %438 : vector<16x32xf32>
    %440 = arith.mulf %439, %439 : vector<16x32xf32>
    %cst_203 = arith.constant dense<0.000000e+00> : vector<16xf32>
    %441 = vector.multi_reduction <add>, %440, %cst_203 [1] : vector<16x32xf32> to vector<16xf32>
    %442 = vector.shape_cast %441 : vector<16xf32> to vector<16x1xf32>
    %cst_204 = arith.constant 3.200000e+01 : f32
    %443 = vector.broadcast %cst_204 : f32 to vector<16x1xf32>
    %444 = arith.divf %442, %443 : vector<16x1xf32>
    %cst_205 = arith.constant 9.99999974E-6 : f32
    %445 = vector.broadcast %cst_205 : f32 to vector<16x1xf32>
    %446 = arith.addf %444, %445 : vector<16x1xf32>
    %447 = math.rsqrt %446 : vector<16x1xf32>
    %448 = vector.broadcast %447 : vector<16x1xf32> to vector<16x32xf32>
    %449 = arith.mulf %439, %448 : vector<16x32xf32>
    %450 = vector.broadcast %431 : vector<1x32xf32> to vector<16x32xf32>
    %451 = arith.mulf %449, %450 : vector<16x32xf32>
    %452 = vector.broadcast %433 : vector<1x32xf32> to vector<16x32xf32>
    %453 = arith.addf %451, %452 : vector<16x32xf32>
    %c0_206 = arith.constant 0 : index
    %c0_207 = arith.constant 0 : index
    %454 = vector.load %arg28[%c0_206, %c0_207] : memref<16x32xf32, #tpu.memory_space<vmem>>, vector<16x32xf32>
    tpu.vector_store %arg28[%c0_206, %c0_207], %453 {strides = array<i32>} : memref<16x32xf32, #tpu.memory_space<vmem>>, vector<16x32xf32>,
    %c0_208 = arith.constant 0 : index
    %c3 = arith.constant 3 : index
    %c0_209 = arith.constant 0 : index
    %c0_210 = arith.constant 0 : index
    %455 = vector.load %arg24[%c0_208, %c3, %c0_209, %c0_210] : memref<1x4x1x32xf32, #tpu.memory_space<vmem>>, vector<1x1x1x32xf32>
    %456 = vector.shape_cast %455 : vector<1x1x1x32xf32> to vector<1x32xf32>
    %c0_211 = arith.constant 0 : index
    %c3_212 = arith.constant 3 : index
    %c0_213 = arith.constant 0 : index
    %c0_214 = arith.constant 0 : index
    %457 = vector.load %arg25[%c0_211, %c3_212, %c0_213, %c0_214] : memref<1x4x1x32xf32, #tpu.memory_space<vmem>>, vector<1x1x1x32xf32>
    %458 = vector.shape_cast %457 : vector<1x1x1x32xf32> to vector<1x32xf32>
    %cst_215 = arith.constant dense<0.000000e+00> : vector<16xf32>
    %459 = vector.multi_reduction <add>, %453, %cst_215 [1] : vector<16x32xf32> to vector<16xf32>
    %460 = vector.shape_cast %459 : vector<16xf32> to vector<16x1xf32>
    %cst_216 = arith.constant 3.200000e+01 : f32
    %461 = vector.broadcast %cst_216 : f32 to vector<16x1xf32>
    %462 = arith.divf %460, %461 : vector<16x1xf32>
    %463 = vector.broadcast %462 : vector<16x1xf32> to vector<16x32xf32>
    %464 = arith.subf %453, %463 : vector<16x32xf32>
    %465 = arith.mulf %464, %464 : vector<16x32xf32>
    %cst_217 = arith.constant dense<0.000000e+00> : vector<16xf32>
    %466 = vector.multi_reduction <add>, %465, %cst_217 [1] : vector<16x32xf32> to vector<16xf32>
    %467 = vector.shape_cast %466 : vector<16xf32> to vector<16x1xf32>
    %cst_218 = arith.constant 3.200000e+01 : f32
    %468 = vector.broadcast %cst_218 : f32 to vector<16x1xf32>
    %469 = arith.divf %467, %468 : vector<16x1xf32>
    %cst_219 = arith.constant 9.99999974E-6 : f32
    %470 = vector.broadcast %cst_219 : f32 to vector<16x1xf32>
    %471 = arith.addf %469, %470 : vector<16x1xf32>
    %472 = math.rsqrt %471 : vector<16x1xf32>
    %473 = vector.broadcast %472 : vector<16x1xf32> to vector<16x32xf32>
    %474 = arith.mulf %464, %473 : vector<16x32xf32>
    %475 = vector.broadcast %456 : vector<1x32xf32> to vector<16x32xf32>
    %476 = arith.mulf %474, %475 : vector<16x32xf32>
    %477 = vector.broadcast %458 : vector<1x32xf32> to vector<16x32xf32>
    %478 = arith.addf %476, %477 : vector<16x32xf32>
    %c0_220 = arith.constant 0 : index
    %c0_221 = arith.constant 0 : index
    %c0_222 = arith.constant 0 : index
    %479 = vector.load %arg26[%c0_220, %c0_221, %c0_222] : memref<1x16x32xf32, #tpu.memory_space<vmem>>, vector<1x16x32xf32>
    %480 = vector.shape_cast %479 : vector<1x16x32xf32> to vector<16x32xf32>
    %481 = vector.shape_cast %478 : vector<16x32xf32> to vector<1x16x32xf32>
    tpu.vector_store %arg26[%c0_220, %c0_221, %c0_222], %481 {strides = array<i32>} : memref<1x16x32xf32, #tpu.memory_space<vmem>>, vector<1x16x32xf32>,
    %c1_i32 = arith.constant 1 : i32
    %482 = arith.cmpi eq, %arg1, %c1_i32 : i32
    %483 = arith.extui %482 : i1 to i32
    %c0_i32_223 = arith.constant 0 : i32
    %484 = arith.cmpi ne, %483, %c0_i32_223 : i32
    scf.if %484 {
      %c0_224 = arith.constant 0 : index
      %c0_225 = arith.constant 0 : index
      %485 = vector.load %arg27[%c0_224, %c0_225] : memref<16x32xf32, #tpu.memory_space<vmem>>, vector<16x32xf32>
      tpu.vector_store %arg27[%c0_224, %c0_225], %453 {strides = array<i32>} : memref<16x32xf32, #tpu.memory_space<vmem>>, vector<16x32xf32>,
    } else {
    }
    return
  }
  func.func @transform_0(%arg0: i32, %arg1: i32) -> (i32, i32) {
    %c0_i32 = arith.constant 0 : i32
    %c0_i32_0 = arith.constant 0 : i32
    return %arg0, %c0_i32 : i32, i32
  }
  func.func @transform_1(%arg0: i32, %arg1: i32) -> (i32, i32) {
    %c0_i32 = arith.constant 0 : i32
    %c0_i32_0 = arith.constant 0 : i32
    return %arg0, %c0_i32 : i32, i32
  }
  func.func @transform_2(%arg0: i32, %arg1: i32) -> (i32, i32) {
    %c0_i32 = arith.constant 0 : i32
    %c0_i32_0 = arith.constant 0 : i32
    return %arg0, %c0_i32 : i32, i32
  }
  func.func @transform_3(%arg0: i32, %arg1: i32) -> (i32, i32, i32) {
    %c0_i32 = arith.constant 0 : i32
    %c0_i32_0 = arith.constant 0 : i32
    %c0_i32_1 = arith.constant 0 : i32
    return %c0_i32, %arg0, %c0_i32_0 : i32, i32, i32
  }
  func.func @transform_4(%arg0: i32, %arg1: i32) -> (i32, i32, i32) {
    %c0_i32 = arith.constant 0 : i32
    %c0_i32_0 = arith.constant 0 : i32
    %c0_i32_1 = arith.constant 0 : i32
    return %arg1, %c0_i32, %c0_i32_0 : i32, i32, i32
  }
  func.func @transform_5(%arg0: i32, %arg1: i32) -> (i32, i32, i32) {
    %c0_i32 = arith.constant 0 : i32
    %c0_i32_0 = arith.constant 0 : i32
    %c0_i32_1 = arith.constant 0 : i32
    return %arg1, %c0_i32, %c0_i32_0 : i32, i32, i32
  }
  func.func @transform_6(%arg0: i32, %arg1: i32) -> (i32, i32, i32) {
    %c0_i32 = arith.constant 0 : i32
    %c0_i32_0 = arith.constant 0 : i32
    %c0_i32_1 = arith.constant 0 : i32
    return %arg1, %c0_i32, %c0_i32_0 : i32, i32, i32
  }
  func.func @transform_7(%arg0: i32, %arg1: i32) -> (i32, i32, i32) {
    %c0_i32 = arith.constant 0 : i32
    %c0_i32_0 = arith.constant 0 : i32
    %c0_i32_1 = arith.constant 0 : i32
    return %arg1, %c0_i32, %c0_i32_0 : i32, i32, i32
  }
  func.func @transform_8(%arg0: i32, %arg1: i32) -> (i32, i32, i32) {
    %c0_i32 = arith.constant 0 : i32
    %c0_i32_0 = arith.constant 0 : i32
    %c0_i32_1 = arith.constant 0 : i32
    return %arg1, %c0_i32, %c0_i32_0 : i32, i32, i32
  }
  func.func @transform_9(%arg0: i32, %arg1: i32) -> (i32, i32, i32) {
    %c0_i32 = arith.constant 0 : i32
    %c0_i32_0 = arith.constant 0 : i32
    %c0_i32_1 = arith.constant 0 : i32
    return %arg1, %c0_i32, %c0_i32_0 : i32, i32, i32
  }
  func.func @transform_10(%arg0: i32, %arg1: i32) -> (i32, i32, i32) {
    %c0_i32 = arith.constant 0 : i32
    %c0_i32_0 = arith.constant 0 : i32
    %c0_i32_1 = arith.constant 0 : i32
    return %arg1, %c0_i32, %c0_i32_0 : i32, i32, i32
  }
  func.func @transform_11(%arg0: i32, %arg1: i32) -> (i32, i32, i32) {
    %c0_i32 = arith.constant 0 : i32
    %c0_i32_0 = arith.constant 0 : i32
    %c0_i32_1 = arith.constant 0 : i32
    return %arg1, %c0_i32, %c0_i32_0 : i32, i32, i32
  }
  func.func @transform_12(%arg0: i32, %arg1: i32) -> (i32, i32, i32) {
    %c0_i32 = arith.constant 0 : i32
    %c0_i32_0 = arith.constant 0 : i32
    %c0_i32_1 = arith.constant 0 : i32
    return %arg1, %c0_i32, %c0_i32_0 : i32, i32, i32
  }
  func.func @transform_13(%arg0: i32, %arg1: i32) -> (i32, i32, i32) {
    %c0_i32 = arith.constant 0 : i32
    %c0_i32_0 = arith.constant 0 : i32
    %c0_i32_1 = arith.constant 0 : i32
    return %arg1, %c0_i32, %c0_i32_0 : i32, i32, i32
  }
  func.func @transform_14(%arg0: i32, %arg1: i32) -> (i32, i32, i32) {
    %c0_i32 = arith.constant 0 : i32
    %c0_i32_0 = arith.constant 0 : i32
    %c0_i32_1 = arith.constant 0 : i32
    return %arg1, %c0_i32, %c0_i32_0 : i32, i32, i32
  }
  func.func @transform_15(%arg0: i32, %arg1: i32) -> (i32, i32, i32) {
    %c0_i32 = arith.constant 0 : i32
    %c0_i32_0 = arith.constant 0 : i32
    %c0_i32_1 = arith.constant 0 : i32
    return %arg1, %c0_i32, %c0_i32_0 : i32, i32, i32
  }
  func.func @transform_16(%arg0: i32, %arg1: i32) -> (i32, i32, i32) {
    %c0_i32 = arith.constant 0 : i32
    %c0_i32_0 = arith.constant 0 : i32
    %c0_i32_1 = arith.constant 0 : i32
    return %arg1, %c0_i32, %c0_i32_0 : i32, i32, i32
  }
  func.func @transform_17(%arg0: i32, %arg1: i32) -> (i32, i32, i32) {
    %c0_i32 = arith.constant 0 : i32
    %c0_i32_0 = arith.constant 0 : i32
    %c0_i32_1 = arith.constant 0 : i32
    return %arg1, %c0_i32, %c0_i32_0 : i32, i32, i32
  }
  func.func @transform_18(%arg0: i32, %arg1: i32) -> (i32, i32, i32) {
    %c0_i32 = arith.constant 0 : i32
    %c0_i32_0 = arith.constant 0 : i32
    %c0_i32_1 = arith.constant 0 : i32
    return %arg1, %c0_i32, %c0_i32_0 : i32, i32, i32
  }
  func.func @transform_19(%arg0: i32, %arg1: i32) -> (i32, i32, i32) {
    %c0_i32 = arith.constant 0 : i32
    %c0_i32_0 = arith.constant 0 : i32
    %c0_i32_1 = arith.constant 0 : i32
    return %arg1, %c0_i32, %c0_i32_0 : i32, i32, i32
  }
  func.func @transform_20(%arg0: i32, %arg1: i32) -> (i32, i32, i32) {
    %c0_i32 = arith.constant 0 : i32
    %c0_i32_0 = arith.constant 0 : i32
    %c0_i32_1 = arith.constant 0 : i32
    return %arg1, %c0_i32, %c0_i32_0 : i32, i32, i32
  }
  func.func @transform_21(%arg0: i32, %arg1: i32) -> (i32, i32, i32) {
    %c0_i32 = arith.constant 0 : i32
    %c0_i32_0 = arith.constant 0 : i32
    %c0_i32_1 = arith.constant 0 : i32
    return %arg1, %c0_i32, %c0_i32_0 : i32, i32, i32
  }
  func.func @transform_22(%arg0: i32, %arg1: i32) -> (i32, i32, i32, i32) {
    %c0_i32 = arith.constant 0 : i32
    %c0_i32_0 = arith.constant 0 : i32
    %c0_i32_1 = arith.constant 0 : i32
    %c0_i32_2 = arith.constant 0 : i32
    return %arg1, %c0_i32, %c0_i32_0, %c0_i32_1 : i32, i32, i32, i32
  }
  func.func @transform_23(%arg0: i32, %arg1: i32) -> (i32, i32, i32, i32) {
    %c0_i32 = arith.constant 0 : i32
    %c0_i32_0 = arith.constant 0 : i32
    %c0_i32_1 = arith.constant 0 : i32
    %c0_i32_2 = arith.constant 0 : i32
    return %arg1, %c0_i32, %c0_i32_0, %c0_i32_1 : i32, i32, i32, i32
  }
  func.func @transform_24(%arg0: i32, %arg1: i32) -> (i32, i32, i32) {
    %c0_i32 = arith.constant 0 : i32
    %c0_i32_0 = arith.constant 0 : i32
    return %arg1, %arg0, %c0_i32 : i32, i32, i32
  }
  func.func @transform_25(%arg0: i32, %arg1: i32) -> (i32, i32) {
    %c0_i32 = arith.constant 0 : i32
    %c0_i32_0 = arith.constant 0 : i32
    return %arg0, %c0_i32 : i32, i32
  }
}

</mosaic_0001>

<llo_original>
// kernel: transformer_decoder_forward.1
$region0: #{transformer_decoder_forward.1}
  #allocation0 [shape = 'u32[]', space=smem, size = 0x4, offset = 0x4, fixed_abs, tag = 'smem constant byte address 0x4 - core index']
  #allocation1 [shape = 'u32[144,128]{1,0:T(1,128)}', space=vmem, size = 0x12000, scoped, tag = 'internal scratch']
  #allocation2 [shape = 'f32[16,32]{1,0:T(8,128)}', space=vmem, size = 0x2000, scoped, tag = 'scratch operand']
  #allocation3 [shape = 'f32[16,32]{1,0:T(8,128)}', space=vmem, size = 0x2000, scoped, tag = 'scratch operand']
  %s0 = inlined_call_operand.vmem [shape: f32[16,32], index: 0, kind: input, shape index: {}]
  %s1 = inlined_call_operand.vmem [shape: f32[32,32], index: 1, kind: input, shape index: {}]
  %s2 = inlined_call_operand.vmem [shape: f32[32,32], index: 2, kind: input, shape index: {}]
  %s3 = inlined_call_operand.vmem [shape: f32[1,16,32], index: 3, kind: input, shape index: {}]
  %s4 = inlined_call_operand.vmem [shape: bf16[2,32,64], index: 4, kind: input, shape index: {}]
  %s5 = inlined_call_operand.vmem [shape: f32[2,1,64], index: 5, kind: input, shape index: {}]
  %s6 = inlined_call_operand.vmem [shape: bf16[2,32,32], index: 6, kind: input, shape index: {}]
  %s7 = inlined_call_operand.vmem [shape: f32[2,1,32], index: 7, kind: input, shape index: {}]
  %s8 = inlined_call_operand.vmem [shape: bf16[2,32,32], index: 8, kind: input, shape index: {}]
  %s9 = inlined_call_operand.vmem [shape: f32[2,1,32], index: 9, kind: input, shape index: {}]
  %s10 = inlined_call_operand.vmem [shape: bf16[2,32,32], index: 10, kind: input, shape index: {}]
  %s11 = inlined_call_operand.hbm [shape: f32[2,1,32], index: 11, kind: input, shape index: {}]
  %s12 = inlined_call_operand.vmem [shape: bf16[2,32,32], index: 12, kind: input, shape index: {}]
  %s13 = inlined_call_operand.hbm [shape: f32[2,1,32], index: 13, kind: input, shape index: {}]
  %s14 = inlined_call_operand.vmem [shape: bf16[2,32,32], index: 14, kind: input, shape index: {}]
  %s15 = inlined_call_operand.hbm [shape: f32[2,1,32], index: 15, kind: input, shape index: {}]
  %s16 = inlined_call_operand.vmem [shape: bf16[2,32,32], index: 16, kind: input, shape index: {}]
  %s17 = inlined_call_operand.hbm [shape: f32[2,1,32], index: 17, kind: input, shape index: {}]
  %s18 = inlined_call_operand.vmem [shape: bf16[2,32,64], index: 18, kind: input, shape index: {}]
  %s19 = inlined_call_operand.hbm [shape: f32[2,1,64], index: 19, kind: input, shape index: {}]
  %s20 = inlined_call_operand.vmem [shape: bf16[2,64,32], index: 20, kind: input, shape index: {}]
  %s21 = inlined_call_operand.hbm [shape: f32[2,1,32], index: 21, kind: input, shape index: {}]
  %s22 = inlined_call_operand.vmem [shape: f32[2,4,1,32], index: 22, kind: input, shape index: {}]
  %s23 = inlined_call_operand.vmem [shape: f32[2,4,1,32], index: 23, kind: input, shape index: {}]
  %s24 = inlined_call_operand.vmem [shape: f32[2,16,32], index: 24, kind: output, shape index: {0}]
  %s25 = inlined_call_operand.hbm [shape: f32[16,32], index: 25, kind: output, shape index: {1}]
  %26 = xla_tuple %s24, %s25
  %s27 = sld [smem:[#allocation0]]
  $region169: #{transformer_decoder_forward.1} parent=0
    _
  %s29 = ssub.s32 1, %s27
  %s30 = scalar_select 0, %s29, %s27
  $region1: #{transformer_decoder_forward.1} parent=0
    #allocation4 [shape = 'u8[1024]{0}', space=vmem, size = 0x400, scoped, tag = 'input window, operand 11']
    #allocation5 [shape = 's32[2]{0}', space=sflag, size = 0x8, scoped, tag = 'scoped memory for transformer_decoder_forward.1']
    #allocation6 [shape = 's32[2]{0}', space=sflag, size = 0x8, scoped, tag = 'scoped memory for transformer_decoder_forward.1']
    #allocation7 [shape = 'u8[1024]{0}', space=vmem, size = 0x400, scoped, tag = 'input window, operand 13']
    #allocation8 [shape = 's32[2]{0}', space=sflag, size = 0x8, scoped, tag = 'scoped memory for transformer_decoder_forward.1']
    #allocation9 [shape = 'u8[1024]{0}', space=vmem, size = 0x400, scoped, tag = 'input window, operand 15']
    #allocation10 [shape = 'u8[1024]{0}', space=vmem, size = 0x400, scoped, tag = 'input window, operand 17']
    #allocation11 [shape = 's32[2]{0}', space=sflag, size = 0x8, scoped, tag = 'scoped memory for transformer_decoder_forward.1']
    #allocation12 [shape = 'u8[1024]{0}', space=vmem, size = 0x400, scoped, tag = 'input window, operand 19']
    #allocation13 [shape = 'u8[1024]{0}', space=vmem, size = 0x400, scoped, tag = 'input window, operand 21']
    #allocation14 [shape = 's32[2]{0}', space=sflag, size = 0x8, scoped, tag = 'scoped memory for transformer_decoder_forward.1']
    #allocation15 [shape = 'u8[8192]{0}', space=vmem, size = 0x2000, scoped, tag = 'output window, operand 1, single buffered']
    %31 = vsyncpa [#allocation5], 0
    %s32 = scalar_lea.sflag [#allocation5], 1
    %33 = vsyncpa %s32, 0
    %34 = vsyncpa [#allocation8], 0
    %s35 = scalar_lea.sflag [#allocation8], 1
    %36 = vsyncpa %s35, 0
    %37 = vsyncpa [#allocation11], 0
    %s38 = scalar_lea.sflag [#allocation11], 1
    %39 = vsyncpa %s38, 0
    %40 = vsyncpa [#allocation14], 0
    %s41 = scalar_lea.sflag [#allocation14], 1
    %42 = vsyncpa %s41, 0
    %43 = vsyncpa [#allocation6], 0
    loop: start=0, step=1, limit=4
    $region2: #{transformer_decoder_forward.1} parent=1 // loop_pre_header
      _
    $region3: #{transformer_decoder_forward.1} parent=1 // loop_header
      %s45 = sphi 0, %s49
      %p46 = scmp.ge.s32.totalorder %s45, 4
      %s52 = sphi 0, %s64
      %s53 = sphi 0, %s60
      %s54 = sphi 0, %s52
      %s55 = sphi 0, %s53
      %s56 = sphi 0, %s54
      %s57 = sphi 0, %s55
      %s67 = sphi 0, %s69
      %s70 = sphi 0, %s67
      %s71 = sphi 0, %s70
      %s87 = sphi 0, %s71
      %s93 = sphi 0, %s95
      %s96 = sphi 0, %s93
      %s97 = sphi 0, %s96
      %s113 = sphi 0, %s97
      %s119 = sphi 0, %s121
      %s122 = sphi 0, %s119
      %s123 = sphi 0, %s122
      %s139 = sphi 0, %s123
      %s145 = sphi 0, %s147
      %s148 = sphi 0, %s145
      %s149 = sphi 0, %s148
      %s165 = sphi 0, %s149
      %s171 = sphi 0, %s173
      %s174 = sphi 0, %s171
      %s175 = sphi 0, %s174
      %s191 = sphi 0, %s175
      %s197 = sphi 0, %s199
      %s200 = sphi 0, %s197
      %s201 = sphi 0, %s200
      %s217 = sphi 0, %s201
      %s223 = sphi 0, %s225
      %s226 = sphi 0, %s223
      %s227 = sphi 0, %s226
      %s243 = sphi 0, %s227
      %s249 = sphi 0, %s251
      %s252 = sphi 0, %s249
      %s253 = sphi 0, %s252
      %s269 = sphi 0, %s253
      %s275 = sphi 0, %s277
      %s278 = sphi 0, %s275
      %s279 = sphi 0, %s278
      %s295 = sphi 0, %s279
      %s301 = sphi 0, %s303
      %s304 = sphi 0, %s301
      %s305 = sphi 0, %s304
      %s321 = sphi 0, %s305
      %s327 = sphi 0, %s329
      %s330 = sphi 0, %s327
      %s331 = sphi 0, %s330
      %s347 = sphi 0, %s331
      %s353 = sphi 0, %s355
      %s356 = sphi 0, %s353
      %s357 = sphi 0, %s356
      %s373 = sphi 0, %s357
      %s379 = sphi 0, %s381
      %s382 = sphi 0, %s379
      %s383 = sphi 0, %s382
      %s399 = sphi 0, %s383
      %s405 = sphi 0, %s407
      %s408 = sphi 0, %s405
      %s409 = sphi 0, %s408
      %s425 = sphi 0, %s409
      %s431 = sphi 0, %s433
      %s434 = sphi 0, %s431
      %s435 = sphi 0, %s434
      %s451 = sphi 0, %s435
      %s457 = sphi 0, %s459
      %s460 = sphi 0, %s457
      %s461 = sphi 0, %s460
      %s477 = sphi 0, %s461
      %s483 = sphi 0, %s485
      %s486 = sphi 0, %s483
      %s487 = sphi 0, %s486
      %s503 = sphi 0, %s487
      %s509 = sphi 0, %s511
      %s512 = sphi 0, %s509
      %s513 = sphi 0, %s512
      %s529 = sphi 0, %s513
      %s535 = sphi 0, %s537
      %s538 = sphi 0, %s535
      %s539 = sphi 0, %s538
      %s555 = sphi 0, %s539
      %s561 = sphi 0, %s563
      %s564 = sphi 0, %s561
      %s565 = sphi 0, %s564
      %s581 = sphi 0, %s565
      %s587 = sphi 0, %s589
      %s590 = sphi 0, %s587
      %s591 = sphi 0, %s590
      %s607 = sphi 0, %s591
      %s613 = sphi 0, %s615
      %s616 = sphi 0, %s613
      %s617 = sphi 0, %s616
      %s633 = sphi 0, %s617
      %s639 = sphi 0, %s641
      %s642 = sphi 0, %s639
      %s643 = sphi 0, %s642
      %s659 = sphi 0, %s643
      %s665 = sphi 0, %s667
      %s668 = sphi 0, %s665
      %s669 = sphi 0, %s668
      %s685 = sphi 0, %s669
      %s693 = sphi 0, %s695
      %s696 = sphi 0, %s693
      %s697 = sphi 0, %s696
      %s713 = sphi 0, %s697
      %s719 = sphi 0, %s721
      %s722 = sphi 0, %s719
      %s723 = sphi 0, %s722
      %s739 = sphi 0, %s723
    $region4: #{transformer_decoder_forward.1} parent=1 // loop_header_branch
      %48 = sbr.rel (%p46) target = $region8
    $region5: #{transformer_decoder_forward.1} parent=1 // loop_body
      %s50 = ssub.s32 %s45, 1
      %s51 = ssub.s32 %s45, 2
      %s58 = sadd.s32 1, %s53
      %p59 = scmp.ge.s32.totalorder %s58, 2
      %s60 = scalar_select %p59, 0, %s58
      %s61 = sadd.s32 1, %s52
      %s62 = scalar_select %p59, %s61, %s52
      %p63 = scmp.ge.s32.totalorder %s62, 1
      %s64 = scalar_select %p63, 0, %s62
      %s65 = ssub.s32 %s52, %s64
      %p66 = scmp.eq.s32.totalorder %s65, 0
      %s68 = sadd.s32 %s67, 1
      %s69 = scalar_select %p66, %s67, %s68
      %p72 = pneg %p66
      %p73 = scmp.eq.s32.totalorder %s45, 1
      %p74 = por %p72, %p73
      %p75 = scmp.ne.s32.totalorder %s67, %s70
      %p76 = scmp.eq.s32.totalorder %s45, 0
      %p77 = por %p75, %p76
      %p78 = scmp.ne.s32.totalorder %s67, %s70
      %p79 = scmp.eq.s32.totalorder %s50, 1
      %p80 = por %p78, %p79
      %p81 = scmp.ne.s32.totalorder %s70, %s71
      %p82 = scmp.eq.s32.totalorder %s50, 0
      %p83 = por %p81, %p82
      %p84 = scmp.ne.s32.totalorder %s70, %s71
      %p85 = scmp.eq.s32.totalorder %s51, 1
      %p86 = por %p84, %p85
      %p88 = scmp.ne.s32.totalorder %s71, %s87
      %p89 = scmp.eq.s32.totalorder %s51, 0
      %p90 = por %p88, %p89
      %s91 = ssub.s32 %s52, %s64
      %p92 = scmp.eq.s32.totalorder %s91, 0
      %s94 = sadd.s32 %s93, 1
      %s95 = scalar_select %p92, %s93, %s94
      %p98 = pneg %p92
      %p99 = scmp.eq.s32.totalorder %s45, 1
      %p100 = por %p98, %p99
      %p101 = scmp.ne.s32.totalorder %s93, %s96
      %p102 = scmp.eq.s32.totalorder %s45, 0
      %p103 = por %p101, %p102
      %p104 = scmp.ne.s32.totalorder %s93, %s96
      %p105 = scmp.eq.s32.totalorder %s50, 1
      %p106 = por %p104, %p105
      %p107 = scmp.ne.s32.totalorder %s96, %s97
      %p108 = scmp.eq.s32.totalorder %s50, 0
      %p109 = por %p107, %p108
      %p110 = scmp.ne.s32.totalorder %s96, %s97
      %p111 = scmp.eq.s32.totalorder %s51, 1
      %p112 = por %p110, %p111
      %p114 = scmp.ne.s32.totalorder %s97, %s113
      %p115 = scmp.eq.s32.totalorder %s51, 0
      %p116 = por %p114, %p115
      %s117 = ssub.s32 %s52, %s64
      %p118 = scmp.eq.s32.totalorder %s117, 0
      %s120 = sadd.s32 %s119, 1
      %s121 = scalar_select %p118, %s119, %s120
      %p124 = pneg %p118
      %p125 = scmp.eq.s32.totalorder %s45, 1
      %p126 = por %p124, %p125
      %p127 = scmp.ne.s32.totalorder %s119, %s122
      %p128 = scmp.eq.s32.totalorder %s45, 0
      %p129 = por %p127, %p128
      %p130 = scmp.ne.s32.totalorder %s119, %s122
      %p131 = scmp.eq.s32.totalorder %s50, 1
      %p132 = por %p130, %p131
      %p133 = scmp.ne.s32.totalorder %s122, %s123
      %p134 = scmp.eq.s32.totalorder %s50, 0
      %p135 = por %p133, %p134
      %p136 = scmp.ne.s32.totalorder %s122, %s123
      %p137 = scmp.eq.s32.totalorder %s51, 1
      %p138 = por %p136, %p137
      %p140 = scmp.ne.s32.totalorder %s123, %s139
      %p141 = scmp.eq.s32.totalorder %s51, 0
      %p142 = por %p140, %p141
      %s143 = ssub.s32 %s52, %s64
      %p144 = scmp.eq.s32.totalorder %s143, 0
      %s146 = sadd.s32 %s145, 1
      %s147 = scalar_select %p144, %s145, %s146
      %p150 = pneg %p144
      %p151 = scmp.eq.s32.totalorder %s45, 1
      %p152 = por %p150, %p151
      %p153 = scmp.ne.s32.totalorder %s145, %s148
      %p154 = scmp.eq.s32.totalorder %s45, 0
      %p155 = por %p153, %p154
      %p156 = scmp.ne.s32.totalorder %s145, %s148
      %p157 = scmp.eq.s32.totalorder %s50, 1
      %p158 = por %p156, %p157
      %p159 = scmp.ne.s32.totalorder %s148, %s149
      %p160 = scmp.eq.s32.totalorder %s50, 0
      %p161 = por %p159, %p160
      %p162 = scmp.ne.s32.totalorder %s148, %s149
      %p163 = scmp.eq.s32.totalorder %s51, 1
      %p164 = por %p162, %p163
      %p166 = scmp.ne.s32.totalorder %s149, %s165
      %p167 = scmp.eq.s32.totalorder %s51, 0
      %p168 = por %p166, %p167
      %s169 = ssub.s32 %s53, %s60
      %p170 = scmp.eq.s32.totalorder %s169, 0
      %s172 = sadd.s32 %s171, 1
      %s173 = scalar_select %p170, %s171, %s172
      %p176 = pneg %p170
      %p177 = scmp.eq.s32.totalorder %s45, 1
      %p178 = por %p176, %p177
      %p179 = scmp.ne.s32.totalorder %s171, %s174
      %p180 = scmp.eq.s32.totalorder %s45, 0
      %p181 = por %p179, %p180
      %p182 = scmp.ne.s32.totalorder %s171, %s174
      %p183 = scmp.eq.s32.totalorder %s50, 1
      %p184 = por %p182, %p183
      %p185 = scmp.ne.s32.totalorder %s174, %s175
      %p186 = scmp.eq.s32.totalorder %s50, 0
      %p187 = por %p185, %p186
      %p188 = scmp.ne.s32.totalorder %s174, %s175
      %p189 = scmp.eq.s32.totalorder %s51, 1
      %p190 = por %p188, %p189
      %p192 = scmp.ne.s32.totalorder %s175, %s191
      %p193 = scmp.eq.s32.totalorder %s51, 0
      %p194 = por %p192, %p193
      %s195 = ssub.s32 %s53, %s60
      %p196 = scmp.eq.s32.totalorder %s195, 0
      %s198 = sadd.s32 %s197, 1
      %s199 = scalar_select %p196, %s197, %s198
      %p202 = pneg %p196
      %p203 = scmp.eq.s32.totalorder %s45, 1
      %p204 = por %p202, %p203
      %p205 = scmp.ne.s32.totalorder %s197, %s200
      %p206 = scmp.eq.s32.totalorder %s45, 0
      %p207 = por %p205, %p206
      %p208 = scmp.ne.s32.totalorder %s197, %s200
      %p209 = scmp.eq.s32.totalorder %s50, 1
      %p210 = por %p208, %p209
      %p211 = scmp.ne.s32.totalorder %s200, %s201
      %p212 = scmp.eq.s32.totalorder %s50, 0
      %p213 = por %p211, %p212
      %p214 = scmp.ne.s32.totalorder %s200, %s201
      %p215 = scmp.eq.s32.totalorder %s51, 1
      %p216 = por %p214, %p215
      %p218 = scmp.ne.s32.totalorder %s201, %s217
      %p219 = scmp.eq.s32.totalorder %s51, 0
      %p220 = por %p218, %p219
      %s221 = ssub.s32 %s53, %s60
      %p222 = scmp.eq.s32.totalorder %s221, 0
      %s224 = sadd.s32 %s223, 1
      %s225 = scalar_select %p222, %s223, %s224
      %p228 = pneg %p222
      %p229 = scmp.eq.s32.totalorder %s45, 1
      %p230 = por %p228, %p229
      %p231 = scmp.ne.s32.totalorder %s223, %s226
      %p232 = scmp.eq.s32.totalorder %s45, 0
      %p233 = por %p231, %p232
      %p234 = scmp.ne.s32.totalorder %s223, %s226
      %p235 = scmp.eq.s32.totalorder %s50, 1
      %p236 = por %p234, %p235
      %p237 = scmp.ne.s32.totalorder %s226, %s227
      %p238 = scmp.eq.s32.totalorder %s50, 0
      %p239 = por %p237, %p238
      %p240 = scmp.ne.s32.totalorder %s226, %s227
      %p241 = scmp.eq.s32.totalorder %s51, 1
      %p242 = por %p240, %p241
      %p244 = scmp.ne.s32.totalorder %s227, %s243
      %p245 = scmp.eq.s32.totalorder %s51, 0
      %p246 = por %p244, %p245
      %s247 = ssub.s32 %s53, %s60
      %p248 = scmp.eq.s32.totalorder %s247, 0
      %s250 = sadd.s32 %s249, 1
      %s251 = scalar_select %p248, %s249, %s250
      %p254 = pneg %p248
      %p255 = scmp.eq.s32.totalorder %s45, 1
      %p256 = por %p254, %p255
      %p257 = scmp.ne.s32.totalorder %s249, %s252
      %p258 = scmp.eq.s32.totalorder %s45, 0
      %p259 = por %p257, %p258
      %p260 = scmp.ne.s32.totalorder %s249, %s252
      %p261 = scmp.eq.s32.totalorder %s50, 1
      %p262 = por %p260, %p261
      %p263 = scmp.ne.s32.totalorder %s252, %s253
      %p264 = scmp.eq.s32.totalorder %s50, 0
      %p265 = por %p263, %p264
      %p266 = scmp.ne.s32.totalorder %s252, %s253
      %p267 = scmp.eq.s32.totalorder %s51, 1
      %p268 = por %p266, %p267
      %p270 = scmp.ne.s32.totalorder %s253, %s269
      %p271 = scmp.eq.s32.totalorder %s51, 0
      %p272 = por %p270, %p271
      %s273 = ssub.s32 %s53, %s60
      %p274 = scmp.eq.s32.totalorder %s273, 0
      %s276 = sadd.s32 %s275, 1
      %s277 = scalar_select %p274, %s275, %s276
      %p280 = pneg %p274
      %p281 = scmp.eq.s32.totalorder %s45, 1
      %p282 = por %p280, %p281
      %p283 = scmp.ne.s32.totalorder %s275, %s278
      %p284 = scmp.eq.s32.totalorder %s45, 0
      %p285 = por %p283, %p284
      %p286 = scmp.ne.s32.totalorder %s275, %s278
      %p287 = scmp.eq.s32.totalorder %s50, 1
      %p288 = por %p286, %p287
      %p289 = scmp.ne.s32.totalorder %s278, %s279
      %p290 = scmp.eq.s32.totalorder %s50, 0
      %p291 = por %p289, %p290
      %p292 = scmp.ne.s32.totalorder %s278, %s279
      %p293 = scmp.eq.s32.totalorder %s51, 1
      %p294 = por %p292, %p293
      %p296 = scmp.ne.s32.totalorder %s279, %s295
      %p297 = scmp.eq.s32.totalorder %s51, 0
      %p298 = por %p296, %p297
      %s299 = ssub.s32 %s53, %s60
      %p300 = scmp.eq.s32.totalorder %s299, 0
      %s302 = sadd.s32 %s301, 1
      %s303 = scalar_select %p300, %s301, %s302
      %p306 = pneg %p300
      %p307 = scmp.eq.s32.totalorder %s45, 1
      %p308 = por %p306, %p307
      %p309 = scmp.ne.s32.totalorder %s301, %s304
      %p310 = scmp.eq.s32.totalorder %s45, 0
      %p311 = por %p309, %p310
      %p312 = scmp.ne.s32.totalorder %s301, %s304
      %p313 = scmp.eq.s32.totalorder %s50, 1
      %p314 = por %p312, %p313
      %p315 = scmp.ne.s32.totalorder %s304, %s305
      %p316 = scmp.eq.s32.totalorder %s50, 0
      %p317 = por %p315, %p316
      %p318 = scmp.ne.s32.totalorder %s304, %s305
      %p319 = scmp.eq.s32.totalorder %s51, 1
      %p320 = por %p318, %p319
      %p322 = scmp.ne.s32.totalorder %s305, %s321
      %p323 = scmp.eq.s32.totalorder %s51, 0
      %p324 = por %p322, %p323
      %s325 = ssub.s32 %s53, %s60
      %p326 = scmp.eq.s32.totalorder %s325, 0
      %s328 = sadd.s32 %s327, 1
      %s329 = scalar_select %p326, %s327, %s328
      %p332 = pneg %p326
      %p333 = scmp.eq.s32.totalorder %s45, 1
      %p334 = por %p332, %p333
      %p335 = scmp.ne.s32.totalorder %s327, %s330
      %p336 = scmp.eq.s32.totalorder %s45, 0
      %p337 = por %p335, %p336
      %p338 = scmp.ne.s32.totalorder %s327, %s330
      %p339 = scmp.eq.s32.totalorder %s50, 1
      %p340 = por %p338, %p339
      %p341 = scmp.ne.s32.totalorder %s330, %s331
      %p342 = scmp.eq.s32.totalorder %s50, 0
      %p343 = por %p341, %p342
      %p344 = scmp.ne.s32.totalorder %s330, %s331
      %p345 = scmp.eq.s32.totalorder %s51, 1
      %p346 = por %p344, %p345
      %p348 = scmp.ne.s32.totalorder %s331, %s347
      %p349 = scmp.eq.s32.totalorder %s51, 0
      %p350 = por %p348, %p349
      %s351 = ssub.s32 %s53, %s60
      %p352 = scmp.eq.s32.totalorder %s351, 0
      %s354 = sadd.s32 %s353, 1
      %s355 = scalar_select %p352, %s353, %s354
      %p358 = pneg %p352
      %p359 = scmp.eq.s32.totalorder %s45, 1
      %p360 = por %p358, %p359
      %p361 = scmp.ne.s32.totalorder %s353, %s356
      %p362 = scmp.eq.s32.totalorder %s45, 0
      %p363 = por %p361, %p362
      %p364 = scmp.ne.s32.totalorder %s353, %s356
      %p365 = scmp.eq.s32.totalorder %s50, 1
      %p366 = por %p364, %p365
      %p367 = scmp.ne.s32.totalorder %s356, %s357
      %p368 = scmp.eq.s32.totalorder %s50, 0
      %p369 = por %p367, %p368
      %p370 = scmp.ne.s32.totalorder %s356, %s357
      %p371 = scmp.eq.s32.totalorder %s51, 1
      %p372 = por %p370, %p371
      %p374 = scmp.ne.s32.totalorder %s357, %s373
      %p375 = scmp.eq.s32.totalorder %s51, 0
      %p376 = por %p374, %p375
      %s377 = ssub.s32 %s53, %s60
      %p378 = scmp.eq.s32.totalorder %s377, 0
      %s380 = sadd.s32 %s379, 1
      %s381 = scalar_select %p378, %s379, %s380
      %p384 = pneg %p378
      %p385 = scmp.eq.s32.totalorder %s45, 1
      %p386 = por %p384, %p385
      %p387 = scmp.ne.s32.totalorder %s379, %s382
      %p388 = scmp.eq.s32.totalorder %s45, 0
      %p389 = por %p387, %p388
      %p390 = scmp.ne.s32.totalorder %s379, %s382
      %p391 = scmp.eq.s32.totalorder %s50, 1
      %p392 = por %p390, %p391
      %p393 = scmp.ne.s32.totalorder %s382, %s383
      %p394 = scmp.eq.s32.totalorder %s50, 0
      %p395 = por %p393, %p394
      %p396 = scmp.ne.s32.totalorder %s382, %s383
      %p397 = scmp.eq.s32.totalorder %s51, 1
      %p398 = por %p396, %p397
      %p400 = scmp.ne.s32.totalorder %s383, %s399
      %p401 = scmp.eq.s32.totalorder %s51, 0
      %p402 = por %p400, %p401
      %s403 = ssub.s32 %s53, %s60
      %p404 = scmp.eq.s32.totalorder %s403, 0
      %s406 = sadd.s32 %s405, 1
      %s407 = scalar_select %p404, %s405, %s406
      %p410 = pneg %p404
      %p411 = scmp.eq.s32.totalorder %s45, 1
      %p412 = por %p410, %p411
      %p413 = scmp.ne.s32.totalorder %s405, %s408
      %p414 = scmp.eq.s32.totalorder %s45, 0
      %p415 = por %p413, %p414
      %p416 = scmp.ne.s32.totalorder %s405, %s408
      %p417 = scmp.eq.s32.totalorder %s50, 1
      %p418 = por %p416, %p417
      %p419 = scmp.ne.s32.totalorder %s408, %s409
      %p420 = scmp.eq.s32.totalorder %s50, 0
      %p421 = por %p419, %p420
      %p422 = scmp.ne.s32.totalorder %s408, %s409
      %p423 = scmp.eq.s32.totalorder %s51, 1
      %p424 = por %p422, %p423
      %p426 = scmp.ne.s32.totalorder %s409, %s425
      %p427 = scmp.eq.s32.totalorder %s51, 0
      %p428 = por %p426, %p427
      %s429 = ssub.s32 %s53, %s60
      %p430 = scmp.eq.s32.totalorder %s429, 0
      %s432 = sadd.s32 %s431, 1
      %s433 = scalar_select %p430, %s431, %s432
      %p436 = pneg %p430
      %p437 = scmp.eq.s32.totalorder %s45, 1
      %p438 = por %p436, %p437
      %p439 = scmp.ne.s32.totalorder %s431, %s434
      %p440 = scmp.eq.s32.totalorder %s45, 0
      %p441 = por %p439, %p440
      %p442 = scmp.ne.s32.totalorder %s431, %s434
      %p443 = scmp.eq.s32.totalorder %s50, 1
      %p444 = por %p442, %p443
      %p445 = scmp.ne.s32.totalorder %s434, %s435
      %p446 = scmp.eq.s32.totalorder %s50, 0
      %p447 = por %p445, %p446
      %p448 = scmp.ne.s32.totalorder %s434, %s435
      %p449 = scmp.eq.s32.totalorder %s51, 1
      %p450 = por %p448, %p449
      %p452 = scmp.ne.s32.totalorder %s435, %s451
      %p453 = scmp.eq.s32.totalorder %s51, 0
      %p454 = por %p452, %p453
      %s455 = ssub.s32 %s53, %s60
      %p456 = scmp.eq.s32.totalorder %s455, 0
      %s458 = sadd.s32 %s457, 1
      %s459 = scalar_select %p456, %s457, %s458
      %p462 = pneg %p456
      %p463 = scmp.eq.s32.totalorder %s45, 1
      %p464 = por %p462, %p463
      %p465 = scmp.ne.s32.totalorder %s457, %s460
      %p466 = scmp.eq.s32.totalorder %s45, 0
      %p467 = por %p465, %p466
      %p468 = scmp.ne.s32.totalorder %s457, %s460
      %p469 = scmp.eq.s32.totalorder %s50, 1
      %p470 = por %p468, %p469
      %p471 = scmp.ne.s32.totalorder %s460, %s461
      %p472 = scmp.eq.s32.totalorder %s50, 0
      %p473 = por %p471, %p472
      %p474 = scmp.ne.s32.totalorder %s460, %s461
      %p475 = scmp.eq.s32.totalorder %s51, 1
      %p476 = por %p474, %p475
      %p478 = scmp.ne.s32.totalorder %s461, %s477
      %p479 = scmp.eq.s32.totalorder %s51, 0
      %p480 = por %p478, %p479
      %s481 = ssub.s32 %s53, %s60
      %p482 = scmp.eq.s32.totalorder %s481, 0
      %s484 = sadd.s32 %s483, 1
      %s485 = scalar_select %p482, %s483, %s484
      %p488 = pneg %p482
      %p489 = scmp.eq.s32.totalorder %s45, 1
      %p490 = por %p488, %p489
      %p491 = scmp.ne.s32.totalorder %s483, %s486
      %p492 = scmp.eq.s32.totalorder %s45, 0
      %p493 = por %p491, %p492
      %p494 = scmp.ne.s32.totalorder %s483, %s486
      %p495 = scmp.eq.s32.totalorder %s50, 1
      %p496 = por %p494, %p495
      %p497 = scmp.ne.s32.totalorder %s486, %s487
      %p498 = scmp.eq.s32.totalorder %s50, 0
      %p499 = por %p497, %p498
      %p500 = scmp.ne.s32.totalorder %s486, %s487
      %p501 = scmp.eq.s32.totalorder %s51, 1
      %p502 = por %p500, %p501
      %p504 = scmp.ne.s32.totalorder %s487, %s503
      %p505 = scmp.eq.s32.totalorder %s51, 0
      %p506 = por %p504, %p505
      %s507 = ssub.s32 %s53, %s60
      %p508 = scmp.eq.s32.totalorder %s507, 0
      %s510 = sadd.s32 %s509, 1
      %s511 = scalar_select %p508, %s509, %s510
      %p514 = pneg %p508
      %p515 = scmp.eq.s32.totalorder %s45, 1
      %p516 = por %p514, %p515
      %p517 = scmp.ne.s32.totalorder %s509, %s512
      %p518 = scmp.eq.s32.totalorder %s45, 0
      %p519 = por %p517, %p518
      %p520 = scmp.ne.s32.totalorder %s509, %s512
      %p521 = scmp.eq.s32.totalorder %s50, 1
      %p522 = por %p520, %p521
      %p523 = scmp.ne.s32.totalorder %s512, %s513
      %p524 = scmp.eq.s32.totalorder %s50, 0
      %p525 = por %p523, %p524
      %p526 = scmp.ne.s32.totalorder %s512, %s513
      %p527 = scmp.eq.s32.totalorder %s51, 1
      %p528 = por %p526, %p527
      %p530 = scmp.ne.s32.totalorder %s513, %s529
      %p531 = scmp.eq.s32.totalorder %s51, 0
      %p532 = por %p530, %p531
      %s533 = ssub.s32 %s53, %s60
      %p534 = scmp.eq.s32.totalorder %s533, 0
      %s536 = sadd.s32 %s535, 1
      %s537 = scalar_select %p534, %s535, %s536
      %p540 = pneg %p534
      %p541 = scmp.eq.s32.totalorder %s45, 1
      %p542 = por %p540, %p541
      %p543 = scmp.ne.s32.totalorder %s535, %s538
      %p544 = scmp.eq.s32.totalorder %s45, 0
      %p545 = por %p543, %p544
      %p546 = scmp.ne.s32.totalorder %s535, %s538
      %p547 = scmp.eq.s32.totalorder %s50, 1
      %p548 = por %p546, %p547
      %p549 = scmp.ne.s32.totalorder %s538, %s539
      %p550 = scmp.eq.s32.totalorder %s50, 0
      %p551 = por %p549, %p550
      %p552 = scmp.ne.s32.totalorder %s538, %s539
      %p553 = scmp.eq.s32.totalorder %s51, 1
      %p554 = por %p552, %p553
      %p556 = scmp.ne.s32.totalorder %s539, %s555
      %p557 = scmp.eq.s32.totalorder %s51, 0
      %p558 = por %p556, %p557
      %s559 = ssub.s32 %s53, %s60
      %p560 = scmp.eq.s32.totalorder %s559, 0
      %s562 = sadd.s32 %s561, 1
      %s563 = scalar_select %p560, %s561, %s562
      %p566 = pneg %p560
      %p567 = scmp.eq.s32.totalorder %s45, 1
      %p568 = por %p566, %p567
      %p569 = scmp.ne.s32.totalorder %s561, %s564
      %p570 = scmp.eq.s32.totalorder %s45, 0
      %p571 = por %p569, %p570
      %p572 = scmp.ne.s32.totalorder %s561, %s564
      %p573 = scmp.eq.s32.totalorder %s50, 1
      %p574 = por %p572, %p573
      %p575 = scmp.ne.s32.totalorder %s564, %s565
      %p576 = scmp.eq.s32.totalorder %s50, 0
      %p577 = por %p575, %p576
      %p578 = scmp.ne.s32.totalorder %s564, %s565
      %p579 = scmp.eq.s32.totalorder %s51, 1
      %p580 = por %p578, %p579
      %p582 = scmp.ne.s32.totalorder %s565, %s581
      %p583 = scmp.eq.s32.totalorder %s51, 0
      %p584 = por %p582, %p583
      %s585 = ssub.s32 %s53, %s60
      %p586 = scmp.eq.s32.totalorder %s585, 0
      %s588 = sadd.s32 %s587, 1
      %s589 = scalar_select %p586, %s587, %s588
      %p592 = pneg %p586
      %p593 = scmp.eq.s32.totalorder %s45, 1
      %p594 = por %p592, %p593
      %p595 = scmp.ne.s32.totalorder %s587, %s590
      %p596 = scmp.eq.s32.totalorder %s45, 0
      %p597 = por %p595, %p596
      %p598 = scmp.ne.s32.totalorder %s587, %s590
      %p599 = scmp.eq.s32.totalorder %s50, 1
      %p600 = por %p598, %p599
      %p601 = scmp.ne.s32.totalorder %s590, %s591
      %p602 = scmp.eq.s32.totalorder %s50, 0
      %p603 = por %p601, %p602
      %p604 = scmp.ne.s32.totalorder %s590, %s591
      %p605 = scmp.eq.s32.totalorder %s51, 1
      %p606 = por %p604, %p605
      %p608 = scmp.ne.s32.totalorder %s591, %s607
      %p609 = scmp.eq.s32.totalorder %s51, 0
      %p610 = por %p608, %p609
      %s611 = ssub.s32 %s53, %s60
      %p612 = scmp.eq.s32.totalorder %s611, 0
      %s614 = sadd.s32 %s613, 1
      %s615 = scalar_select %p612, %s613, %s614
      %p618 = pneg %p612
      %p619 = scmp.eq.s32.totalorder %s45, 1
      %p620 = por %p618, %p619
      %p621 = scmp.ne.s32.totalorder %s613, %s616
      %p622 = scmp.eq.s32.totalorder %s45, 0
      %p623 = por %p621, %p622
      %p624 = scmp.ne.s32.totalorder %s613, %s616
      %p625 = scmp.eq.s32.totalorder %s50, 1
      %p626 = por %p624, %p625
      %p627 = scmp.ne.s32.totalorder %s616, %s617
      %p628 = scmp.eq.s32.totalorder %s50, 0
      %p629 = por %p627, %p628
      %p630 = scmp.ne.s32.totalorder %s616, %s617
      %p631 = scmp.eq.s32.totalorder %s51, 1
      %p632 = por %p630, %p631
      %p634 = scmp.ne.s32.totalorder %s617, %s633
      %p635 = scmp.eq.s32.totalorder %s51, 0
      %p636 = por %p634, %p635
      %s637 = ssub.s32 %s53, %s60
      %p638 = scmp.eq.s32.totalorder %s637, 0
      %s640 = sadd.s32 %s639, 1
      %s641 = scalar_select %p638, %s639, %s640
      %p644 = pneg %p638
      %p645 = scmp.eq.s32.totalorder %s45, 1
      %p646 = por %p644, %p645
      %p647 = scmp.ne.s32.totalorder %s639, %s642
      %p648 = scmp.eq.s32.totalorder %s45, 0
      %p649 = por %p647, %p648
      %p650 = scmp.ne.s32.totalorder %s639, %s642
      %p651 = scmp.eq.s32.totalorder %s50, 1
      %p652 = por %p650, %p651
      %p653 = scmp.ne.s32.totalorder %s642, %s643
      %p654 = scmp.eq.s32.totalorder %s50, 0
      %p655 = por %p653, %p654
      %p656 = scmp.ne.s32.totalorder %s642, %s643
      %p657 = scmp.eq.s32.totalorder %s51, 1
      %p658 = por %p656, %p657
      %p660 = scmp.ne.s32.totalorder %s643, %s659
      %p661 = scmp.eq.s32.totalorder %s51, 0
      %p662 = por %p660, %p661
      %s663 = ssub.s32 %s53, %s60
      %p664 = scmp.eq.s32.totalorder %s663, 0
      %s666 = sadd.s32 %s665, 1
      %s667 = scalar_select %p664, %s665, %s666
      %p670 = pneg %p664
      %p671 = scmp.eq.s32.totalorder %s45, 1
      %p672 = por %p670, %p671
      %p673 = scmp.ne.s32.totalorder %s665, %s668
      %p674 = scmp.eq.s32.totalorder %s45, 0
      %p675 = por %p673, %p674
      %p676 = scmp.ne.s32.totalorder %s665, %s668
      %p677 = scmp.eq.s32.totalorder %s50, 1
      %p678 = por %p676, %p677
      %p679 = scmp.ne.s32.totalorder %s668, %s669
      %p680 = scmp.eq.s32.totalorder %s50, 0
      %p681 = por %p679, %p680
      %p682 = scmp.ne.s32.totalorder %s668, %s669
      %p683 = scmp.eq.s32.totalorder %s51, 1
      %p684 = por %p682, %p683
      %p686 = scmp.ne.s32.totalorder %s669, %s685
      %p687 = scmp.eq.s32.totalorder %s51, 0
      %p688 = por %p686, %p687
      %s689 = ssub.s32 %s53, %s60
      %s690 = ssub.s32 %s52, %s64
      %s691 = sor.u32 %s689, %s690
      %p692 = scmp.eq.s32.totalorder %s691, 0
      %s694 = sadd.s32 %s693, 1
      %s695 = scalar_select %p692, %s693, %s694
      %p698 = pneg %p692
      %p699 = scmp.eq.s32.totalorder %s45, 1
      %p700 = por %p698, %p699
      %p701 = scmp.ne.s32.totalorder %s693, %s696
      %p702 = scmp.eq.s32.totalorder %s45, 0
      %p703 = por %p701, %p702
      %p704 = scmp.ne.s32.totalorder %s693, %s696
      %p705 = scmp.eq.s32.totalorder %s50, 1
      %p706 = por %p704, %p705
      %p707 = scmp.ne.s32.totalorder %s696, %s697
      %p708 = scmp.eq.s32.totalorder %s50, 0
      %p709 = por %p707, %p708
      %p710 = scmp.ne.s32.totalorder %s696, %s697
      %p711 = scmp.eq.s32.totalorder %s51, 1
      %p712 = por %p710, %p711
      %p714 = scmp.ne.s32.totalorder %s697, %s713
      %p715 = scmp.eq.s32.totalorder %s51, 0
      %p716 = por %p714, %p715
      %s717 = ssub.s32 %s52, %s64
      %p718 = scmp.eq.s32.totalorder %s717, 0
      %s720 = sadd.s32 %s719, 1
      %s721 = scalar_select %p718, %s719, %s720
      %p724 = pneg %p718
      %p725 = scmp.eq.s32.totalorder %s45, 1
      %p726 = por %p724, %p725
      %p727 = scmp.ne.s32.totalorder %s719, %s722
      %p728 = scmp.eq.s32.totalorder %s45, 0
      %p729 = por %p727, %p728
      %p730 = scmp.ne.s32.totalorder %s719, %s722
      %p731 = scmp.eq.s32.totalorder %s50, 1
      %p732 = por %p730, %p731
      %p733 = scmp.ne.s32.totalorder %s722, %s723
      %p734 = scmp.eq.s32.totalorder %s50, 0
      %p735 = por %p733, %p734
      %p736 = scmp.ne.s32.totalorder %s722, %s723
      %p737 = scmp.eq.s32.totalorder %s51, 1
      %p738 = por %p736, %p737
      %p740 = scmp.ne.s32.totalorder %s723, %s739
      %p741 = scmp.eq.s32.totalorder %s51, 0
      %p742 = por %p740, %p741
      %p743 = scmp.le.s32.totalorder 1, %s45
      %p744 = scmp.lt.s32.totalorder %s45, 3
      %p745 = pnand %p743, %p744
      %p746 = pneg %p745
      // Predicated region
      $region9: #{transformer_decoder_forward.1} parent=5 // pred_check
        _
      $region10: #{transformer_decoder_forward.1} parent=5 // pred_check_branch
        %748 = sbr.rel (%p745) target = $region12
      $region11: #{transformer_decoder_forward.1} parent=5 // pred_region
        %s749 = ssub.s32 %s45, 1
        // Predicated region
        $region13: #{transformer_decoder_forward.1} parent=11 // pred_check
          %p750 = pneg %p83
        $region14: #{transformer_decoder_forward.1} parent=11 // pred_check_branch
          %752 = sbr.rel (%p750) target = $region16
        $region15: #{transformer_decoder_forward.1} parent=11 // pred_region
          %s753 = smul.u32 2, %s54
          %p754 = scmp.lt.s32.totalorder %s753, 1
          %s755 = scalar_select %p754, %s753, 1
          %s756 = smul.addr %s755, 8
          %s757 = scalar_lea.vmem %s0, %s756
          %s758 = smul.u32 2, %s54
        $region16: #{transformer_decoder_forward.1} parent=11 // pred_fallthru
          _
        // Predicated region
        $region17: #{transformer_decoder_forward.1} parent=11 // pred_check
          %p759 = pneg %p109
        $region18: #{transformer_decoder_forward.1} parent=11 // pred_check_branch
          %761 = sbr.rel (%p759) target = $region20
        $region19: #{transformer_decoder_forward.1} parent=11 // pred_region
          %s762 = smul.u32 4, %s54
          %p763 = scmp.lt.s32.totalorder %s762, 3
          %s764 = scalar_select %p763, %s762, 3
          %s765 = smul.addr %s764, 8
          %s766 = scalar_lea.vmem %s1, %s765
          %s767 = smul.u32 4, %s54
        $region20: #{transformer_decoder_forward.1} parent=11 // pred_fallthru
          _
        // Predicated region
        $region21: #{transformer_decoder_forward.1} parent=11 // pred_check
          %p768 = pneg %p135
        $region22: #{transformer_decoder_forward.1} parent=11 // pred_check_branch
          %770 = sbr.rel (%p768) target = $region24
        $region23: #{transformer_decoder_forward.1} parent=11 // pred_region
          %s771 = smul.u32 4, %s54
          %p772 = scmp.lt.s32.totalorder %s771, 3
          %s773 = scalar_select %p772, %s771, 3
          %s774 = smul.addr %s773, 8
          %s775 = scalar_lea.vmem %s2, %s774
          %s776 = smul.u32 4, %s54
        $region24: #{transformer_decoder_forward.1} parent=11 // pred_fallthru
          _
        // Predicated region
        $region25: #{transformer_decoder_forward.1} parent=11 // pred_check
          %p777 = pneg %p161
        $region26: #{transformer_decoder_forward.1} parent=11 // pred_check_branch
          %779 = sbr.rel (%p777) target = $region28
        $region27: #{transformer_decoder_forward.1} parent=11 // pred_region
          %s780 = smul.u32 2, %s54
          %p781 = scmp.lt.s32.totalorder %s780, 1
          %s782 = scalar_select %p781, %s780, 1
          %s783 = smul.addr %s782, 8
          %s784 = scalar_lea.vmem %s3, %s783
          %s785 = smul.u32 2, %s54
        $region28: #{transformer_decoder_forward.1} parent=11 // pred_fallthru
          _
      $region12: #{transformer_decoder_forward.1} parent=5 // pred_fallthru
        _
      %p786 = scmp.lt.s32.totalorder %s45, 2
      // Predicated region
      $region29: #{transformer_decoder_forward.1} parent=5 // pred_check
        %p787 = pneg %p786
      $region30: #{transformer_decoder_forward.1} parent=5 // pred_check_branch
        %789 = sbr.rel (%p787) target = $region32
      $region31: #{transformer_decoder_forward.1} parent=5 // pred_region
        // Predicated region
        $region33: #{transformer_decoder_forward.1} parent=31 // pred_check
          %p790 = pneg %p181
        $region34: #{transformer_decoder_forward.1} parent=31 // pred_check_branch
          %792 = sbr.rel (%p790) target = $region36
        $region35: #{transformer_decoder_forward.1} parent=31 // pred_region
          %p793 = scmp.lt.s32.totalorder %s53, 1
          %s794 = scalar_select %p793, %s53, 1
          %s795 = smul.addr %s794, 4
          %s796 = smul.addr %s795, 4
          %s797 = scalar_lea.vmem %s4, %s796
        $region36: #{transformer_decoder_forward.1} parent=31 // pred_fallthru
          _
        // Predicated region
        $region37: #{transformer_decoder_forward.1} parent=31 // pred_check
          %p798 = pneg %p207
        $region38: #{transformer_decoder_forward.1} parent=31 // pred_check_branch
          %800 = sbr.rel (%p798) target = $region40
        $region39: #{transformer_decoder_forward.1} parent=31 // pred_region
          %p801 = scmp.lt.s32.totalorder %s53, 1
          %s802 = scalar_select %p801, %s53, 1
          %s803 = scalar_lea.vmem %s5, %s802
        $region40: #{transformer_decoder_forward.1} parent=31 // pred_fallthru
          _
        // Predicated region
        $region41: #{transformer_decoder_forward.1} parent=31 // pred_check
          %p804 = pneg %p233
        $region42: #{transformer_decoder_forward.1} parent=31 // pred_check_branch
          %806 = sbr.rel (%p804) target = $region44
        $region43: #{transformer_decoder_forward.1} parent=31 // pred_region
          %p807 = scmp.lt.s32.totalorder %s53, 1
          %s808 = scalar_select %p807, %s53, 1
          %s809 = smul.addr %s808, 4
          %s810 = smul.addr %s809, 4
          %s811 = scalar_lea.vmem %s6, %s810
        $region44: #{transformer_decoder_forward.1} parent=31 // pred_fallthru
          _
        // Predicated region
        $region45: #{transformer_decoder_forward.1} parent=31 // pred_check
          %p812 = pneg %p259
        $region46: #{transformer_decoder_forward.1} parent=31 // pred_check_branch
          %814 = sbr.rel (%p812) target = $region48
        $region47: #{transformer_decoder_forward.1} parent=31 // pred_region
          %p815 = scmp.lt.s32.totalorder %s53, 1
          %s816 = scalar_select %p815, %s53, 1
          %s817 = scalar_lea.vmem %s7, %s816
        $region48: #{transformer_decoder_forward.1} parent=31 // pred_fallthru
          _
        // Predicated region
        $region49: #{transformer_decoder_forward.1} parent=31 // pred_check
          %p818 = pneg %p285
        $region50: #{transformer_decoder_forward.1} parent=31 // pred_check_branch
          %820 = sbr.rel (%p818) target = $region52
        $region51: #{transformer_decoder_forward.1} parent=31 // pred_region
          %p821 = scmp.lt.s32.totalorder %s53, 1
          %s822 = scalar_select %p821, %s53, 1
          %s823 = smul.addr %s822, 4
          %s824 = smul.addr %s823, 4
          %s825 = scalar_lea.vmem %s8, %s824
        $region52: #{transformer_decoder_forward.1} parent=31 // pred_fallthru
          _
        // Predicated region
        $region53: #{transformer_decoder_forward.1} parent=31 // pred_check
          %p826 = pneg %p311
        $region54: #{transformer_decoder_forward.1} parent=31 // pred_check_branch
          %828 = sbr.rel (%p826) target = $region56
        $region55: #{transformer_decoder_forward.1} parent=31 // pred_region
          %p829 = scmp.lt.s32.totalorder %s53, 1
          %s830 = scalar_select %p829, %s53, 1
          %s831 = scalar_lea.vmem %s9, %s830
        $region56: #{transformer_decoder_forward.1} parent=31 // pred_fallthru
          _
        // Predicated region
        $region57: #{transformer_decoder_forward.1} parent=31 // pred_check
          %p832 = pneg %p337
        $region58: #{transformer_decoder_forward.1} parent=31 // pred_check_branch
          %834 = sbr.rel (%p832) target = $region60
        $region59: #{transformer_decoder_forward.1} parent=31 // pred_region
          %p835 = scmp.lt.s32.totalorder %s53, 1
          %s836 = scalar_select %p835, %s53, 1
          %s837 = smul.addr %s836, 4
          %s838 = smul.addr %s837, 4
          %s839 = scalar_lea.vmem %s10, %s838
        $region60: #{transformer_decoder_forward.1} parent=31 // pred_fallthru
          _
        // Predicated region
        $region61: #{transformer_decoder_forward.1} parent=31 // pred_check
          %p840 = pneg %p363
        $region62: #{transformer_decoder_forward.1} parent=31 // pred_check_branch
          %842 = sbr.rel (%p840) target = $region64
        $region63: #{transformer_decoder_forward.1} parent=31 // pred_region
          %s843 = sand.u32 %s353, 1
          %s844 = scalar_lea.sflag [#allocation5], %s843
          %s845 = sand.u32 %s353, 1
          %s846 = scalar_lea.vmem [#allocation4], %s845
          %s848 = ssub.s32 16, 16
          %849 = vsyncadd %s844, %s848
          %s850 = smul.addr %s53, 16
          %s851 = scalar_lea.hbm %s11, %s850
          %s853 = sshll.u32 %s846, 4
          %s854 = int_to_ptr.vmem [resolvable:$true] %s853
          %856 = dma.hbm_to_vmem [thread:$0]  %s851, 16, %s854, %s844
        $region64: #{transformer_decoder_forward.1} parent=31 // pred_fallthru
          _
        // Predicated region
        $region65: #{transformer_decoder_forward.1} parent=31 // pred_check
          %p857 = pneg %p389
        $region66: #{transformer_decoder_forward.1} parent=31 // pred_check_branch
          %859 = sbr.rel (%p857) target = $region68
        $region67: #{transformer_decoder_forward.1} parent=31 // pred_region
          %p860 = scmp.lt.s32.totalorder %s53, 1
          %s861 = scalar_select %p860, %s53, 1
          %s862 = smul.addr %s861, 4
          %s863 = smul.addr %s862, 4
          %s864 = scalar_lea.vmem %s12, %s863
        $region68: #{transformer_decoder_forward.1} parent=31 // pred_fallthru
          _
        // Predicated region
        $region69: #{transformer_decoder_forward.1} parent=31 // pred_check
          %p865 = pneg %p415
        $region70: #{transformer_decoder_forward.1} parent=31 // pred_check_branch
          %867 = sbr.rel (%p865) target = $region72
        $region71: #{transformer_decoder_forward.1} parent=31 // pred_region
          %s868 = sand.u32 %s45, 1
          %s869 = scalar_lea.sflag [#allocation8], %s868
          %s870 = sand.u32 %s405, 1
          %s871 = scalar_lea.vmem [#allocation7], %s870
          %s873 = ssub.s32 16, 16
          %874 = vsyncadd %s869, %s873
          %s875 = smul.addr %s53, 16
          %s876 = scalar_lea.hbm %s13, %s875
          %s878 = sshll.u32 %s871, 4
          %s879 = int_to_ptr.vmem [resolvable:$true] %s878
          %881 = dma.hbm_to_vmem [thread:$0]  %s876, 16, %s879, %s869
        $region72: #{transformer_decoder_forward.1} parent=31 // pred_fallthru
          _
        // Predicated region
        $region73: #{transformer_decoder_forward.1} parent=31 // pred_check
          %p882 = pneg %p441
        $region74: #{transformer_decoder_forward.1} parent=31 // pred_check_branch
          %884 = sbr.rel (%p882) target = $region76
        $region75: #{transformer_decoder_forward.1} parent=31 // pred_region
          %p885 = scmp.lt.s32.totalorder %s53, 1
          %s886 = scalar_select %p885, %s53, 1
          %s887 = smul.addr %s886, 4
          %s888 = smul.addr %s887, 4
          %s889 = scalar_lea.vmem %s14, %s888
        $region76: #{transformer_decoder_forward.1} parent=31 // pred_fallthru
          _
        // Predicated region
        $region77: #{transformer_decoder_forward.1} parent=31 // pred_check
          %p890 = pneg %p467
        $region78: #{transformer_decoder_forward.1} parent=31 // pred_check_branch
          %892 = sbr.rel (%p890) target = $region80
        $region79: #{transformer_decoder_forward.1} parent=31 // pred_region
          %s893 = sand.u32 %s45, 1
          %s894 = scalar_lea.sflag [#allocation8], %s893
          %s895 = sand.u32 %s457, 1
          %s896 = scalar_lea.vmem [#allocation9], %s895
          %s898 = ssub.s32 16, 16
          %899 = vsyncadd %s894, %s898
          %s900 = smul.addr %s53, 16
          %s901 = scalar_lea.hbm %s15, %s900
          %s903 = sshll.u32 %s896, 4
          %s904 = int_to_ptr.vmem [resolvable:$true] %s903
          %906 = dma.hbm_to_vmem [thread:$0]  %s901, 16, %s904, %s894
        $region80: #{transformer_decoder_forward.1} parent=31 // pred_fallthru
          _
        // Predicated region
        $region81: #{transformer_decoder_forward.1} parent=31 // pred_check
          %p907 = pneg %p493
        $region82: #{transformer_decoder_forward.1} parent=31 // pred_check_branch
          %909 = sbr.rel (%p907) target = $region84
        $region83: #{transformer_decoder_forward.1} parent=31 // pred_region
          %p910 = scmp.lt.s32.totalorder %s53, 1
          %s911 = scalar_select %p910, %s53, 1
          %s912 = smul.addr %s911, 4
          %s913 = smul.addr %s912, 4
          %s914 = scalar_lea.vmem %s16, %s913
        $region84: #{transformer_decoder_forward.1} parent=31 // pred_fallthru
          _
        // Predicated region
        $region85: #{transformer_decoder_forward.1} parent=31 // pred_check
          %p915 = pneg %p519
        $region86: #{transformer_decoder_forward.1} parent=31 // pred_check_branch
          %917 = sbr.rel (%p915) target = $region88
        $region87: #{transformer_decoder_forward.1} parent=31 // pred_region
          %s918 = sand.u32 %s45, 1
          %s919 = scalar_lea.sflag [#allocation11], %s918
          %s920 = sand.u32 %s509, 1
          %s921 = scalar_lea.vmem [#allocation10], %s920
          %s923 = ssub.s32 16, 16
          %924 = vsyncadd %s919, %s923
          %s925 = smul.addr %s53, 16
          %s926 = scalar_lea.hbm %s17, %s925
          %s928 = sshll.u32 %s921, 4
          %s929 = int_to_ptr.vmem [resolvable:$true] %s928
          %931 = dma.hbm_to_vmem [thread:$0]  %s926, 16, %s929, %s919
        $region88: #{transformer_decoder_forward.1} parent=31 // pred_fallthru
          _
        // Predicated region
        $region89: #{transformer_decoder_forward.1} parent=31 // pred_check
          %p932 = pneg %p545
        $region90: #{transformer_decoder_forward.1} parent=31 // pred_check_branch
          %934 = sbr.rel (%p932) target = $region92
        $region91: #{transformer_decoder_forward.1} parent=31 // pred_region
          %p935 = scmp.lt.s32.totalorder %s53, 1
          %s936 = scalar_select %p935, %s53, 1
          %s937 = smul.addr %s936, 4
          %s938 = smul.addr %s937, 4
          %s939 = scalar_lea.vmem %s18, %s938
        $region92: #{transformer_decoder_forward.1} parent=31 // pred_fallthru
          _
        // Predicated region
        $region93: #{transformer_decoder_forward.1} parent=31 // pred_check
          %p940 = pneg %p571
        $region94: #{transformer_decoder_forward.1} parent=31 // pred_check_branch
          %942 = sbr.rel (%p940) target = $region96
        $region95: #{transformer_decoder_forward.1} parent=31 // pred_region
          %s943 = sand.u32 %s45, 1
          %s944 = scalar_lea.sflag [#allocation11], %s943
          %s945 = sand.u32 %s561, 1
          %s946 = scalar_lea.vmem [#allocation12], %s945
          %s948 = ssub.s32 16, 16
          %949 = vsyncadd %s944, %s948
          %s950 = smul.addr %s53, 16
          %s951 = scalar_lea.hbm %s19, %s950
          %s953 = sshll.u32 %s946, 4
          %s954 = int_to_ptr.vmem [resolvable:$true] %s953
          %956 = dma.hbm_to_vmem [thread:$0]  %s951, 16, %s954, %s944
        $region96: #{transformer_decoder_forward.1} parent=31 // pred_fallthru
          _
        // Predicated region
        $region97: #{transformer_decoder_forward.1} parent=31 // pred_check
          %p957 = pneg %p597
        $region98: #{transformer_decoder_forward.1} parent=31 // pred_check_branch
          %959 = sbr.rel (%p957) target = $region100
        $region99: #{transformer_decoder_forward.1} parent=31 // pred_region
          %p960 = scmp.lt.s32.totalorder %s53, 1
          %s961 = scalar_select %p960, %s53, 1
          %s962 = smul.addr %s961, 8
          %s963 = smul.addr %s962, 4
          %s964 = scalar_lea.vmem %s20, %s963
        $region100: #{transformer_decoder_forward.1} parent=31 // pred_fallthru
          _
        // Predicated region
        $region101: #{transformer_decoder_forward.1} parent=31 // pred_check
          %p965 = pneg %p623
        $region102: #{transformer_decoder_forward.1} parent=31 // pred_check_branch
          %967 = sbr.rel (%p965) target = $region104
        $region103: #{transformer_decoder_forward.1} parent=31 // pred_region
          %s968 = sand.u32 %s613, 1
          %s969 = scalar_lea.sflag [#allocation14], %s968
          %s970 = sand.u32 %s613, 1
          %s971 = scalar_lea.vmem [#allocation13], %s970
          %s973 = ssub.s32 16, 16
          %974 = vsyncadd %s969, %s973
          %s975 = smul.addr %s53, 16
          %s976 = scalar_lea.hbm %s21, %s975
          %s978 = sshll.u32 %s971, 4
          %s979 = int_to_ptr.vmem [resolvable:$true] %s978
          %981 = dma.hbm_to_vmem [thread:$0]  %s976, 16, %s979, %s969
        $region104: #{transformer_decoder_forward.1} parent=31 // pred_fallthru
          _
        // Predicated region
        $region105: #{transformer_decoder_forward.1} parent=31 // pred_check
          %p982 = pneg %p649
        $region106: #{transformer_decoder_forward.1} parent=31 // pred_check_branch
          %984 = sbr.rel (%p982) target = $region108
        $region107: #{transformer_decoder_forward.1} parent=31 // pred_region
          %p985 = scmp.lt.s32.totalorder %s53, 1
          %s986 = scalar_select %p985, %s53, 1
          %s987 = smul.addr %s986, 4
          %s988 = scalar_lea.vmem %s22, %s987
        $region108: #{transformer_decoder_forward.1} parent=31 // pred_fallthru
          _
        // Predicated region
        $region109: #{transformer_decoder_forward.1} parent=31 // pred_check
          %p989 = pneg %p675
        $region110: #{transformer_decoder_forward.1} parent=31 // pred_check_branch
          %991 = sbr.rel (%p989) target = $region112
        $region111: #{transformer_decoder_forward.1} parent=31 // pred_region
          %p992 = scmp.lt.s32.totalorder %s53, 1
          %s993 = scalar_select %p992, %s53, 1
          %s994 = smul.addr %s993, 4
          %s995 = scalar_lea.vmem %s23, %s994
        $region112: #{transformer_decoder_forward.1} parent=31 // pred_fallthru
          _
      $region32: #{transformer_decoder_forward.1} parent=5 // pred_fallthru
        _
      %p996 = scmp.le.s32.totalorder 1, %s45
      %p997 = scmp.lt.s32.totalorder %s45, 3
      %p998 = pnand %p996, %p997
      %p999 = pneg %p998
      // Predicated region
      $region113: #{transformer_decoder_forward.1} parent=5 // pred_check
        _
      $region114: #{transformer_decoder_forward.1} parent=5 // pred_check_branch
        %1001 = sbr.rel (%p998) target = $region116
      $region115: #{transformer_decoder_forward.1} parent=5 // pred_region
        %s1002 = ssub.s32 %s45, 1
        %s1003 = sand.u32 %s356, 1
        %s1004 = scalar_lea.sflag [#allocation5], %s1003
        %s1005 = sand.u32 %s356, 1
        %s1006 = scalar_lea.vmem [#allocation4], %s1005
        // Predicated region
        $region117: #{transformer_decoder_forward.1} parent=115 // pred_check
          %p1007 = pneg %p369
        $region118: #{transformer_decoder_forward.1} parent=115 // pred_check_branch
          %1009 = sbr.rel (%p1007) target = $region120
        $region119: #{transformer_decoder_forward.1} parent=115 // pred_region
          %1010 = dma.done %s1004, 16
        $region120: #{transformer_decoder_forward.1} parent=115 // pred_fallthru
          _
        %s1011 = sand.u32 %s50, 1
        %s1012 = scalar_lea.sflag [#allocation8], %s1011
        %s1013 = sand.u32 %s408, 1
        %s1014 = scalar_lea.vmem [#allocation7], %s1013
        // Predicated region
        $region121: #{transformer_decoder_forward.1} parent=115 // pred_check
          %p1015 = pneg %p421
        $region122: #{transformer_decoder_forward.1} parent=115 // pred_check_branch
          %1017 = sbr.rel (%p1015) target = $region124
        $region123: #{transformer_decoder_forward.1} parent=115 // pred_region
          %1018 = dma.done %s1012, 16
        $region124: #{transformer_decoder_forward.1} parent=115 // pred_fallthru
          _
        %s1019 = sand.u32 %s50, 1
        %s1020 = scalar_lea.sflag [#allocation8], %s1019
        %s1021 = sand.u32 %s460, 1
        %s1022 = scalar_lea.vmem [#allocation9], %s1021
        // Predicated region
        $region125: #{transformer_decoder_forward.1} parent=115 // pred_check
          %p1023 = pneg %p473
        $region126: #{transformer_decoder_forward.1} parent=115 // pred_check_branch
          %1025 = sbr.rel (%p1023) target = $region128
        $region127: #{transformer_decoder_forward.1} parent=115 // pred_region
          %1026 = dma.done %s1020, 16
        $region128: #{transformer_decoder_forward.1} parent=115 // pred_fallthru
          _
        %s1027 = sand.u32 %s50, 1
        %s1028 = scalar_lea.sflag [#allocation11], %s1027
        %s1029 = sand.u32 %s512, 1
        %s1030 = scalar_lea.vmem [#allocation10], %s1029
        // Predicated region
        $region129: #{transformer_decoder_forward.1} parent=115 // pred_check
          %p1031 = pneg %p525
        $region130: #{transformer_decoder_forward.1} parent=115 // pred_check_branch
          %1033 = sbr.rel (%p1031) target = $region132
        $region131: #{transformer_decoder_forward.1} parent=115 // pred_region
          %1034 = dma.done %s1028, 16
        $region132: #{transformer_decoder_forward.1} parent=115 // pred_fallthru
          _
        %s1035 = sand.u32 %s50, 1
        %s1036 = scalar_lea.sflag [#allocation11], %s1035
        %s1037 = sand.u32 %s564, 1
        %s1038 = scalar_lea.vmem [#allocation12], %s1037
        // Predicated region
        $region133: #{transformer_decoder_forward.1} parent=115 // pred_check
          %p1039 = pneg %p577
        $region134: #{transformer_decoder_forward.1} parent=115 // pred_check_branch
          %1041 = sbr.rel (%p1039) target = $region136
        $region135: #{transformer_decoder_forward.1} parent=115 // pred_region
          %1042 = dma.done %s1036, 16
        $region136: #{transformer_decoder_forward.1} parent=115 // pred_fallthru
          _
        %s1043 = sand.u32 %s616, 1
        %s1044 = scalar_lea.sflag [#allocation14], %s1043
        %s1045 = sand.u32 %s616, 1
        %s1046 = scalar_lea.vmem [#allocation13], %s1045
        // Predicated region
        $region137: #{transformer_decoder_forward.1} parent=115 // pred_check
          %p1047 = pneg %p629
        $region138: #{transformer_decoder_forward.1} parent=115 // pred_check_branch
          %1049 = sbr.rel (%p1047) target = $region140
        $region139: #{transformer_decoder_forward.1} parent=115 // pred_region
          %1050 = dma.done %s1044, 16
        $region140: #{transformer_decoder_forward.1} parent=115 // pred_fallthru
          _
        %s1051 = smul.u32 2, %s54
        %p1052 = scmp.lt.s32.totalorder %s1051, 1
        %s1053 = scalar_select %p1052, %s1051, 1
        %s1054 = smul.addr %s1053, 8
        %s1055 = scalar_lea.vmem %s0, %s1054
        %p1056 = pneg %p83
        %p1057 = pneg %p80
        %s1058 = smul.u32 4, %s54
        %p1059 = scmp.lt.s32.totalorder %s1058, 3
        %s1060 = scalar_select %p1059, %s1058, 3
        %s1061 = smul.addr %s1060, 8
        %s1062 = scalar_lea.vmem %s1, %s1061
        %p1063 = pneg %p109
        %p1064 = pneg %p106
        %s1065 = smul.u32 4, %s54
        %p1066 = scmp.lt.s32.totalorder %s1065, 3
        %s1067 = scalar_select %p1066, %s1065, 3
        %s1068 = smul.addr %s1067, 8
        %s1069 = scalar_lea.vmem %s2, %s1068
        %p1070 = pneg %p135
        %p1071 = pneg %p132
        %s1072 = smul.u32 2, %s54
        %p1073 = scmp.lt.s32.totalorder %s1072, 1
        %s1074 = scalar_select %p1073, %s1072, 1
        %s1075 = smul.addr %s1074, 8
        %s1076 = scalar_lea.vmem %s3, %s1075
        %p1077 = pneg %p161
        %p1078 = pneg %p158
        %p1079 = scmp.lt.s32.totalorder %s55, 1
        %s1080 = scalar_select %p1079, %s55, 1
        %s1081 = smul.addr %s1080, 4
        %s1082 = smul.addr %s1081, 4
        %s1083 = scalar_lea.vmem %s4, %s1082
        %p1084 = pneg %p187
        %p1085 = pneg %p184
        %p1086 = scmp.lt.s32.totalorder %s55, 1
        %s1087 = scalar_select %p1086, %s55, 1
        %s1088 = scalar_lea.vmem %s5, %s1087
        %p1089 = pneg %p213
        %p1090 = pneg %p210
        %p1091 = scmp.lt.s32.totalorder %s55, 1
        %s1092 = scalar_select %p1091, %s55, 1
        %s1093 = smul.addr %s1092, 4
        %s1094 = smul.addr %s1093, 4
        %s1095 = scalar_lea.vmem %s6, %s1094
        %p1096 = pneg %p239
        %p1097 = pneg %p236
        %p1098 = scmp.lt.s32.totalorder %s55, 1
        %s1099 = scalar_select %p1098, %s55, 1
        %s1100 = scalar_lea.vmem %s7, %s1099
        %p1101 = pneg %p265
        %p1102 = pneg %p262
        %p1103 = scmp.lt.s32.totalorder %s55, 1
        %s1104 = scalar_select %p1103, %s55, 1
        %s1105 = smul.addr %s1104, 4
        %s1106 = smul.addr %s1105, 4
        %s1107 = scalar_lea.vmem %s8, %s1106
        %p1108 = pneg %p291
        %p1109 = pneg %p288
        %p1110 = scmp.lt.s32.totalorder %s55, 1
        %s1111 = scalar_select %p1110, %s55, 1
        %s1112 = scalar_lea.vmem %s9, %s1111
        %p1113 = pneg %p317
        %p1114 = pneg %p314
        %p1115 = scmp.lt.s32.totalorder %s55, 1
        %s1116 = scalar_select %p1115, %s55, 1
        %s1117 = smul.addr %s1116, 4
        %s1118 = smul.addr %s1117, 4
        %s1119 = scalar_lea.vmem %s10, %s1118
        %p1120 = pneg %p343
        %p1121 = pneg %p340
        %s1122 = sand.u32 %s356, 1
        %s1123 = scalar_lea.sflag [#allocation5], %s1122
        %s1124 = sand.u32 %s356, 1
        %s1125 = scalar_lea.vmem [#allocation4], %s1124
        %p1126 = pneg %p369
        %p1127 = pneg %p366
        %p1128 = scmp.lt.s32.totalorder %s55, 1
        %s1129 = scalar_select %p1128, %s55, 1
        %s1130 = smul.addr %s1129, 4
        %s1131 = smul.addr %s1130, 4
        %s1132 = scalar_lea.vmem %s12, %s1131
        %p1133 = pneg %p395
        %p1134 = pneg %p392
        %s1135 = sand.u32 %s50, 1
        %s1136 = scalar_lea.sflag [#allocation8], %s1135
        %s1137 = sand.u32 %s408, 1
        %s1138 = scalar_lea.vmem [#allocation7], %s1137
        %p1139 = pneg %p421
        %p1140 = pneg %p418
        %p1141 = scmp.lt.s32.totalorder %s55, 1
        %s1142 = scalar_select %p1141, %s55, 1
        %s1143 = smul.addr %s1142, 4
        %s1144 = smul.addr %s1143, 4
        %s1145 = scalar_lea.vmem %s14, %s1144
        %p1146 = pneg %p447
        %p1147 = pneg %p444
        %s1148 = sand.u32 %s50, 1
        %s1149 = scalar_lea.sflag [#allocation8], %s1148
        %s1150 = sand.u32 %s460, 1
        %s1151 = scalar_lea.vmem [#allocation9], %s1150
        %p1152 = pneg %p473
        %p1153 = pneg %p470
        %p1154 = scmp.lt.s32.totalorder %s55, 1
        %s1155 = scalar_select %p1154, %s55, 1
        %s1156 = smul.addr %s1155, 4
        %s1157 = smul.addr %s1156, 4
        %s1158 = scalar_lea.vmem %s16, %s1157
        %p1159 = pneg %p499
        %p1160 = pneg %p496
        %s1161 = sand.u32 %s50, 1
        %s1162 = scalar_lea.sflag [#allocation11], %s1161
        %s1163 = sand.u32 %s512, 1
        %s1164 = scalar_lea.vmem [#allocation10], %s1163
        %p1165 = pneg %p525
        %p1166 = pneg %p522
        %p1167 = scmp.lt.s32.totalorder %s55, 1
        %s1168 = scalar_select %p1167, %s55, 1
        %s1169 = smul.addr %s1168, 4
        %s1170 = smul.addr %s1169, 4
        %s1171 = scalar_lea.vmem %s18, %s1170
        %p1172 = pneg %p551
        %p1173 = pneg %p548
        %s1174 = sand.u32 %s50, 1
        %s1175 = scalar_lea.sflag [#allocation11], %s1174
        %s1176 = sand.u32 %s564, 1
        %s1177 = scalar_lea.vmem [#allocation12], %s1176
        %p1178 = pneg %p577
        %p1179 = pneg %p574
        %p1180 = scmp.lt.s32.totalorder %s55, 1
        %s1181 = scalar_select %p1180, %s55, 1
        %s1182 = smul.addr %s1181, 8
        %s1183 = smul.addr %s1182, 4
        %s1184 = scalar_lea.vmem %s20, %s1183
        %p1185 = pneg %p603
        %p1186 = pneg %p600
        %s1187 = sand.u32 %s616, 1
        %s1188 = scalar_lea.sflag [#allocation14], %s1187
        %s1189 = sand.u32 %s616, 1
        %s1190 = scalar_lea.vmem [#allocation13], %s1189
        %p1191 = pneg %p629
        %p1192 = pneg %p626
        %p1193 = scmp.lt.s32.totalorder %s55, 1
        %s1194 = scalar_select %p1193, %s55, 1
        %s1195 = smul.addr %s1194, 4
        %s1196 = scalar_lea.vmem %s22, %s1195
        %p1197 = pneg %p655
        %p1198 = pneg %p652
        %p1199 = scmp.lt.s32.totalorder %s55, 1
        %s1200 = scalar_select %p1199, %s55, 1
        %s1201 = smul.addr %s1200, 4
        %s1202 = scalar_lea.vmem %s23, %s1201
        %p1203 = pneg %p681
        %p1204 = pneg %p678
        %p1205 = pneg %p709
        %p1206 = pneg %p706
        %s1207 = smul.u32 2, %s54
        %p1208 = scmp.lt.s32.totalorder %s55, 1
        %s1209 = scalar_select %p1208, %s55, 1
        %p1210 = scmp.lt.s32.totalorder %s1207, 1
        %s1211 = scalar_select %p1210, %s1207, 1
        %s1212 = smul.addr %s1209, 2
        %s1213 = sadd.s32 %s1211, %s1212
        %s1214 = smul.addr %s1213, 8
        %s1215 = scalar_lea.vmem %s24, %s1214
        %p1216 = pneg %p735
        %p1217 = pneg %p732
        %s1218 = smul.u32 2, %s54
        %p1219 = scmp.lt.s32.totalorder %s1218, 1
        %s1220 = scalar_select %p1219, %s1218, 1
        %s1221 = smul.addr %s1220, 8
        %s1222 = scalar_lea.vmem %s0, %s1221
        %s1223 = smul.u32 2, %s54
        %s1224 = smul.u32 4, %s54
        %p1225 = scmp.lt.s32.totalorder %s1224, 3
        %s1226 = scalar_select %p1225, %s1224, 3
        %s1227 = smul.addr %s1226, 8
        %s1228 = scalar_lea.vmem %s1, %s1227
        %s1229 = smul.u32 4, %s54
        %s1230 = smul.u32 4, %s54
        %p1231 = scmp.lt.s32.totalorder %s1230, 3
        %s1232 = scalar_select %p1231, %s1230, 3
        %s1233 = smul.addr %s1232, 8
        %s1234 = scalar_lea.vmem %s2, %s1233
        %s1235 = smul.u32 4, %s54
        %s1236 = smul.u32 2, %s54
        %p1237 = scmp.lt.s32.totalorder %s1236, 1
        %s1238 = scalar_select %p1237, %s1236, 1
        %s1239 = smul.addr %s1238, 8
        %s1240 = scalar_lea.vmem %s3, %s1239
        %s1241 = smul.u32 2, %s54
        %p1242 = scmp.lt.s32.totalorder %s55, 1
        %s1243 = scalar_select %p1242, %s55, 1
        %s1244 = smul.addr %s1243, 4
        %s1245 = smul.addr %s1244, 4
        %s1246 = scalar_lea.vmem %s4, %s1245
        %p1247 = scmp.lt.s32.totalorder %s55, 1
        %s1248 = scalar_select %p1247, %s55, 1
        %s1249 = scalar_lea.vmem %s5, %s1248
        %p1250 = scmp.lt.s32.totalorder %s55, 1
        %s1251 = scalar_select %p1250, %s55, 1
        %s1252 = smul.addr %s1251, 4
        %s1253 = smul.addr %s1252, 4
        %s1254 = scalar_lea.vmem %s6, %s1253
        %p1255 = scmp.lt.s32.totalorder %s55, 1
        %s1256 = scalar_select %p1255, %s55, 1
        %s1257 = scalar_lea.vmem %s7, %s1256
        %p1258 = scmp.lt.s32.totalorder %s55, 1
        %s1259 = scalar_select %p1258, %s55, 1
        %s1260 = smul.addr %s1259, 4
        %s1261 = smul.addr %s1260, 4
        %s1262 = scalar_lea.vmem %s8, %s1261
        %p1263 = scmp.lt.s32.totalorder %s55, 1
        %s1264 = scalar_select %p1263, %s55, 1
        %s1265 = scalar_lea.vmem %s9, %s1264
        %p1266 = scmp.lt.s32.totalorder %s55, 1
        %s1267 = scalar_select %p1266, %s55, 1
        %s1268 = smul.addr %s1267, 4
        %s1269 = smul.addr %s1268, 4
        %s1270 = scalar_lea.vmem %s10, %s1269
        %p1271 = scmp.lt.s32.totalorder %s55, 1
        %s1272 = scalar_select %p1271, %s55, 1
        %s1273 = smul.addr %s1272, 4
        %s1274 = smul.addr %s1273, 4
        %s1275 = scalar_lea.vmem %s12, %s1274
        %p1276 = scmp.lt.s32.totalorder %s55, 1
        %s1277 = scalar_select %p1276, %s55, 1
        %s1278 = smul.addr %s1277, 4
        %s1279 = smul.addr %s1278, 4
        %s1280 = scalar_lea.vmem %s14, %s1279
        %p1281 = scmp.lt.s32.totalorder %s55, 1
        %s1282 = scalar_select %p1281, %s55, 1
        %s1283 = smul.addr %s1282, 4
        %s1284 = smul.addr %s1283, 4
        %s1285 = scalar_lea.vmem %s16, %s1284
        %p1286 = scmp.lt.s32.totalorder %s55, 1
        %s1287 = scalar_select %p1286, %s55, 1
        %s1288 = smul.addr %s1287, 4
        %s1289 = smul.addr %s1288, 4
        %s1290 = scalar_lea.vmem %s18, %s1289
        %p1291 = scmp.lt.s32.totalorder %s55, 1
        %s1292 = scalar_select %p1291, %s55, 1
        %s1293 = smul.addr %s1292, 8
        %s1294 = smul.addr %s1293, 4
        %s1295 = scalar_lea.vmem %s20, %s1294
        %p1296 = scmp.lt.s32.totalorder %s55, 1
        %s1297 = scalar_select %p1296, %s55, 1
        %s1298 = smul.addr %s1297, 4
        %s1299 = scalar_lea.vmem %s22, %s1298
        %p1300 = scmp.lt.s32.totalorder %s55, 1
        %s1301 = scalar_select %p1300, %s55, 1
        %s1302 = smul.addr %s1301, 4
        %s1303 = scalar_lea.vmem %s23, %s1302
        %s1304 = smul.u32 2, %s54
        %p1305 = scmp.lt.s32.totalorder %s55, 1
        %s1306 = scalar_select %p1305, %s55, 1
        %p1307 = scmp.lt.s32.totalorder %s1304, 1
        %s1308 = scalar_select %p1307, %s1304, 1
        %s1309 = smul.addr %s1306, 2
        %s1310 = sadd.s32 %s1308, %s1309
        %s1311 = smul.addr %s1310, 8
        %s1312 = scalar_lea.vmem %s24, %s1311
        %s1313 = smul.u32 2, %s54
        %s1314 = smul.u32 2, %s54
        %p1316 = scmp.eq.s32.totalorder %s55, 0
        // Predicated region
        $region141: #{transformer_decoder_forward.1} parent=115 // pred_check
          %p1317 = pneg %p1316
        $region142: #{transformer_decoder_forward.1} parent=115 // pred_check_branch
          %1319 = sbr.rel (%p1317) target = $region144
        $region143: #{transformer_decoder_forward.1} parent=115 // pred_region
          %v1320 = vld [vmem:[%s1222] sm:$0xff]
          %v1321 = vld [vmem:[%s1222 + $0x8] sm:$0xff]
          %vm1322 = vcmask 261120
          %1323 = vst.msk [vmem:[#allocation2] sm:$0xff] %vm1322, %v1320
          %1324 = vst.msk [vmem:[#allocation2 + $0x8] sm:$0xff] %vm1322, %v1321
        $region144: #{transformer_decoder_forward.1} parent=115 // pred_fallthru
          _
        %v1325 = vld [vmem:[#allocation2] sm:$0xff]
        %v1326 = vld [vmem:[#allocation2 + $0x8] sm:$0xff]
        %v1327 = vld [vmem:[%s1228] sm:$0xff]
        %v1328 = vld [vmem:[%s1228 + $0x8] sm:$0xff]
        %v1329 = vld [vmem:[%s1228 + $0x10] sm:$0xff]
        %v1330 = vld [vmem:[%s1228 + $0x18] sm:$0xff]
        %v1331 = vld [vmem:[%s1234] sm:$0xff]
        %v1332 = vld [vmem:[%s1234 + $0x8] sm:$0xff]
        %v1333 = vld [vmem:[%s1234 + $0x10] sm:$0xff]
        %v1334 = vld [vmem:[%s1234 + $0x18] sm:$0xff]
        %v1335 = vadd.f32 %v1327, %v1331
        %v1336 = vadd.f32 %v1328, %v1332
        %v1337 = vadd.f32 %v1329, %v1333
        %v1338 = vadd.f32 %v1330, %v1334
        %v1339 = vld [vmem:[%s1240] sm:$0xff]
        %v1340 = vld [vmem:[%s1240 + $0x8] sm:$0xff]
        %v1341 = vadd.f32 %v1325, %v1339
        %v1342 = vadd.f32 %v1326, %v1340
        %v1343 = vld [vmem:[%s1246] sm:$0xf]
        %v1344 = vld [vmem:[%s1246 + $0x4] sm:$0xf]
        %v1345 = vld [vmem:[%s1246 + $0x8] sm:$0xf]
        %v1346 = vld [vmem:[%s1246 + $0xc] sm:$0xf]
        %v1347 = vpack.c.bf16 %v1342, %v1341
        %v1348 = vld [vmem:[%s1249] sm:$0x1]
        %v1350 = vlaneseq
        %v1351 = vshrl.u32 %v1350, 7
        %v1352 = vsub.s32 0, %v1351
        %v1353 = vrot.slane %v1348, %v1352
        %v1359 = vunpack.c.l.b16 %v1343
        %v1360 = vunpack.c.l.b16 %v1344
        %v1361 = vunpack.c.l.b16 %v1345
        %v1362 = vunpack.c.l.b16 %v1346
        %v1363 = vpack.c.b16 %v1360, %v1359
        %v1364 = vpack.c.b16 %v1362, %v1361
        %vm1367 = vcmask 261120
        %v1369 = vsel %vm1367, %v1347, 0
        %1371 = vmatprep.subr.bf16.mxu0 0
        %1372 = vmatpush1.bf16.msra.mxu0 %v1363
        %1373 = vmatprep.subr.bf16.mxu0 0
        %1374 = vmatpush1.bf16.msra.mxu0 %v1364
        %1375 = vmatprep.subr.bf16.mxu0 0
        %1376 = vmatpush1.bf16.msra.mxu0 0
        %1377 = vmatprep.subr.bf16.mxu0 0
        %1378 = vmatpush1.bf16.msra.mxu0 0
        %1379 = vmatprep.subr.bf16.mxu0 0
        %1380 = vmatpush1.bf16.msra.mxu0 0
        %1381 = vmatprep.subr.bf16.mxu0 0
        %1382 = vmatpush1.bf16.msra.mxu0 0
        %1383 = vmatprep.subr.bf16.mxu0 0
        %1384 = vmatpush1.bf16.msra.mxu0 0
        %1385 = vmatprep.subr.bf16.mxu0 0
        %1386 = vmatpush1.bf16.msra.mxu0 0
        %1387 = vmatprep.subr.bf16.mxu0 0
        %1388 = vmatpush1.bf16.msra.mxu0 0
        %1389 = vmatprep.subr.bf16.mxu0 0
        %1390 = vmatpush1.bf16.msra.mxu0 0
        %1391 = vmatprep.subr.bf16.mxu0 0
        %1392 = vmatpush1.bf16.msra.mxu0 0
        %1393 = vmatprep.subr.bf16.mxu0 0
        %1394 = vmatpush1.bf16.msra.mxu0 0
        %1395 = vmatprep.subr.bf16.mxu0 0
        %1396 = vmatpush1.bf16.msra.mxu0 0
        %1397 = vmatprep.subr.bf16.mxu0 0
        %1398 = vmatpush1.bf16.msra.mxu0 0
        %1399 = vmatprep.subr.bf16.mxu0 0
        %1400 = vmatpush1.bf16.msra.mxu0 0
        %1401 = vmatprep.subr.bf16.mxu0 0
        %1402 = vmatpush1.bf16.msra.mxu0 0
        %1403 = vmatprep.mubr.bf16.mxu0 0
        %1404 = vmatmul.mubr.bf16.gmra.mrb[0].mxu0 %v1369
        %v1405 = vpop.f32.mrb[0].mxu0
        %v1406 = vadd.f32 %v1353, %v1405
        %v1407 = vpop.f32.mrb[0].mxu0
        %v1408 = vpop.f32.mrb[0].mxu0
        %v1409 = vadd.f32 %v1353, %v1408
        %v1410 = vpop.f32.mrb[0].mxu0
        %1411 = vdwg.mxu0
        %v1412 = vld [vmem:[%s1254] sm:$0xf]
        %v1413 = vld [vmem:[%s1254 + $0x4] sm:$0xf]
        %v1414 = vld [vmem:[%s1254 + $0x8] sm:$0xf]
        %v1415 = vld [vmem:[%s1254 + $0xc] sm:$0xf]
        %v1416 = vpack.c.bf16 %v1326, %v1325
        %v1417 = vld [vmem:[%s1257] sm:$0x1]
        %v1419 = vlaneseq
        %v1420 = vshrl.u32 %v1419, 7
        %v1421 = vsub.s32 0, %v1420
        %v1422 = vrot.slane %v1417, %v1421
        %v1428 = vunpack.c.l.b16 %v1412
        %v1429 = vunpack.c.l.b16 %v1413
        %v1430 = vunpack.c.l.b16 %v1414
        %v1431 = vunpack.c.l.b16 %v1415
        %v1432 = vpack.c.b16 %v1429, %v1428
        %v1433 = vpack.c.b16 %v1431, %v1430
        %v1437 = vsel %vm1367, %v1416, 0
        %1439 = vmatprep.subr.bf16.mxu0 0
        %1440 = vmatpush1.bf16.msra.mxu0 %v1432
        %1441 = vmatprep.subr.bf16.mxu0 0
        %1442 = vmatpush1.bf16.msra.mxu0 %v1433
        %1443 = vmatprep.subr.bf16.mxu0 0
        %1444 = vmatpush1.bf16.msra.mxu0 0
        %1445 = vmatprep.subr.bf16.mxu0 0
        %1446 = vmatpush1.bf16.msra.mxu0 0
        %1447 = vmatprep.subr.bf16.mxu0 0
        %1448 = vmatpush1.bf16.msra.mxu0 0
        %1449 = vmatprep.subr.bf16.mxu0 0
        %1450 = vmatpush1.bf16.msra.mxu0 0
        %1451 = vmatprep.subr.bf16.mxu0 0
        %1452 = vmatpush1.bf16.msra.mxu0 0
        %1453 = vmatprep.subr.bf16.mxu0 0
        %1454 = vmatpush1.bf16.msra.mxu0 0
        %1455 = vmatprep.subr.bf16.mxu0 0
        %1456 = vmatpush1.bf16.msra.mxu0 0
        %1457 = vmatprep.subr.bf16.mxu0 0
        %1458 = vmatpush1.bf16.msra.mxu0 0
        %1459 = vmatprep.subr.bf16.mxu0 0
        %1460 = vmatpush1.bf16.msra.mxu0 0
        %1461 = vmatprep.subr.bf16.mxu0 0
        %1462 = vmatpush1.bf16.msra.mxu0 0
        %1463 = vmatprep.subr.bf16.mxu0 0
        %1464 = vmatpush1.bf16.msra.mxu0 0
        %1465 = vmatprep.subr.bf16.mxu0 0
        %1466 = vmatpush1.bf16.msra.mxu0 0
        %1467 = vmatprep.subr.bf16.mxu0 0
        %1468 = vmatpush1.bf16.msra.mxu0 0
        %1469 = vmatprep.subr.bf16.mxu0 0
        %1470 = vmatpush1.bf16.msra.mxu0 0
        %1471 = vmatprep.mubr.bf16.mxu0 0
        %1472 = vmatmul.mubr.bf16.gmra.mrb[0].mxu0 %v1437
        %v1473 = vpop.f32.mrb[0].mxu0
        %v1474 = vadd.f32 %v1422, %v1473
        %v1475 = vpop.f32.mrb[0].mxu0
        %v1476 = vpop.f32.mrb[0].mxu0
        %v1477 = vadd.f32 %v1422, %v1476
        %v1478 = vpop.f32.mrb[0].mxu0
        %1479 = vdwg.mxu0
        %v1480 = vld [vmem:[%s1262] sm:$0xf]
        %v1481 = vld [vmem:[%s1262 + $0x4] sm:$0xf]
        %v1482 = vld [vmem:[%s1262 + $0x8] sm:$0xf]
        %v1483 = vld [vmem:[%s1262 + $0xc] sm:$0xf]
        %v1484 = vld [vmem:[%s1265] sm:$0x1]
        %v1485 = vpack.c.bf16 %v1409, %v1406
        %v1486 = vpack.c.bf16 %v1477, %v1474
        %1488 = vrot.lane.b32.xlu0 %v1485, 96
        %v1489 = vpop.permute.xlu0 %1488
        %vm1490 = vcmask 64512
        %v1492 = vsel %vm1490, %v1485, 0
        %v1495 = vsel %vm1490, %v1489, 0
        %1497 = vmatprep.subr.bf16.mxu0 0
        %1498 = vmatpush1.bf16.xpose.msra.mxu0 %v1495
        %1499 = vmatprep.subr.bf16.mxu0 0
        %1500 = vmatpush1.bf16.xpose.msra.mxu0 0
        %1501 = vmatprep.subr.bf16.mxu0 0
        %1502 = vmatpush1.bf16.xpose.msra.mxu0 0
        %1503 = vmatprep.subr.bf16.mxu0 0
        %1504 = vmatpush1.bf16.xpose.msra.mxu0 0
        %1505 = vmatprep.subr.bf16.mxu0 0
        %1506 = vmatpush1.bf16.xpose.msra.mxu0 0
        %1507 = vmatprep.subr.bf16.mxu0 0
        %1508 = vmatpush1.bf16.xpose.msra.mxu0 0
        %1509 = vmatprep.subr.bf16.mxu0 0
        %1510 = vmatpush1.bf16.xpose.msra.mxu0 0
        %1511 = vmatprep.subr.bf16.mxu0 0
        %1512 = vmatpush1.bf16.xpose.msra.mxu0 0
        %1513 = vmatprep.subr.bf16.mxu0 0
        %1514 = vmatpush1.bf16.xpose.msra.mxu0 0
        %1515 = vmatprep.subr.bf16.mxu0 0
        %1516 = vmatpush1.bf16.xpose.msra.mxu0 0
        %1517 = vmatprep.subr.bf16.mxu0 0
        %1518 = vmatpush1.bf16.xpose.msra.mxu0 0
        %1519 = vmatprep.subr.bf16.mxu0 0
        %1520 = vmatpush1.bf16.xpose.msra.mxu0 0
        %1521 = vmatprep.subr.bf16.mxu0 0
        %1522 = vmatpush1.bf16.xpose.msra.mxu0 0
        %1523 = vmatprep.subr.bf16.mxu0 0
        %1524 = vmatpush1.bf16.xpose.msra.mxu0 0
        %1525 = vmatprep.subr.bf16.mxu0 0
        %1526 = vmatpush1.bf16.xpose.msra.mxu0 0
        %1527 = vmatprep.subr.bf16.mxu0 0
        %1528 = vmatpush1.bf16.xpose.msra.mxu0 0
        %1529 = vmatprep.mubr.bf16.mxu0 0
        %1530 = vmatmul.mubr.bf16.gmra.mrb[0].mxu0 %v1492
        %v1531 = vpop.f32.mrb[0].mxu0
        %v1532 = vadd.f32 0.0, %v1531
        %v1533 = vpop.f32.mrb[0].mxu0
        %v1534 = vpop.f32.mrb[0].mxu0
        %v1535 = vpop.f32.mrb[0].mxu0
        %1536 = vdwg.mxu0
        %v1537 = vsel %vm1490, %v1532, -inf
        %1538 = vmax.xlane.f32.xlu0 %v1537
        %v1539 = vpop.xlane.xlu0 %1538
        %v1540 = vsub.f32 %v1532, %v1539
        %v1541 = vmul.f32 %v1540, 1.442695
        %v1542 = vpow.pop %v1541
        %v1543 = vsel %vm1490, %v1542, 0.0
        %1544 = vadd.xlane.f32.xlu0 %v1543
        %v1545 = vpop.xlane.xlu0 %1544
        %v1546 = vrcp.pop %v1545
        %v1547 = vmul.f32 %v1542, %v1546
        %v1548 = vpack.c.bf16 %v1547, %v1547
        %v1550 = vsel %vm1490, %v1548, 0
        %vm1552 = vcmask 1043456
        %v1554 = vsel %vm1552, %v1486, 0
        %1556 = vmatprep.subr.bf16.mxu0 0
        %1557 = vmatpush1.bf16.msra.mxu0 %v1554
        %1558 = vmatprep.subr.bf16.mxu0 0
        %1559 = vmatpush1.bf16.msra.mxu0 0
        %1560 = vmatprep.subr.bf16.mxu0 0
        %1561 = vmatpush1.bf16.msra.mxu0 0
        %1562 = vmatprep.subr.bf16.mxu0 0
        %1563 = vmatpush1.bf16.msra.mxu0 0
        %1564 = vmatprep.subr.bf16.mxu0 0
        %1565 = vmatpush1.bf16.msra.mxu0 0
        %1566 = vmatprep.subr.bf16.mxu0 0
        %1567 = vmatpush1.bf16.msra.mxu0 0
        %1568 = vmatprep.subr.bf16.mxu0 0
        %1569 = vmatpush1.bf16.msra.mxu0 0
        %1570 = vmatprep.subr.bf16.mxu0 0
        %1571 = vmatpush1.bf16.msra.mxu0 0
        %1572 = vmatprep.subr.bf16.mxu0 0
        %1573 = vmatpush1.bf16.msra.mxu0 0
        %1574 = vmatprep.subr.bf16.mxu0 0
        %1575 = vmatpush1.bf16.msra.mxu0 0
        %1576 = vmatprep.subr.bf16.mxu0 0
        %1577 = vmatpush1.bf16.msra.mxu0 0
        %1578 = vmatprep.subr.bf16.mxu0 0
        %1579 = vmatpush1.bf16.msra.mxu0 0
        %1580 = vmatprep.subr.bf16.mxu0 0
        %1581 = vmatpush1.bf16.msra.mxu0 0
        %1582 = vmatprep.subr.bf16.mxu0 0
        %1583 = vmatpush1.bf16.msra.mxu0 0
        %1584 = vmatprep.subr.bf16.mxu0 0
        %1585 = vmatpush1.bf16.msra.mxu0 0
        %1586 = vmatprep.subr.bf16.mxu0 0
        %1587 = vmatpush1.bf16.msra.mxu0 0
        %1588 = vmatprep.mubr.bf16.mxu0 0
        %1589 = vmatmul.mubr.bf16.gmra.mrb[0].mxu0 %v1550
        %v1590 = vpop.f32.mrb[0].mxu0
        %v1591 = vadd.f32 0.0, %v1590
        %v1592 = vpop.f32.mrb[0].mxu0
        %v1593 = vpop.f32.mrb[0].mxu0
        %v1594 = vpop.f32.mrb[0].mxu0
        %1595 = vdwg.mxu0
        %1596 = vst.msk [vmem:[#allocation3] sm:$0xff] %vm1490, %v1591
        %1597 = vrot.lane.b32.xlu0 %v1485, 120
        %v1598 = vpop.permute.xlu0 %1597
        %1599 = vrot.lane.b32.xlu0 %v1485, 88
        %v1600 = vpop.permute.xlu0 %1599
        %v1602 = vsel %vm1490, %v1598, 0
        %v1605 = vsel %vm1490, %v1600, 0
        %1607 = vmatprep.subr.bf16.mxu0 0
        %1608 = vmatpush1.bf16.xpose.msra.mxu0 %v1605
        %1609 = vmatprep.subr.bf16.mxu0 0
        %1610 = vmatpush1.bf16.xpose.msra.mxu0 0
        %1611 = vmatprep.subr.bf16.mxu0 0
        %1612 = vmatpush1.bf16.xpose.msra.mxu0 0
        %1613 = vmatprep.subr.bf16.mxu0 0
        %1614 = vmatpush1.bf16.xpose.msra.mxu0 0
        %1615 = vmatprep.subr.bf16.mxu0 0
        %1616 = vmatpush1.bf16.xpose.msra.mxu0 0
        %1617 = vmatprep.subr.bf16.mxu0 0
        %1618 = vmatpush1.bf16.xpose.msra.mxu0 0
        %1619 = vmatprep.subr.bf16.mxu0 0
        %1620 = vmatpush1.bf16.xpose.msra.mxu0 0
        %1621 = vmatprep.subr.bf16.mxu0 0
        %1622 = vmatpush1.bf16.xpose.msra.mxu0 0
        %1623 = vmatprep.subr.bf16.mxu0 0
        %1624 = vmatpush1.bf16.xpose.msra.mxu0 0
        %1625 = vmatprep.subr.bf16.mxu0 0
        %1626 = vmatpush1.bf16.xpose.msra.mxu0 0
        %1627 = vmatprep.subr.bf16.mxu0 0
        %1628 = vmatpush1.bf16.xpose.msra.mxu0 0
        %1629 = vmatprep.subr.bf16.mxu0 0
        %1630 = vmatpush1.bf16.xpose.msra.mxu0 0
        %1631 = vmatprep.subr.bf16.mxu0 0
        %1632 = vmatpush1.bf16.xpose.msra.mxu0 0
        %1633 = vmatprep.subr.bf16.mxu0 0
        %1634 = vmatpush1.bf16.xpose.msra.mxu0 0
        %1635 = vmatprep.subr.bf16.mxu0 0
        %1636 = vmatpush1.bf16.xpose.msra.mxu0 0
        %1637 = vmatprep.subr.bf16.mxu0 0
        %1638 = vmatpush1.bf16.xpose.msra.mxu0 0
        %1639 = vmatprep.mubr.bf16.mxu0 0
        %1640 = vmatmul.mubr.bf16.gmra.mrb[0].mxu0 %v1602
        %v1641 = vpop.f32.mrb[0].mxu0
        %v1642 = vadd.f32 0.0, %v1641
        %v1643 = vpop.f32.mrb[0].mxu0
        %v1644 = vpop.f32.mrb[0].mxu0
        %v1645 = vpop.f32.mrb[0].mxu0
        %1646 = vdwg.mxu0
        %v1647 = vsel %vm1490, %v1642, -inf
        %1648 = vmax.xlane.f32.xlu0 %v1647
        %v1649 = vpop.xlane.xlu0 %1648
        %v1650 = vsub.f32 %v1642, %v1649
        %v1651 = vmul.f32 %v1650, 1.442695
        %v1652 = vpow.pop %v1651
        %v1653 = vsel %vm1490, %v1652, 0.0
        %1654 = vadd.xlane.f32.xlu0 %v1653
        %v1655 = vpop.xlane.xlu0 %1654
        %v1656 = vrcp.pop %v1655
        %v1657 = vmul.f32 %v1652, %v1656
        %v1658 = vpack.c.bf16 %v1657, %v1657
        %1660 = vrot.lane.b32.xlu0 %v1486, 120
        %v1661 = vpop.permute.xlu0 %1660
        %v1663 = vsel %vm1490, %v1658, 0
        %v1666 = vsel %vm1552, %v1661, 0
        %1668 = vmatprep.subr.bf16.mxu0 0
        %1669 = vmatpush1.bf16.msra.mxu0 %v1666
        %1670 = vmatprep.subr.bf16.mxu0 0
        %1671 = vmatpush1.bf16.msra.mxu0 0
        %1672 = vmatprep.subr.bf16.mxu0 0
        %1673 = vmatpush1.bf16.msra.mxu0 0
        %1674 = vmatprep.subr.bf16.mxu0 0
        %1675 = vmatpush1.bf16.msra.mxu0 0
        %1676 = vmatprep.subr.bf16.mxu0 0
        %1677 = vmatpush1.bf16.msra.mxu0 0
        %1678 = vmatprep.subr.bf16.mxu0 0
        %1679 = vmatpush1.bf16.msra.mxu0 0
        %1680 = vmatprep.subr.bf16.mxu0 0
        %1681 = vmatpush1.bf16.msra.mxu0 0
        %1682 = vmatprep.subr.bf16.mxu0 0
        %1683 = vmatpush1.bf16.msra.mxu0 0
        %1684 = vmatprep.subr.bf16.mxu0 0
        %1685 = vmatpush1.bf16.msra.mxu0 0
        %1686 = vmatprep.subr.bf16.mxu0 0
        %1687 = vmatpush1.bf16.msra.mxu0 0
        %1688 = vmatprep.subr.bf16.mxu0 0
        %1689 = vmatpush1.bf16.msra.mxu0 0
        %1690 = vmatprep.subr.bf16.mxu0 0
        %1691 = vmatpush1.bf16.msra.mxu0 0
        %1692 = vmatprep.subr.bf16.mxu0 0
        %1693 = vmatpush1.bf16.msra.mxu0 0
        %1694 = vmatprep.subr.bf16.mxu0 0
        %1695 = vmatpush1.bf16.msra.mxu0 0
        %1696 = vmatprep.subr.bf16.mxu0 0
        %1697 = vmatpush1.bf16.msra.mxu0 0
        %1698 = vmatprep.subr.bf16.mxu0 0
        %1699 = vmatpush1.bf16.msra.mxu0 0
        %1700 = vmatprep.mubr.bf16.mxu0 0
        %1701 = vmatmul.mubr.bf16.gmra.mrb[0].mxu0 %v1663
        %v1702 = vpop.f32.mrb[0].mxu0
        %v1703 = vadd.f32 0.0, %v1702
        %v1704 = vpop.f32.mrb[0].mxu0
        %v1705 = vpop.f32.mrb[0].mxu0
        %v1706 = vpop.f32.mrb[0].mxu0
        %1707 = vdwg.mxu0
        %1709 = vrot.lane.b32.xlu0 %v1703, 8
        %v1710 = vpop.permute.xlu0 %1709
        %vm1712 = vcmask 130112
        %1713 = vst.msk [vmem:[#allocation3] sm:$0xff] %vm1712, %v1710
        %1714 = vrot.lane.b32.xlu0 %v1485, 112
        %v1715 = vpop.permute.xlu0 %1714
        %1716 = vrot.lane.b32.xlu0 %v1485, 80
        %v1717 = vpop.permute.xlu0 %1716
        %v1719 = vsel %vm1490, %v1715, 0
        %v1722 = vsel %vm1490, %v1717, 0
        %1724 = vmatprep.subr.bf16.mxu0 0
        %1725 = vmatpush1.bf16.xpose.msra.mxu0 %v1722
        %1726 = vmatprep.subr.bf16.mxu0 0
        %1727 = vmatpush1.bf16.xpose.msra.mxu0 0
        %1728 = vmatprep.subr.bf16.mxu0 0
        %1729 = vmatpush1.bf16.xpose.msra.mxu0 0
        %1730 = vmatprep.subr.bf16.mxu0 0
        %1731 = vmatpush1.bf16.xpose.msra.mxu0 0
        %1732 = vmatprep.subr.bf16.mxu0 0
        %1733 = vmatpush1.bf16.xpose.msra.mxu0 0
        %1734 = vmatprep.subr.bf16.mxu0 0
        %1735 = vmatpush1.bf16.xpose.msra.mxu0 0
        %1736 = vmatprep.subr.bf16.mxu0 0
        %1737 = vmatpush1.bf16.xpose.msra.mxu0 0
        %1738 = vmatprep.subr.bf16.mxu0 0
        %1739 = vmatpush1.bf16.xpose.msra.mxu0 0
        %1740 = vmatprep.subr.bf16.mxu0 0
        %1741 = vmatpush1.bf16.xpose.msra.mxu0 0
        %1742 = vmatprep.subr.bf16.mxu0 0
        %1743 = vmatpush1.bf16.xpose.msra.mxu0 0
        %1744 = vmatprep.subr.bf16.mxu0 0
        %1745 = vmatpush1.bf16.xpose.msra.mxu0 0
        %1746 = vmatprep.subr.bf16.mxu0 0
        %1747 = vmatpush1.bf16.xpose.msra.mxu0 0
        %1748 = vmatprep.subr.bf16.mxu0 0
        %1749 = vmatpush1.bf16.xpose.msra.mxu0 0
        %1750 = vmatprep.subr.bf16.mxu0 0
        %1751 = vmatpush1.bf16.xpose.msra.mxu0 0
        %1752 = vmatprep.subr.bf16.mxu0 0
        %1753 = vmatpush1.bf16.xpose.msra.mxu0 0
        %1754 = vmatprep.subr.bf16.mxu0 0
        %1755 = vmatpush1.bf16.xpose.msra.mxu0 0
        %1756 = vmatprep.mubr.bf16.mxu0 0
        %1757 = vmatmul.mubr.bf16.gmra.mrb[0].mxu0 %v1719
        %v1758 = vpop.f32.mrb[0].mxu0
        %v1759 = vadd.f32 0.0, %v1758
        %v1760 = vpop.f32.mrb[0].mxu0
        %v1761 = vpop.f32.mrb[0].mxu0
        %v1762 = vpop.f32.mrb[0].mxu0
        %1763 = vdwg.mxu0
        %v1764 = vsel %vm1490, %v1759, -inf
        %1765 = vmax.xlane.f32.xlu0 %v1764
        %v1766 = vpop.xlane.xlu0 %1765
        %v1767 = vsub.f32 %v1759, %v1766
        %v1768 = vmul.f32 %v1767, 1.442695
        %v1769 = vpow.pop %v1768
        %v1770 = vsel %vm1490, %v1769, 0.0
        %1771 = vadd.xlane.f32.xlu0 %v1770
        %v1772 = vpop.xlane.xlu0 %1771
        %v1773 = vrcp.pop %v1772
        %v1774 = vmul.f32 %v1769, %v1773
        %v1775 = vpack.c.bf16 %v1774, %v1774
        %1776 = vrot.lane.b32.xlu0 %v1486, 112
        %v1777 = vpop.permute.xlu0 %1776
        %v1779 = vsel %vm1490, %v1775, 0
        %v1782 = vsel %vm1552, %v1777, 0
        %1784 = vmatprep.subr.bf16.mxu0 0
        %1785 = vmatpush1.bf16.msra.mxu0 %v1782
        %1786 = vmatprep.subr.bf16.mxu0 0
        %1787 = vmatpush1.bf16.msra.mxu0 0
        %1788 = vmatprep.subr.bf16.mxu0 0
        %1789 = vmatpush1.bf16.msra.mxu0 0
        %1790 = vmatprep.subr.bf16.mxu0 0
        %1791 = vmatpush1.bf16.msra.mxu0 0
        %1792 = vmatprep.subr.bf16.mxu0 0
        %1793 = vmatpush1.bf16.msra.mxu0 0
        %1794 = vmatprep.subr.bf16.mxu0 0
        %1795 = vmatpush1.bf16.msra.mxu0 0
        %1796 = vmatprep.subr.bf16.mxu0 0
        %1797 = vmatpush1.bf16.msra.mxu0 0
        %1798 = vmatprep.subr.bf16.mxu0 0
        %1799 = vmatpush1.bf16.msra.mxu0 0
        %1800 = vmatprep.subr.bf16.mxu0 0
        %1801 = vmatpush1.bf16.msra.mxu0 0
        %1802 = vmatprep.subr.bf16.mxu0 0
        %1803 = vmatpush1.bf16.msra.mxu0 0
        %1804 = vmatprep.subr.bf16.mxu0 0
        %1805 = vmatpush1.bf16.msra.mxu0 0
        %1806 = vmatprep.subr.bf16.mxu0 0
        %1807 = vmatpush1.bf16.msra.mxu0 0
        %1808 = vmatprep.subr.bf16.mxu0 0
        %1809 = vmatpush1.bf16.msra.mxu0 0
        %1810 = vmatprep.subr.bf16.mxu0 0
        %1811 = vmatpush1.bf16.msra.mxu0 0
        %1812 = vmatprep.subr.bf16.mxu0 0
        %1813 = vmatpush1.bf16.msra.mxu0 0
        %1814 = vmatprep.subr.bf16.mxu0 0
        %1815 = vmatpush1.bf16.msra.mxu0 0
        %1816 = vmatprep.mubr.bf16.mxu0 0
        %1817 = vmatmul.mubr.bf16.gmra.mrb[0].mxu0 %v1779
        %v1818 = vpop.f32.mrb[0].mxu0
        %v1819 = vadd.f32 0.0, %v1818
        %v1820 = vpop.f32.mrb[0].mxu0
        %v1821 = vpop.f32.mrb[0].mxu0
        %v1822 = vpop.f32.mrb[0].mxu0
        %1823 = vdwg.mxu0
        %1825 = vrot.lane.b32.xlu0 %v1819, 16
        %v1826 = vpop.permute.xlu0 %1825
        %vm1828 = vcmask 195712
        %1829 = vst.msk [vmem:[#allocation3] sm:$0xff] %vm1828, %v1826
        %1830 = vrot.lane.b32.xlu0 %v1485, 104
        %v1831 = vpop.permute.xlu0 %1830
        %1832 = vrot.lane.b32.xlu0 %v1485, 72
        %v1833 = vpop.permute.xlu0 %1832
        %v1835 = vsel %vm1490, %v1831, 0
        %v1838 = vsel %vm1490, %v1833, 0
        %1840 = vmatprep.subr.bf16.mxu0 0
        %1841 = vmatpush1.bf16.xpose.msra.mxu0 %v1838
        %1842 = vmatprep.subr.bf16.mxu0 0
        %1843 = vmatpush1.bf16.xpose.msra.mxu0 0
        %1844 = vmatprep.subr.bf16.mxu0 0
        %1845 = vmatpush1.bf16.xpose.msra.mxu0 0
        %1846 = vmatprep.subr.bf16.mxu0 0
        %1847 = vmatpush1.bf16.xpose.msra.mxu0 0
        %1848 = vmatprep.subr.bf16.mxu0 0
        %1849 = vmatpush1.bf16.xpose.msra.mxu0 0
        %1850 = vmatprep.subr.bf16.mxu0 0
        %1851 = vmatpush1.bf16.xpose.msra.mxu0 0
        %1852 = vmatprep.subr.bf16.mxu0 0
        %1853 = vmatpush1.bf16.xpose.msra.mxu0 0
        %1854 = vmatprep.subr.bf16.mxu0 0
        %1855 = vmatpush1.bf16.xpose.msra.mxu0 0
        %1856 = vmatprep.subr.bf16.mxu0 0
        %1857 = vmatpush1.bf16.xpose.msra.mxu0 0
        %1858 = vmatprep.subr.bf16.mxu0 0
        %1859 = vmatpush1.bf16.xpose.msra.mxu0 0
        %1860 = vmatprep.subr.bf16.mxu0 0
        %1861 = vmatpush1.bf16.xpose.msra.mxu0 0
        %1862 = vmatprep.subr.bf16.mxu0 0
        %1863 = vmatpush1.bf16.xpose.msra.mxu0 0
        %1864 = vmatprep.subr.bf16.mxu0 0
        %1865 = vmatpush1.bf16.xpose.msra.mxu0 0
        %1866 = vmatprep.subr.bf16.mxu0 0
        %1867 = vmatpush1.bf16.xpose.msra.mxu0 0
        %1868 = vmatprep.subr.bf16.mxu0 0
        %1869 = vmatpush1.bf16.xpose.msra.mxu0 0
        %1870 = vmatprep.subr.bf16.mxu0 0
        %1871 = vmatpush1.bf16.xpose.msra.mxu0 0
        %1872 = vmatprep.mubr.bf16.mxu0 0
        %1873 = vmatmul.mubr.bf16.gmra.mrb[0].mxu0 %v1835
        %v1874 = vpop.f32.mrb[0].mxu0
        %v1875 = vadd.f32 0.0, %v1874
        %v1876 = vpop.f32.mrb[0].mxu0
        %v1877 = vpop.f32.mrb[0].mxu0
        %v1878 = vpop.f32.mrb[0].mxu0
        %1879 = vdwg.mxu0
        %v1880 = vsel %vm1490, %v1875, -inf
        %1881 = vmax.xlane.f32.xlu0 %v1880
        %v1882 = vpop.xlane.xlu0 %1881
        %v1883 = vsub.f32 %v1875, %v1882
        %v1884 = vmul.f32 %v1883, 1.442695
        %v1885 = vpow.pop %v1884
        %v1886 = vsel %vm1490, %v1885, 0.0
        %1887 = vadd.xlane.f32.xlu0 %v1886
        %v1888 = vpop.xlane.xlu0 %1887
        %v1889 = vrcp.pop %v1888
        %v1890 = vmul.f32 %v1885, %v1889
        %v1891 = vpack.c.bf16 %v1890, %v1890
        %1892 = vrot.lane.b32.xlu0 %v1486, 104
        %v1893 = vpop.permute.xlu0 %1892
        %v1895 = vsel %vm1490, %v1891, 0
        %v1898 = vsel %vm1552, %v1893, 0
        %1900 = vmatprep.subr.bf16.mxu0 0
        %1901 = vmatpush1.bf16.msra.mxu0 %v1898
        %1902 = vmatprep.subr.bf16.mxu0 0
        %1903 = vmatpush1.bf16.msra.mxu0 0
        %1904 = vmatprep.subr.bf16.mxu0 0
        %1905 = vmatpush1.bf16.msra.mxu0 0
        %1906 = vmatprep.subr.bf16.mxu0 0
        %1907 = vmatpush1.bf16.msra.mxu0 0
        %1908 = vmatprep.subr.bf16.mxu0 0
        %1909 = vmatpush1.bf16.msra.mxu0 0
        %1910 = vmatprep.subr.bf16.mxu0 0
        %1911 = vmatpush1.bf16.msra.mxu0 0
        %1912 = vmatprep.subr.bf16.mxu0 0
        %1913 = vmatpush1.bf16.msra.mxu0 0
        %1914 = vmatprep.subr.bf16.mxu0 0
        %1915 = vmatpush1.bf16.msra.mxu0 0
        %1916 = vmatprep.subr.bf16.mxu0 0
        %1917 = vmatpush1.bf16.msra.mxu0 0
        %1918 = vmatprep.subr.bf16.mxu0 0
        %1919 = vmatpush1.bf16.msra.mxu0 0
        %1920 = vmatprep.subr.bf16.mxu0 0
        %1921 = vmatpush1.bf16.msra.mxu0 0
        %1922 = vmatprep.subr.bf16.mxu0 0
        %1923 = vmatpush1.bf16.msra.mxu0 0
        %1924 = vmatprep.subr.bf16.mxu0 0
        %1925 = vmatpush1.bf16.msra.mxu0 0
        %1926 = vmatprep.subr.bf16.mxu0 0
        %1927 = vmatpush1.bf16.msra.mxu0 0
        %1928 = vmatprep.subr.bf16.mxu0 0
        %1929 = vmatpush1.bf16.msra.mxu0 0
        %1930 = vmatprep.subr.bf16.mxu0 0
        %1931 = vmatpush1.bf16.msra.mxu0 0
        %1932 = vmatprep.mubr.bf16.mxu0 0
        %1933 = vmatmul.mubr.bf16.gmra.mrb[0].mxu0 %v1895
        %v1934 = vpop.f32.mrb[0].mxu0
        %v1935 = vadd.f32 0.0, %v1934
        %v1936 = vpop.f32.mrb[0].mxu0
        %v1937 = vpop.f32.mrb[0].mxu0
        %v1938 = vpop.f32.mrb[0].mxu0
        %1939 = vdwg.mxu0
        %1941 = vrot.lane.b32.xlu0 %v1935, 24
        %v1942 = vpop.permute.xlu0 %1941
        %vm1944 = vcmask 261312
        %1945 = vst.msk [vmem:[#allocation3] sm:$0xff] %vm1944, %v1942
        %v1946 = vrot.slane %v1485, 4
        %1947 = vrot.lane.b32.xlu0 %v1946, 96
        %v1948 = vpop.permute.xlu0 %1947
        %v1950 = vsel %vm1490, %v1946, 0
        %v1953 = vsel %vm1490, %v1948, 0
        %1955 = vmatprep.subr.bf16.mxu0 0
        %1956 = vmatpush1.bf16.xpose.msra.mxu0 %v1953
        %1957 = vmatprep.subr.bf16.mxu0 0
        %1958 = vmatpush1.bf16.xpose.msra.mxu0 0
        %1959 = vmatprep.subr.bf16.mxu0 0
        %1960 = vmatpush1.bf16.xpose.msra.mxu0 0
        %1961 = vmatprep.subr.bf16.mxu0 0
        %1962 = vmatpush1.bf16.xpose.msra.mxu0 0
        %1963 = vmatprep.subr.bf16.mxu0 0
        %1964 = vmatpush1.bf16.xpose.msra.mxu0 0
        %1965 = vmatprep.subr.bf16.mxu0 0
        %1966 = vmatpush1.bf16.xpose.msra.mxu0 0
        %1967 = vmatprep.subr.bf16.mxu0 0
        %1968 = vmatpush1.bf16.xpose.msra.mxu0 0
        %1969 = vmatprep.subr.bf16.mxu0 0
        %1970 = vmatpush1.bf16.xpose.msra.mxu0 0
        %1971 = vmatprep.subr.bf16.mxu0 0
        %1972 = vmatpush1.bf16.xpose.msra.mxu0 0
        %1973 = vmatprep.subr.bf16.mxu0 0
        %1974 = vmatpush1.bf16.xpose.msra.mxu0 0
        %1975 = vmatprep.subr.bf16.mxu0 0
        %1976 = vmatpush1.bf16.xpose.msra.mxu0 0
        %1977 = vmatprep.subr.bf16.mxu0 0
        %1978 = vmatpush1.bf16.xpose.msra.mxu0 0
        %1979 = vmatprep.subr.bf16.mxu0 0
        %1980 = vmatpush1.bf16.xpose.msra.mxu0 0
        %1981 = vmatprep.subr.bf16.mxu0 0
        %1982 = vmatpush1.bf16.xpose.msra.mxu0 0
        %1983 = vmatprep.subr.bf16.mxu0 0
        %1984 = vmatpush1.bf16.xpose.msra.mxu0 0
        %1985 = vmatprep.subr.bf16.mxu0 0
        %1986 = vmatpush1.bf16.xpose.msra.mxu0 0
        %1987 = vmatprep.mubr.bf16.mxu0 0
        %1988 = vmatmul.mubr.bf16.gmra.mrb[0].mxu0 %v1950
        %v1989 = vpop.f32.mrb[0].mxu0
        %v1990 = vadd.f32 0.0, %v1989
        %v1991 = vpop.f32.mrb[0].mxu0
        %v1992 = vpop.f32.mrb[0].mxu0
        %v1993 = vpop.f32.mrb[0].mxu0
        %1994 = vdwg.mxu0
        %v1995 = vsel %vm1490, %v1990, -inf
        %1996 = vmax.xlane.f32.xlu0 %v1995
        %v1997 = vpop.xlane.xlu0 %1996
        %v1998 = vsub.f32 %v1990, %v1997
        %v1999 = vmul.f32 %v1998, 1.442695
        %v2000 = vpow.pop %v1999
        %v2001 = vsel %vm1490, %v2000, 0.0
        %2002 = vadd.xlane.f32.xlu0 %v2001
        %v2003 = vpop.xlane.xlu0 %2002
        %v2004 = vrcp.pop %v2003
        %v2005 = vmul.f32 %v2000, %v2004
        %v2006 = vpack.c.bf16 %v2005, %v2005
        %v2007 = vrot.slane %v1486, 4
        %v2009 = vsel %vm1490, %v2006, 0
        %v2012 = vsel %vm1552, %v2007, 0
        %2014 = vmatprep.subr.bf16.mxu0 0
        %2015 = vmatpush1.bf16.msra.mxu0 %v2012
        %2016 = vmatprep.subr.bf16.mxu0 0
        %2017 = vmatpush1.bf16.msra.mxu0 0
        %2018 = vmatprep.subr.bf16.mxu0 0
        %2019 = vmatpush1.bf16.msra.mxu0 0
        %2020 = vmatprep.subr.bf16.mxu0 0
        %2021 = vmatpush1.bf16.msra.mxu0 0
        %2022 = vmatprep.subr.bf16.mxu0 0
        %2023 = vmatpush1.bf16.msra.mxu0 0
        %2024 = vmatprep.subr.bf16.mxu0 0
        %2025 = vmatpush1.bf16.msra.mxu0 0
        %2026 = vmatprep.subr.bf16.mxu0 0
        %2027 = vmatpush1.bf16.msra.mxu0 0
        %2028 = vmatprep.subr.bf16.mxu0 0
        %2029 = vmatpush1.bf16.msra.mxu0 0
        %2030 = vmatprep.subr.bf16.mxu0 0
        %2031 = vmatpush1.bf16.msra.mxu0 0
        %2032 = vmatprep.subr.bf16.mxu0 0
        %2033 = vmatpush1.bf16.msra.mxu0 0
        %2034 = vmatprep.subr.bf16.mxu0 0
        %2035 = vmatpush1.bf16.msra.mxu0 0
        %2036 = vmatprep.subr.bf16.mxu0 0
        %2037 = vmatpush1.bf16.msra.mxu0 0
        %2038 = vmatprep.subr.bf16.mxu0 0
        %2039 = vmatpush1.bf16.msra.mxu0 0
        %2040 = vmatprep.subr.bf16.mxu0 0
        %2041 = vmatpush1.bf16.msra.mxu0 0
        %2042 = vmatprep.subr.bf16.mxu0 0
        %2043 = vmatpush1.bf16.msra.mxu0 0
        %2044 = vmatprep.subr.bf16.mxu0 0
        %2045 = vmatpush1.bf16.msra.mxu0 0
        %2046 = vmatprep.mubr.bf16.mxu0 0
        %2047 = vmatmul.mubr.bf16.gmra.mrb[0].mxu0 %v2009
        %v2048 = vpop.f32.mrb[0].mxu0
        %v2049 = vadd.f32 0.0, %v2048
        %v2050 = vpop.f32.mrb[0].mxu0
        %v2051 = vpop.f32.mrb[0].mxu0
        %v2052 = vpop.f32.mrb[0].mxu0
        %2053 = vdwg.mxu0
        %2054 = vst.msk [vmem:[#allocation3 + $0x8] sm:$0xff] %vm1490, %v2049
        %2055 = vrot.lane.b32.xlu0 %v1946, 120
        %v2056 = vpop.permute.xlu0 %2055
        %2057 = vrot.lane.b32.xlu0 %v1946, 88
        %v2058 = vpop.permute.xlu0 %2057
        %v2060 = vsel %vm1490, %v2056, 0
        %v2063 = vsel %vm1490, %v2058, 0
        %2065 = vmatprep.subr.bf16.mxu0 0
        %2066 = vmatpush1.bf16.xpose.msra.mxu0 %v2063
        %2067 = vmatprep.subr.bf16.mxu0 0
        %2068 = vmatpush1.bf16.xpose.msra.mxu0 0
        %2069 = vmatprep.subr.bf16.mxu0 0
        %2070 = vmatpush1.bf16.xpose.msra.mxu0 0
        %2071 = vmatprep.subr.bf16.mxu0 0
        %2072 = vmatpush1.bf16.xpose.msra.mxu0 0
        %2073 = vmatprep.subr.bf16.mxu0 0
        %2074 = vmatpush1.bf16.xpose.msra.mxu0 0
        %2075 = vmatprep.subr.bf16.mxu0 0
        %2076 = vmatpush1.bf16.xpose.msra.mxu0 0
        %2077 = vmatprep.subr.bf16.mxu0 0
        %2078 = vmatpush1.bf16.xpose.msra.mxu0 0
        %2079 = vmatprep.subr.bf16.mxu0 0
        %2080 = vmatpush1.bf16.xpose.msra.mxu0 0
        %2081 = vmatprep.subr.bf16.mxu0 0
        %2082 = vmatpush1.bf16.xpose.msra.mxu0 0
        %2083 = vmatprep.subr.bf16.mxu0 0
        %2084 = vmatpush1.bf16.xpose.msra.mxu0 0
        %2085 = vmatprep.subr.bf16.mxu0 0
        %2086 = vmatpush1.bf16.xpose.msra.mxu0 0
        %2087 = vmatprep.subr.bf16.mxu0 0
        %2088 = vmatpush1.bf16.xpose.msra.mxu0 0
        %2089 = vmatprep.subr.bf16.mxu0 0
        %2090 = vmatpush1.bf16.xpose.msra.mxu0 0
        %2091 = vmatprep.subr.bf16.mxu0 0
        %2092 = vmatpush1.bf16.xpose.msra.mxu0 0
        %2093 = vmatprep.subr.bf16.mxu0 0
        %2094 = vmatpush1.bf16.xpose.msra.mxu0 0
        %2095 = vmatprep.subr.bf16.mxu0 0
        %2096 = vmatpush1.bf16.xpose.msra.mxu0 0
        %2097 = vmatprep.mubr.bf16.mxu0 0
        %2098 = vmatmul.mubr.bf16.gmra.mrb[0].mxu0 %v2060
        %v2099 = vpop.f32.mrb[0].mxu0
        %v2100 = vadd.f32 0.0, %v2099
        %v2101 = vpop.f32.mrb[0].mxu0
        %v2102 = vpop.f32.mrb[0].mxu0
        %v2103 = vpop.f32.mrb[0].mxu0
        %2104 = vdwg.mxu0
        %v2105 = vsel %vm1490, %v2100, -inf
        %2106 = vmax.xlane.f32.xlu0 %v2105
        %v2107 = vpop.xlane.xlu0 %2106
        %v2108 = vsub.f32 %v2100, %v2107
        %v2109 = vmul.f32 %v2108, 1.442695
        %v2110 = vpow.pop %v2109
        %v2111 = vsel %vm1490, %v2110, 0.0
        %2112 = vadd.xlane.f32.xlu0 %v2111
        %v2113 = vpop.xlane.xlu0 %2112
        %v2114 = vrcp.pop %v2113
        %v2115 = vmul.f32 %v2110, %v2114
        %v2116 = vpack.c.bf16 %v2115, %v2115
        %2117 = vrot.lane.b32.xlu0 %v2007, 120
        %v2118 = vpop.permute.xlu0 %2117
        %v2120 = vsel %vm1490, %v2116, 0
        %v2123 = vsel %vm1552, %v2118, 0
        %2125 = vmatprep.subr.bf16.mxu0 0
        %2126 = vmatpush1.bf16.msra.mxu0 %v2123
        %2127 = vmatprep.subr.bf16.mxu0 0
        %2128 = vmatpush1.bf16.msra.mxu0 0
        %2129 = vmatprep.subr.bf16.mxu0 0
        %2130 = vmatpush1.bf16.msra.mxu0 0
        %2131 = vmatprep.subr.bf16.mxu0 0
        %2132 = vmatpush1.bf16.msra.mxu0 0
        %2133 = vmatprep.subr.bf16.mxu0 0
        %2134 = vmatpush1.bf16.msra.mxu0 0
        %2135 = vmatprep.subr.bf16.mxu0 0
        %2136 = vmatpush1.bf16.msra.mxu0 0
        %2137 = vmatprep.subr.bf16.mxu0 0
        %2138 = vmatpush1.bf16.msra.mxu0 0
        %2139 = vmatprep.subr.bf16.mxu0 0
        %2140 = vmatpush1.bf16.msra.mxu0 0
        %2141 = vmatprep.subr.bf16.mxu0 0
        %2142 = vmatpush1.bf16.msra.mxu0 0
        %2143 = vmatprep.subr.bf16.mxu0 0
        %2144 = vmatpush1.bf16.msra.mxu0 0
        %2145 = vmatprep.subr.bf16.mxu0 0
        %2146 = vmatpush1.bf16.msra.mxu0 0
        %2147 = vmatprep.subr.bf16.mxu0 0
        %2148 = vmatpush1.bf16.msra.mxu0 0
        %2149 = vmatprep.subr.bf16.mxu0 0
        %2150 = vmatpush1.bf16.msra.mxu0 0
        %2151 = vmatprep.subr.bf16.mxu0 0
        %2152 = vmatpush1.bf16.msra.mxu0 0
        %2153 = vmatprep.subr.bf16.mxu0 0
        %2154 = vmatpush1.bf16.msra.mxu0 0
        %2155 = vmatprep.subr.bf16.mxu0 0
        %2156 = vmatpush1.bf16.msra.mxu0 0
        %2157 = vmatprep.mubr.bf16.mxu0 0
        %2158 = vmatmul.mubr.bf16.gmra.mrb[0].mxu0 %v2120
        %v2159 = vpop.f32.mrb[0].mxu0
        %v2160 = vadd.f32 0.0, %v2159
        %v2161 = vpop.f32.mrb[0].mxu0
        %v2162 = vpop.f32.mrb[0].mxu0
        %v2163 = vpop.f32.mrb[0].mxu0
        %2164 = vdwg.mxu0
        %2166 = vrot.lane.b32.xlu0 %v2160, 8
        %v2167 = vpop.permute.xlu0 %2166
        %2169 = vst.msk [vmem:[#allocation3 + $0x8] sm:$0xff] %vm1712, %v2167
        %2170 = vrot.lane.b32.xlu0 %v1946, 112
        %v2171 = vpop.permute.xlu0 %2170
        %2172 = vrot.lane.b32.xlu0 %v1946, 80
        %v2173 = vpop.permute.xlu0 %2172
        %v2175 = vsel %vm1490, %v2171, 0
        %v2178 = vsel %vm1490, %v2173, 0
        %2180 = vmatprep.subr.bf16.mxu0 0
        %2181 = vmatpush1.bf16.xpose.msra.mxu0 %v2178
        %2182 = vmatprep.subr.bf16.mxu0 0
        %2183 = vmatpush1.bf16.xpose.msra.mxu0 0
        %2184 = vmatprep.subr.bf16.mxu0 0
        %2185 = vmatpush1.bf16.xpose.msra.mxu0 0
        %2186 = vmatprep.subr.bf16.mxu0 0
        %2187 = vmatpush1.bf16.xpose.msra.mxu0 0
        %2188 = vmatprep.subr.bf16.mxu0 0
        %2189 = vmatpush1.bf16.xpose.msra.mxu0 0
        %2190 = vmatprep.subr.bf16.mxu0 0
        %2191 = vmatpush1.bf16.xpose.msra.mxu0 0
        %2192 = vmatprep.subr.bf16.mxu0 0
        %2193 = vmatpush1.bf16.xpose.msra.mxu0 0
        %2194 = vmatprep.subr.bf16.mxu0 0
        %2195 = vmatpush1.bf16.xpose.msra.mxu0 0
        %2196 = vmatprep.subr.bf16.mxu0 0
        %2197 = vmatpush1.bf16.xpose.msra.mxu0 0
        %2198 = vmatprep.subr.bf16.mxu0 0
        %2199 = vmatpush1.bf16.xpose.msra.mxu0 0
        %2200 = vmatprep.subr.bf16.mxu0 0
        %2201 = vmatpush1.bf16.xpose.msra.mxu0 0
        %2202 = vmatprep.subr.bf16.mxu0 0
        %2203 = vmatpush1.bf16.xpose.msra.mxu0 0
        %2204 = vmatprep.subr.bf16.mxu0 0
        %2205 = vmatpush1.bf16.xpose.msra.mxu0 0
        %2206 = vmatprep.subr.bf16.mxu0 0
        %2207 = vmatpush1.bf16.xpose.msra.mxu0 0
        %2208 = vmatprep.subr.bf16.mxu0 0
        %2209 = vmatpush1.bf16.xpose.msra.mxu0 0
        %2210 = vmatprep.subr.bf16.mxu0 0
        %2211 = vmatpush1.bf16.xpose.msra.mxu0 0
        %2212 = vmatprep.mubr.bf16.mxu0 0
        %2213 = vmatmul.mubr.bf16.gmra.mrb[0].mxu0 %v2175
        %v2214 = vpop.f32.mrb[0].mxu0
        %v2215 = vadd.f32 0.0, %v2214
        %v2216 = vpop.f32.mrb[0].mxu0
        %v2217 = vpop.f32.mrb[0].mxu0
        %v2218 = vpop.f32.mrb[0].mxu0
        %2219 = vdwg.mxu0
        %v2220 = vsel %vm1490, %v2215, -inf
        %2221 = vmax.xlane.f32.xlu0 %v2220
        %v2222 = vpop.xlane.xlu0 %2221
        %v2223 = vsub.f32 %v2215, %v2222
        %v2224 = vmul.f32 %v2223, 1.442695
        %v2225 = vpow.pop %v2224
        %v2226 = vsel %vm1490, %v2225, 0.0
        %2227 = vadd.xlane.f32.xlu0 %v2226
        %v2228 = vpop.xlane.xlu0 %2227
        %v2229 = vrcp.pop %v2228
        %v2230 = vmul.f32 %v2225, %v2229
        %v2231 = vpack.c.bf16 %v2230, %v2230
        %2232 = vrot.lane.b32.xlu0 %v2007, 112
        %v2233 = vpop.permute.xlu0 %2232
        %v2235 = vsel %vm1490, %v2231, 0
        %v2238 = vsel %vm1552, %v2233, 0
        %2240 = vmatprep.subr.bf16.mxu0 0
        %2241 = vmatpush1.bf16.msra.mxu0 %v2238
        %2242 = vmatprep.subr.bf16.mxu0 0
        %2243 = vmatpush1.bf16.msra.mxu0 0
        %2244 = vmatprep.subr.bf16.mxu0 0
        %2245 = vmatpush1.bf16.msra.mxu0 0
        %2246 = vmatprep.subr.bf16.mxu0 0
        %2247 = vmatpush1.bf16.msra.mxu0 0
        %2248 = vmatprep.subr.bf16.mxu0 0
        %2249 = vmatpush1.bf16.msra.mxu0 0
        %2250 = vmatprep.subr.bf16.mxu0 0
        %2251 = vmatpush1.bf16.msra.mxu0 0
        %2252 = vmatprep.subr.bf16.mxu0 0
        %2253 = vmatpush1.bf16.msra.mxu0 0
        %2254 = vmatprep.subr.bf16.mxu0 0
        %2255 = vmatpush1.bf16.msra.mxu0 0
        %2256 = vmatprep.subr.bf16.mxu0 0
        %2257 = vmatpush1.bf16.msra.mxu0 0
        %2258 = vmatprep.subr.bf16.mxu0 0
        %2259 = vmatpush1.bf16.msra.mxu0 0
        %2260 = vmatprep.subr.bf16.mxu0 0
        %2261 = vmatpush1.bf16.msra.mxu0 0
        %2262 = vmatprep.subr.bf16.mxu0 0
        %2263 = vmatpush1.bf16.msra.mxu0 0
        %2264 = vmatprep.subr.bf16.mxu0 0
        %2265 = vmatpush1.bf16.msra.mxu0 0
        %2266 = vmatprep.subr.bf16.mxu0 0
        %2267 = vmatpush1.bf16.msra.mxu0 0
        %2268 = vmatprep.subr.bf16.mxu0 0
        %2269 = vmatpush1.bf16.msra.mxu0 0
        %2270 = vmatprep.subr.bf16.mxu0 0
        %2271 = vmatpush1.bf16.msra.mxu0 0
        %2272 = vmatprep.mubr.bf16.mxu0 0
        %2273 = vmatmul.mubr.bf16.gmra.mrb[0].mxu0 %v2235
        %v2274 = vpop.f32.mrb[0].mxu0
        %v2275 = vadd.f32 0.0, %v2274
        %v2276 = vpop.f32.mrb[0].mxu0
        %v2277 = vpop.f32.mrb[0].mxu0
        %v2278 = vpop.f32.mrb[0].mxu0
        %2279 = vdwg.mxu0
        %2281 = vrot.lane.b32.xlu0 %v2275, 16
        %v2282 = vpop.permute.xlu0 %2281
        %2284 = vst.msk [vmem:[#allocation3 + $0x8] sm:$0xff] %vm1828, %v2282
        %2285 = vrot.lane.b32.xlu0 %v1946, 104
        %v2286 = vpop.permute.xlu0 %2285
        %2287 = vrot.lane.b32.xlu0 %v1946, 72
        %v2288 = vpop.permute.xlu0 %2287
        %v2290 = vsel %vm1490, %v2286, 0
        %v2293 = vsel %vm1490, %v2288, 0
        %2295 = vmatprep.subr.bf16.mxu0 0
        %2296 = vmatpush1.bf16.xpose.msra.mxu0 %v2293
        %2297 = vmatprep.subr.bf16.mxu0 0
        %2298 = vmatpush1.bf16.xpose.msra.mxu0 0
        %2299 = vmatprep.subr.bf16.mxu0 0
        %2300 = vmatpush1.bf16.xpose.msra.mxu0 0
        %2301 = vmatprep.subr.bf16.mxu0 0
        %2302 = vmatpush1.bf16.xpose.msra.mxu0 0
        %2303 = vmatprep.subr.bf16.mxu0 0
        %2304 = vmatpush1.bf16.xpose.msra.mxu0 0
        %2305 = vmatprep.subr.bf16.mxu0 0
        %2306 = vmatpush1.bf16.xpose.msra.mxu0 0
        %2307 = vmatprep.subr.bf16.mxu0 0
        %2308 = vmatpush1.bf16.xpose.msra.mxu0 0
        %2309 = vmatprep.subr.bf16.mxu0 0
        %2310 = vmatpush1.bf16.xpose.msra.mxu0 0
        %2311 = vmatprep.subr.bf16.mxu0 0
        %2312 = vmatpush1.bf16.xpose.msra.mxu0 0
        %2313 = vmatprep.subr.bf16.mxu0 0
        %2314 = vmatpush1.bf16.xpose.msra.mxu0 0
        %2315 = vmatprep.subr.bf16.mxu0 0
        %2316 = vmatpush1.bf16.xpose.msra.mxu0 0
        %2317 = vmatprep.subr.bf16.mxu0 0
        %2318 = vmatpush1.bf16.xpose.msra.mxu0 0
        %2319 = vmatprep.subr.bf16.mxu0 0
        %2320 = vmatpush1.bf16.xpose.msra.mxu0 0
        %2321 = vmatprep.subr.bf16.mxu0 0
        %2322 = vmatpush1.bf16.xpose.msra.mxu0 0
        %2323 = vmatprep.subr.bf16.mxu0 0
        %2324 = vmatpush1.bf16.xpose.msra.mxu0 0
        %2325 = vmatprep.subr.bf16.mxu0 0
        %2326 = vmatpush1.bf16.xpose.msra.mxu0 0
        %2327 = vmatprep.mubr.bf16.mxu0 0
        %2328 = vmatmul.mubr.bf16.gmra.mrb[0].mxu0 %v2290
        %v2329 = vpop.f32.mrb[0].mxu0
        %v2330 = vadd.f32 0.0, %v2329
        %v2331 = vpop.f32.mrb[0].mxu0
        %v2332 = vpop.f32.mrb[0].mxu0
        %v2333 = vpop.f32.mrb[0].mxu0
        %2334 = vdwg.mxu0
        %v2335 = vsel %vm1490, %v2330, -inf
        %2336 = vmax.xlane.f32.xlu0 %v2335
        %v2337 = vpop.xlane.xlu0 %2336
        %v2338 = vsub.f32 %v2330, %v2337
        %v2339 = vmul.f32 %v2338, 1.442695
        %v2340 = vpow.pop %v2339
        %v2341 = vsel %vm1490, %v2340, 0.0
        %2342 = vadd.xlane.f32.xlu0 %v2341
        %v2343 = vpop.xlane.xlu0 %2342
        %v2344 = vrcp.pop %v2343
        %v2345 = vmul.f32 %v2340, %v2344
        %v2346 = vpack.c.bf16 %v2345, %v2345
        %2347 = vrot.lane.b32.xlu0 %v2007, 104
        %v2348 = vpop.permute.xlu0 %2347
        %v2350 = vsel %vm1490, %v2346, 0
        %v2353 = vsel %vm1552, %v2348, 0
        %2355 = vmatprep.subr.bf16.mxu0 0
        %2356 = vmatpush1.bf16.msra.mxu0 %v2353
        %2357 = vmatprep.subr.bf16.mxu0 0
        %2358 = vmatpush1.bf16.msra.mxu0 0
        %2359 = vmatprep.subr.bf16.mxu0 0
        %2360 = vmatpush1.bf16.msra.mxu0 0
        %2361 = vmatprep.subr.bf16.mxu0 0
        %2362 = vmatpush1.bf16.msra.mxu0 0
        %2363 = vmatprep.subr.bf16.mxu0 0
        %2364 = vmatpush1.bf16.msra.mxu0 0
        %2365 = vmatprep.subr.bf16.mxu0 0
        %2366 = vmatpush1.bf16.msra.mxu0 0
        %2367 = vmatprep.subr.bf16.mxu0 0
        %2368 = vmatpush1.bf16.msra.mxu0 0
        %2369 = vmatprep.subr.bf16.mxu0 0
        %2370 = vmatpush1.bf16.msra.mxu0 0
        %2371 = vmatprep.subr.bf16.mxu0 0
        %2372 = vmatpush1.bf16.msra.mxu0 0
        %2373 = vmatprep.subr.bf16.mxu0 0
        %2374 = vmatpush1.bf16.msra.mxu0 0
        %2375 = vmatprep.subr.bf16.mxu0 0
        %2376 = vmatpush1.bf16.msra.mxu0 0
        %2377 = vmatprep.subr.bf16.mxu0 0
        %2378 = vmatpush1.bf16.msra.mxu0 0
        %2379 = vmatprep.subr.bf16.mxu0 0
        %2380 = vmatpush1.bf16.msra.mxu0 0
        %2381 = vmatprep.subr.bf16.mxu0 0
        %2382 = vmatpush1.bf16.msra.mxu0 0
        %2383 = vmatprep.subr.bf16.mxu0 0
        %2384 = vmatpush1.bf16.msra.mxu0 0
        %2385 = vmatprep.subr.bf16.mxu0 0
        %2386 = vmatpush1.bf16.msra.mxu0 0
        %2387 = vmatprep.mubr.bf16.mxu0 0
        %2388 = vmatmul.mubr.bf16.gmra.mrb[0].mxu0 %v2350
        %v2389 = vpop.f32.mrb[0].mxu0
        %v2390 = vadd.f32 0.0, %v2389
        %v2391 = vpop.f32.mrb[0].mxu0
        %v2392 = vpop.f32.mrb[0].mxu0
        %v2393 = vpop.f32.mrb[0].mxu0
        %2394 = vdwg.mxu0
        %2396 = vrot.lane.b32.xlu0 %v2390, 24
        %v2397 = vpop.permute.xlu0 %2396
        %2399 = vst.msk [vmem:[#allocation3 + $0x8] sm:$0xff] %vm1944, %v2397
        %v2400 = vld [vmem:[#allocation3] sm:$0xff]
        %v2401 = vld [vmem:[#allocation3 + $0x8] sm:$0xff]
        %v2402 = vpack.c.bf16 %v2401, %v2400
        %v2404 = vlaneseq
        %v2405 = vshrl.u32 %v2404, 7
        %v2406 = vsub.s32 0, %v2405
        %v2407 = vrot.slane %v1484, %v2406
        %v2413 = vunpack.c.l.b16 %v1480
        %v2414 = vunpack.c.l.b16 %v1481
        %v2415 = vunpack.c.l.b16 %v1482
        %v2416 = vunpack.c.l.b16 %v1483
        %v2417 = vpack.c.b16 %v2414, %v2413
        %v2418 = vpack.c.b16 %v2416, %v2415
        %v2422 = vsel %vm1367, %v2402, 0
        %2424 = vmatprep.subr.bf16.mxu0 0
        %2425 = vmatpush1.bf16.msra.mxu0 %v2417
        %2426 = vmatprep.subr.bf16.mxu0 0
        %2427 = vmatpush1.bf16.msra.mxu0 %v2418
        %2428 = vmatprep.subr.bf16.mxu0 0
        %2429 = vmatpush1.bf16.msra.mxu0 0
        %2430 = vmatprep.subr.bf16.mxu0 0
        %2431 = vmatpush1.bf16.msra.mxu0 0
        %2432 = vmatprep.subr.bf16.mxu0 0
        %2433 = vmatpush1.bf16.msra.mxu0 0
        %2434 = vmatprep.subr.bf16.mxu0 0
        %2435 = vmatpush1.bf16.msra.mxu0 0
        %2436 = vmatprep.subr.bf16.mxu0 0
        %2437 = vmatpush1.bf16.msra.mxu0 0
        %2438 = vmatprep.subr.bf16.mxu0 0
        %2439 = vmatpush1.bf16.msra.mxu0 0
        %2440 = vmatprep.subr.bf16.mxu0 0
        %2441 = vmatpush1.bf16.msra.mxu0 0
        %2442 = vmatprep.subr.bf16.mxu0 0
        %2443 = vmatpush1.bf16.msra.mxu0 0
        %2444 = vmatprep.subr.bf16.mxu0 0
        %2445 = vmatpush1.bf16.msra.mxu0 0
        %2446 = vmatprep.subr.bf16.mxu0 0
        %2447 = vmatpush1.bf16.msra.mxu0 0
        %2448 = vmatprep.subr.bf16.mxu0 0
        %2449 = vmatpush1.bf16.msra.mxu0 0
        %2450 = vmatprep.subr.bf16.mxu0 0
        %2451 = vmatpush1.bf16.msra.mxu0 0
        %2452 = vmatprep.subr.bf16.mxu0 0
        %2453 = vmatpush1.bf16.msra.mxu0 0
        %2454 = vmatprep.subr.bf16.mxu0 0
        %2455 = vmatpush1.bf16.msra.mxu0 0
        %2456 = vmatprep.mubr.bf16.mxu0 0
        %2457 = vmatmul.mubr.bf16.gmra.mrb[0].mxu0 %v2422
        %v2458 = vpop.f32.mrb[0].mxu0
        %v2459 = vadd.f32 %v2407, %v2458
        %v2460 = vpop.f32.mrb[0].mxu0
        %v2461 = vpop.f32.mrb[0].mxu0
        %v2462 = vadd.f32 %v2407, %v2461
        %v2463 = vpop.f32.mrb[0].mxu0
        %2464 = vdwg.mxu0
        %v2465 = vadd.f32 %v1325, %v2459
        %v2466 = vadd.f32 %v1326, %v2462
        %v2467 = vld [vmem:[%s1299] sm:$0x1]
        %v2468 = vld [vmem:[%s1303] sm:$0x1]
        %v2469 = vsel %vm1367, %v2465, 0.0
        %2470 = vadd.xlane.f32.xlu0 %v2469
        %v2471 = vpop.xlane.xlu0 %2470
        %v2472 = vsel %vm1367, %v2466, 0.0
        %2473 = vadd.xlane.f32.xlu0 %v2472
        %v2474 = vpop.xlane.xlu0 %2473
        %v2475 = vrcp.pop 32.0
        %v2476 = vmul.f32 %v2471, %v2475
        %v2477 = vmul.f32 %v2474, %v2475
        %v2478 = vsub.f32 %v2465, %v2476
        %v2479 = vsub.f32 %v2466, %v2477
        %v2480 = vmul.f32 %v2478, %v2478
        %v2481 = vmul.f32 %v2479, %v2479
        %v2482 = vsel %vm1367, %v2480, 0.0
        %2483 = vadd.xlane.f32.xlu0 %v2482
        %v2484 = vpop.xlane.xlu0 %2483
        %v2485 = vsel %vm1367, %v2481, 0.0
        %2486 = vadd.xlane.f32.xlu0 %v2485
        %v2487 = vpop.xlane.xlu0 %2486
        %v2488 = vmul.f32 %v2484, %v2475
        %v2489 = vmul.f32 %v2487, %v2475
        %v2490 = vadd.f32 %v2488, 1e-05
        %v2491 = vadd.f32 %v2489, 1e-05
        %v2492 = vrsqrt.pop %v2490
        %v2493 = vrsqrt.pop %v2491
        %v2494 = vmul.f32 %v2478, %v2492
        %v2495 = vmul.f32 %v2479, %v2493
        %v2497 = vlaneseq
        %v2498 = vshrl.u32 %v2497, 7
        %v2499 = vsub.s32 0, %v2498
        %v2500 = vrot.slane %v2467, %v2499
        %v2502 = vmul.f32 %v2494, %v2500
        %v2503 = vmul.f32 %v2495, %v2500
        %v2505 = vlaneseq
        %v2506 = vshrl.u32 %v2505, 7
        %v2507 = vsub.s32 0, %v2506
        %v2508 = vrot.slane %v2468, %v2507
        %v2510 = vadd.f32 %v2502, %v2508
        %v2511 = vadd.f32 %v2503, %v2508
        %v2512 = vadd.f32 %v2510, %v1339
        %v2513 = vadd.f32 %v2511, %v1340
        %v2514 = vld [vmem:[%s1270] sm:$0xf]
        %v2515 = vld [vmem:[%s1270 + $0x4] sm:$0xf]
        %v2516 = vld [vmem:[%s1270 + $0x8] sm:$0xf]
        %v2517 = vld [vmem:[%s1270 + $0xc] sm:$0xf]
        %v2518 = vpack.c.bf16 %v2513, %v2512
        %v2519 = vld [vmem:[%s1006] sm:$0x1]
        %v2521 = vlaneseq
        %v2522 = vshrl.u32 %v2521, 7
        %v2523 = vsub.s32 0, %v2522
        %v2524 = vrot.slane %v2519, %v2523
        %v2530 = vunpack.c.l.b16 %v2514
        %v2531 = vunpack.c.l.b16 %v2515
        %v2532 = vunpack.c.l.b16 %v2516
        %v2533 = vunpack.c.l.b16 %v2517
        %v2534 = vpack.c.b16 %v2531, %v2530
        %v2535 = vpack.c.b16 %v2533, %v2532
        %v2539 = vsel %vm1367, %v2518, 0
        %2541 = vmatprep.subr.bf16.mxu0 0
        %2542 = vmatpush1.bf16.msra.mxu0 %v2534
        %2543 = vmatprep.subr.bf16.mxu0 0
        %2544 = vmatpush1.bf16.msra.mxu0 %v2535
        %2545 = vmatprep.subr.bf16.mxu0 0
        %2546 = vmatpush1.bf16.msra.mxu0 0
        %2547 = vmatprep.subr.bf16.mxu0 0
        %2548 = vmatpush1.bf16.msra.mxu0 0
        %2549 = vmatprep.subr.bf16.mxu0 0
        %2550 = vmatpush1.bf16.msra.mxu0 0
        %2551 = vmatprep.subr.bf16.mxu0 0
        %2552 = vmatpush1.bf16.msra.mxu0 0
        %2553 = vmatprep.subr.bf16.mxu0 0
        %2554 = vmatpush1.bf16.msra.mxu0 0
        %2555 = vmatprep.subr.bf16.mxu0 0
        %2556 = vmatpush1.bf16.msra.mxu0 0
        %2557 = vmatprep.subr.bf16.mxu0 0
        %2558 = vmatpush1.bf16.msra.mxu0 0
        %2559 = vmatprep.subr.bf16.mxu0 0
        %2560 = vmatpush1.bf16.msra.mxu0 0
        %2561 = vmatprep.subr.bf16.mxu0 0
        %2562 = vmatpush1.bf16.msra.mxu0 0
        %2563 = vmatprep.subr.bf16.mxu0 0
        %2564 = vmatpush1.bf16.msra.mxu0 0
        %2565 = vmatprep.subr.bf16.mxu0 0
        %2566 = vmatpush1.bf16.msra.mxu0 0
        %2567 = vmatprep.subr.bf16.mxu0 0
        %2568 = vmatpush1.bf16.msra.mxu0 0
        %2569 = vmatprep.subr.bf16.mxu0 0
        %2570 = vmatpush1.bf16.msra.mxu0 0
        %2571 = vmatprep.subr.bf16.mxu0 0
        %2572 = vmatpush1.bf16.msra.mxu0 0
        %2573 = vmatprep.mubr.bf16.mxu0 0
        %2574 = vmatmul.mubr.bf16.gmra.mrb[0].mxu0 %v2539
        %v2575 = vpop.f32.mrb[0].mxu0
        %v2576 = vadd.f32 %v2524, %v2575
        %v2577 = vpop.f32.mrb[0].mxu0
        %v2578 = vpop.f32.mrb[0].mxu0
        %v2579 = vadd.f32 %v2524, %v2578
        %v2580 = vpop.f32.mrb[0].mxu0
        %2581 = vdwg.mxu0
        %v2582 = vld [vmem:[%s1275] sm:$0xf]
        %v2583 = vld [vmem:[%s1275 + $0x4] sm:$0xf]
        %v2584 = vld [vmem:[%s1275 + $0x8] sm:$0xf]
        %v2585 = vld [vmem:[%s1275 + $0xc] sm:$0xf]
        %v2586 = vpack.c.bf16 %v1336, %v1335
        %v2587 = vpack.c.bf16 %v1338, %v1337
        %v2588 = vld [vmem:[%s1014] sm:$0x1]
        %v2590 = vlaneseq
        %v2591 = vshrl.u32 %v2590, 7
        %v2592 = vsub.s32 0, %v2591
        %v2593 = vrot.slane %v2588, %v2592
        %v2599 = vunpack.c.l.b16 %v2582
        %v2600 = vunpack.c.l.b16 %v2583
        %v2601 = vunpack.c.l.b16 %v2584
        %v2602 = vunpack.c.l.b16 %v2585
        %v2603 = vpack.c.b16 %v2600, %v2599
        %v2604 = vpack.c.b16 %v2602, %v2601
        %v2608 = vsel %vm1367, %v2586, 0
        %v2611 = vsel %vm1367, %v2587, 0
        %2613 = vmatprep.subr.bf16.mxu0 0
        %2614 = vmatpush1.bf16.msra.mxu0 %v2603
        %2615 = vmatprep.subr.bf16.mxu0 0
        %2616 = vmatpush1.bf16.msra.mxu0 %v2604
        %2617 = vmatprep.subr.bf16.mxu0 0
        %2618 = vmatpush1.bf16.msra.mxu0 0
        %2619 = vmatprep.subr.bf16.mxu0 0
        %2620 = vmatpush1.bf16.msra.mxu0 0
        %2621 = vmatprep.subr.bf16.mxu0 0
        %2622 = vmatpush1.bf16.msra.mxu0 0
        %2623 = vmatprep.subr.bf16.mxu0 0
        %2624 = vmatpush1.bf16.msra.mxu0 0
        %2625 = vmatprep.subr.bf16.mxu0 0
        %2626 = vmatpush1.bf16.msra.mxu0 0
        %2627 = vmatprep.subr.bf16.mxu0 0
        %2628 = vmatpush1.bf16.msra.mxu0 0
        %2629 = vmatprep.subr.bf16.mxu0 0
        %2630 = vmatpush1.bf16.msra.mxu0 0
        %2631 = vmatprep.subr.bf16.mxu0 0
        %2632 = vmatpush1.bf16.msra.mxu0 0
        %2633 = vmatprep.subr.bf16.mxu0 0
        %2634 = vmatpush1.bf16.msra.mxu0 0
        %2635 = vmatprep.subr.bf16.mxu0 0
        %2636 = vmatpush1.bf16.msra.mxu0 0
        %2637 = vmatprep.subr.bf16.mxu0 0
        %2638 = vmatpush1.bf16.msra.mxu0 0
        %2639 = vmatprep.subr.bf16.mxu0 0
        %2640 = vmatpush1.bf16.msra.mxu0 0
        %2641 = vmatprep.subr.bf16.mxu0 0
        %2642 = vmatpush1.bf16.msra.mxu0 0
        %2643 = vmatprep.subr.bf16.mxu0 0
        %2644 = vmatpush1.bf16.msra.mxu0 0
        %2645 = vmatprep.mubr.bf16.mxu0 0
        %2646 = vmatmul.mubr.bf16.gmra.mrb[0].mxu0 %v2608
        %v2647 = vpop.f32.mrb[0].mxu0
        %v2648 = vadd.f32 %v2593, %v2647
        %v2649 = vpop.f32.mrb[0].mxu0
        %v2650 = vpop.f32.mrb[0].mxu0
        %v2651 = vadd.f32 %v2593, %v2650
        %v2652 = vpop.f32.mrb[0].mxu0
        %2653 = vmatprep.mubr.bf16.mxu0 0
        %2654 = vmatmul.mubr.bf16.gmra.mrb[0].mxu0 %v2611
        %v2655 = vpop.f32.mrb[0].mxu0
        %v2656 = vadd.f32 %v2593, %v2655
        %v2657 = vpop.f32.mrb[0].mxu0
        %v2658 = vpop.f32.mrb[0].mxu0
        %v2659 = vadd.f32 %v2593, %v2658
        %v2660 = vpop.f32.mrb[0].mxu0
        %2661 = vdwg.mxu0
        %v2662 = vld [vmem:[%s1280] sm:$0xf]
        %v2663 = vld [vmem:[%s1280 + $0x4] sm:$0xf]
        %v2664 = vld [vmem:[%s1280 + $0x8] sm:$0xf]
        %v2665 = vld [vmem:[%s1280 + $0xc] sm:$0xf]
        %v2666 = vpack.c.bf16 %v1328, %v1327
        %v2667 = vpack.c.bf16 %v1330, %v1329
        %v2668 = vld [vmem:[%s1022] sm:$0x1]
        %v2670 = vlaneseq
        %v2671 = vshrl.u32 %v2670, 7
        %v2672 = vsub.s32 0, %v2671
        %v2673 = vrot.slane %v2668, %v2672
        %v2679 = vunpack.c.l.b16 %v2662
        %v2680 = vunpack.c.l.b16 %v2663
        %v2681 = vunpack.c.l.b16 %v2664
        %v2682 = vunpack.c.l.b16 %v2665
        %v2683 = vpack.c.b16 %v2680, %v2679
        %v2684 = vpack.c.b16 %v2682, %v2681
        %v2688 = vsel %vm1367, %v2666, 0
        %v2691 = vsel %vm1367, %v2667, 0
        %2693 = vmatprep.subr.bf16.mxu0 0
        %2694 = vmatpush1.bf16.msra.mxu0 %v2683
        %2695 = vmatprep.subr.bf16.mxu0 0
        %2696 = vmatpush1.bf16.msra.mxu0 %v2684
        %2697 = vmatprep.subr.bf16.mxu0 0
        %2698 = vmatpush1.bf16.msra.mxu0 0
        %2699 = vmatprep.subr.bf16.mxu0 0
        %2700 = vmatpush1.bf16.msra.mxu0 0
        %2701 = vmatprep.subr.bf16.mxu0 0
        %2702 = vmatpush1.bf16.msra.mxu0 0
        %2703 = vmatprep.subr.bf16.mxu0 0
        %2704 = vmatpush1.bf16.msra.mxu0 0
        %2705 = vmatprep.subr.bf16.mxu0 0
        %2706 = vmatpush1.bf16.msra.mxu0 0
        %2707 = vmatprep.subr.bf16.mxu0 0
        %2708 = vmatpush1.bf16.msra.mxu0 0
        %2709 = vmatprep.subr.bf16.mxu0 0
        %2710 = vmatpush1.bf16.msra.mxu0 0
        %2711 = vmatprep.subr.bf16.mxu0 0
        %2712 = vmatpush1.bf16.msra.mxu0 0
        %2713 = vmatprep.subr.bf16.mxu0 0
        %2714 = vmatpush1.bf16.msra.mxu0 0
        %2715 = vmatprep.subr.bf16.mxu0 0
        %2716 = vmatpush1.bf16.msra.mxu0 0
        %2717 = vmatprep.subr.bf16.mxu0 0
        %2718 = vmatpush1.bf16.msra.mxu0 0
        %2719 = vmatprep.subr.bf16.mxu0 0
        %2720 = vmatpush1.bf16.msra.mxu0 0
        %2721 = vmatprep.subr.bf16.mxu0 0
        %2722 = vmatpush1.bf16.msra.mxu0 0
        %2723 = vmatprep.subr.bf16.mxu0 0
        %2724 = vmatpush1.bf16.msra.mxu0 0
        %2725 = vmatprep.mubr.bf16.mxu0 0
        %2726 = vmatmul.mubr.bf16.gmra.mrb[0].mxu0 %v2688
        %v2727 = vpop.f32.mrb[0].mxu0
        %v2728 = vadd.f32 %v2673, %v2727
        %v2729 = vpop.f32.mrb[0].mxu0
        %v2730 = vpop.f32.mrb[0].mxu0
        %v2731 = vadd.f32 %v2673, %v2730
        %v2732 = vpop.f32.mrb[0].mxu0
        %2733 = vmatprep.mubr.bf16.mxu0 0
        %2734 = vmatmul.mubr.bf16.gmra.mrb[0].mxu0 %v2691
        %v2735 = vpop.f32.mrb[0].mxu0
        %v2736 = vadd.f32 %v2673, %v2735
        %v2737 = vpop.f32.mrb[0].mxu0
        %v2738 = vpop.f32.mrb[0].mxu0
        %v2739 = vadd.f32 %v2673, %v2738
        %v2740 = vpop.f32.mrb[0].mxu0
        %2741 = vdwg.mxu0
        %v2742 = vld [vmem:[%s1285] sm:$0xf]
        %v2743 = vld [vmem:[%s1285 + $0x4] sm:$0xf]
        %v2744 = vld [vmem:[%s1285 + $0x8] sm:$0xf]
        %v2745 = vld [vmem:[%s1285 + $0xc] sm:$0xf]
        %v2746 = vld [vmem:[%s1030] sm:$0x1]
        %v2747 = vpack.c.bf16 %v2579, %v2576
        %v2748 = vpack.c.bf16 %v2651, %v2648
        %v2749 = vpack.c.bf16 %v2659, %v2656
        %v2750 = vpack.c.bf16 %v2731, %v2728
        %v2751 = vpack.c.bf16 %v2739, %v2736
        %v2753 = vsel %vm1490, %v2747, 0
        %v2756 = vsel %vm1490, %v2748, 0
        %2758 = vmatprep.subr.bf16.mxu0 0
        %2759 = vmatpush1.bf16.xpose.msra.mxu0 %v2756
        %2760 = vmatprep.subr.bf16.mxu0 0
        %2761 = vmatpush1.bf16.xpose.msra.mxu0 0
        %2762 = vmatprep.subr.bf16.mxu0 0
        %2763 = vmatpush1.bf16.xpose.msra.mxu0 0
        %2764 = vmatprep.subr.bf16.mxu0 0
        %2765 = vmatpush1.bf16.xpose.msra.mxu0 0
        %2766 = vmatprep.subr.bf16.mxu0 0
        %2767 = vmatpush1.bf16.xpose.msra.mxu0 0
        %2768 = vmatprep.subr.bf16.mxu0 0
        %2769 = vmatpush1.bf16.xpose.msra.mxu0 0
        %2770 = vmatprep.subr.bf16.mxu0 0
        %2771 = vmatpush1.bf16.xpose.msra.mxu0 0
        %2772 = vmatprep.subr.bf16.mxu0 0
        %2773 = vmatpush1.bf16.xpose.msra.mxu0 0
        %2774 = vmatprep.subr.bf16.mxu0 0
        %2775 = vmatpush1.bf16.xpose.msra.mxu0 0
        %2776 = vmatprep.subr.bf16.mxu0 0
        %2777 = vmatpush1.bf16.xpose.msra.mxu0 0
        %2778 = vmatprep.subr.bf16.mxu0 0
        %2779 = vmatpush1.bf16.xpose.msra.mxu0 0
        %2780 = vmatprep.subr.bf16.mxu0 0
        %2781 = vmatpush1.bf16.xpose.msra.mxu0 0
        %2782 = vmatprep.subr.bf16.mxu0 0
        %2783 = vmatpush1.bf16.xpose.msra.mxu0 0
        %2784 = vmatprep.subr.bf16.mxu0 0
        %2785 = vmatpush1.bf16.xpose.msra.mxu0 0
        %2786 = vmatprep.subr.bf16.mxu0 0
        %2787 = vmatpush1.bf16.xpose.msra.mxu0 0
        %2788 = vmatprep.subr.bf16.mxu0 0
        %2789 = vmatpush1.bf16.xpose.msra.mxu0 0
        %2790 = vmatprep.mubr.bf16.mxu0 0
        %2791 = vmatmul.mubr.bf16.gmra.mrb[0].mxu0 %v2753
        %v2792 = vpop.f32.mrb[0].mxu0
        %v2793 = vadd.f32 0.0, %v2792
        %v2794 = vpop.f32.mrb[0].mxu0
        %v2795 = vpop.f32.mrb[0].mxu0
        %v2796 = vpop.f32.mrb[0].mxu0
        %2797 = vdwg.mxu0
        %vm2798 = vcmask 130048
        %v2799 = vsel %vm2798, %v2793, -inf
        %2800 = vmax.xlane.f32.xlu0 %v2799
        %v2801 = vpop.xlane.xlu0 %2800
        %v2802 = vsub.f32 %v2793, %v2801
        %v2803 = vmul.f32 %v2802, 1.442695
        %v2804 = vpow.pop %v2803
        %v2805 = vsel %vm2798, %v2804, 0.0
        %2806 = vadd.xlane.f32.xlu0 %v2805
        %v2807 = vpop.xlane.xlu0 %2806
        %v2808 = vrcp.pop %v2807
        %v2809 = vmul.f32 %v2804, %v2808
        %v2810 = vpack.c.bf16 %v2809, %v2809
        %v2812 = vsel %vm2798, %v2810, 0
        %2814 = vmatprep.subr.bf16.mxu0 0
        %2815 = vmatpush1.bf16.msra.mxu0 %v2750
        %2816 = vmatprep.subr.bf16.mxu0 0
        %2817 = vmatpush1.bf16.msra.mxu0 0
        %2818 = vmatprep.subr.bf16.mxu0 0
        %2819 = vmatpush1.bf16.msra.mxu0 0
        %2820 = vmatprep.subr.bf16.mxu0 0
        %2821 = vmatpush1.bf16.msra.mxu0 0
        %2822 = vmatprep.subr.bf16.mxu0 0
        %2823 = vmatpush1.bf16.msra.mxu0 0
        %2824 = vmatprep.subr.bf16.mxu0 0
        %2825 = vmatpush1.bf16.msra.mxu0 0
        %2826 = vmatprep.subr.bf16.mxu0 0
        %2827 = vmatpush1.bf16.msra.mxu0 0
        %2828 = vmatprep.subr.bf16.mxu0 0
        %2829 = vmatpush1.bf16.msra.mxu0 0
        %2830 = vmatprep.subr.bf16.mxu0 0
        %2831 = vmatpush1.bf16.msra.mxu0 0
        %2832 = vmatprep.subr.bf16.mxu0 0
        %2833 = vmatpush1.bf16.msra.mxu0 0
        %2834 = vmatprep.subr.bf16.mxu0 0
        %2835 = vmatpush1.bf16.msra.mxu0 0
        %2836 = vmatprep.subr.bf16.mxu0 0
        %2837 = vmatpush1.bf16.msra.mxu0 0
        %2838 = vmatprep.subr.bf16.mxu0 0
        %2839 = vmatpush1.bf16.msra.mxu0 0
        %2840 = vmatprep.subr.bf16.mxu0 0
        %2841 = vmatpush1.bf16.msra.mxu0 0
        %2842 = vmatprep.subr.bf16.mxu0 0
        %2843 = vmatpush1.bf16.msra.mxu0 0
        %2844 = vmatprep.subr.bf16.mxu0 0
        %2845 = vmatpush1.bf16.msra.mxu0 0
        %2846 = vmatprep.mubr.bf16.mxu0 0
        %2847 = vmatmul.mubr.bf16.gmra.mrb[0].mxu0 %v2812
        %v2848 = vpop.f32.mrb[0].mxu0
        %v2849 = vadd.f32 0.0, %v2848
        %v2850 = vpop.f32.mrb[0].mxu0
        %v2851 = vpop.f32.mrb[0].mxu0
        %v2852 = vpop.f32.mrb[0].mxu0
        %2853 = vdwg.mxu0
        %2854 = vst.msk [vmem:[#allocation3] sm:$0xff] %vm1490, %v2849
        %2856 = vrot.lane.b32.xlu0 %v2747, 120
        %v2857 = vpop.permute.xlu0 %2856
        %2859 = vrot.lane.b32.xlu0 %v2748, 120
        %v2860 = vpop.permute.xlu0 %2859
        %v2862 = vsel %vm1490, %v2857, 0
        %v2865 = vsel %vm1490, %v2860, 0
        %2867 = vmatprep.subr.bf16.mxu0 0
        %2868 = vmatpush1.bf16.xpose.msra.mxu0 %v2865
        %2869 = vmatprep.subr.bf16.mxu0 0
        %2870 = vmatpush1.bf16.xpose.msra.mxu0 0
        %2871 = vmatprep.subr.bf16.mxu0 0
        %2872 = vmatpush1.bf16.xpose.msra.mxu0 0
        %2873 = vmatprep.subr.bf16.mxu0 0
        %2874 = vmatpush1.bf16.xpose.msra.mxu0 0
        %2875 = vmatprep.subr.bf16.mxu0 0
        %2876 = vmatpush1.bf16.xpose.msra.mxu0 0
        %2877 = vmatprep.subr.bf16.mxu0 0
        %2878 = vmatpush1.bf16.xpose.msra.mxu0 0
        %2879 = vmatprep.subr.bf16.mxu0 0
        %2880 = vmatpush1.bf16.xpose.msra.mxu0 0
        %2881 = vmatprep.subr.bf16.mxu0 0
        %2882 = vmatpush1.bf16.xpose.msra.mxu0 0
        %2883 = vmatprep.subr.bf16.mxu0 0
        %2884 = vmatpush1.bf16.xpose.msra.mxu0 0
        %2885 = vmatprep.subr.bf16.mxu0 0
        %2886 = vmatpush1.bf16.xpose.msra.mxu0 0
        %2887 = vmatprep.subr.bf16.mxu0 0
        %2888 = vmatpush1.bf16.xpose.msra.mxu0 0
        %2889 = vmatprep.subr.bf16.mxu0 0
        %2890 = vmatpush1.bf16.xpose.msra.mxu0 0
        %2891 = vmatprep.subr.bf16.mxu0 0
        %2892 = vmatpush1.bf16.xpose.msra.mxu0 0
        %2893 = vmatprep.subr.bf16.mxu0 0
        %2894 = vmatpush1.bf16.xpose.msra.mxu0 0
        %2895 = vmatprep.subr.bf16.mxu0 0
        %2896 = vmatpush1.bf16.xpose.msra.mxu0 0
        %2897 = vmatprep.subr.bf16.mxu0 0
        %2898 = vmatpush1.bf16.xpose.msra.mxu0 0
        %2899 = vmatprep.mubr.bf16.mxu0 0
        %2900 = vmatmul.mubr.bf16.gmra.mrb[0].mxu0 %v2862
        %v2901 = vpop.f32.mrb[0].mxu0
        %v2902 = vadd.f32 0.0, %v2901
        %v2903 = vpop.f32.mrb[0].mxu0
        %v2904 = vpop.f32.mrb[0].mxu0
        %v2905 = vpop.f32.mrb[0].mxu0
        %2906 = vdwg.mxu0
        %v2907 = vsel %vm2798, %v2902, -inf
        %2908 = vmax.xlane.f32.xlu0 %v2907
        %v2909 = vpop.xlane.xlu0 %2908
        %v2910 = vsub.f32 %v2902, %v2909
        %v2911 = vmul.f32 %v2910, 1.442695
        %v2912 = vpow.pop %v2911
        %v2913 = vsel %vm2798, %v2912, 0.0
        %2914 = vadd.xlane.f32.xlu0 %v2913
        %v2915 = vpop.xlane.xlu0 %2914
        %v2916 = vrcp.pop %v2915
        %v2917 = vmul.f32 %v2912, %v2916
        %v2918 = vpack.c.bf16 %v2917, %v2917
        %2920 = vrot.lane.b32.xlu0 %v2750, 120
        %v2921 = vpop.permute.xlu0 %2920
        %v2924 = vsel %vm2798, %v2918, 0
        %2926 = vmatprep.subr.bf16.mxu0 0
        %2927 = vmatpush1.bf16.msra.mxu0 %v2921
        %2928 = vmatprep.subr.bf16.mxu0 0
        %2929 = vmatpush1.bf16.msra.mxu0 0
        %2930 = vmatprep.subr.bf16.mxu0 0
        %2931 = vmatpush1.bf16.msra.mxu0 0
        %2932 = vmatprep.subr.bf16.mxu0 0
        %2933 = vmatpush1.bf16.msra.mxu0 0
        %2934 = vmatprep.subr.bf16.mxu0 0
        %2935 = vmatpush1.bf16.msra.mxu0 0
        %2936 = vmatprep.subr.bf16.mxu0 0
        %2937 = vmatpush1.bf16.msra.mxu0 0
        %2938 = vmatprep.subr.bf16.mxu0 0
        %2939 = vmatpush1.bf16.msra.mxu0 0
        %2940 = vmatprep.subr.bf16.mxu0 0
        %2941 = vmatpush1.bf16.msra.mxu0 0
        %2942 = vmatprep.subr.bf16.mxu0 0
        %2943 = vmatpush1.bf16.msra.mxu0 0
        %2944 = vmatprep.subr.bf16.mxu0 0
        %2945 = vmatpush1.bf16.msra.mxu0 0
        %2946 = vmatprep.subr.bf16.mxu0 0
        %2947 = vmatpush1.bf16.msra.mxu0 0
        %2948 = vmatprep.subr.bf16.mxu0 0
        %2949 = vmatpush1.bf16.msra.mxu0 0
        %2950 = vmatprep.subr.bf16.mxu0 0
        %2951 = vmatpush1.bf16.msra.mxu0 0
        %2952 = vmatprep.subr.bf16.mxu0 0
        %2953 = vmatpush1.bf16.msra.mxu0 0
        %2954 = vmatprep.subr.bf16.mxu0 0
        %2955 = vmatpush1.bf16.msra.mxu0 0
        %2956 = vmatprep.subr.bf16.mxu0 0
        %2957 = vmatpush1.bf16.msra.mxu0 0
        %2958 = vmatprep.mubr.bf16.mxu0 0
        %2959 = vmatmul.mubr.bf16.gmra.mrb[0].mxu0 %v2924
        %v2960 = vpop.f32.mrb[0].mxu0
        %v2961 = vadd.f32 0.0, %v2960
        %v2962 = vpop.f32.mrb[0].mxu0
        %v2963 = vpop.f32.mrb[0].mxu0
        %v2964 = vpop.f32.mrb[0].mxu0
        %2965 = vdwg.mxu0
        %2967 = vrot.lane.b32.xlu0 %v2961, 8
        %v2968 = vpop.permute.xlu0 %2967
        %2970 = vst.msk [vmem:[#allocation3] sm:$0xff] %vm1712, %v2968
        %2971 = vrot.lane.b32.xlu0 %v2747, 112
        %v2972 = vpop.permute.xlu0 %2971
        %2973 = vrot.lane.b32.xlu0 %v2748, 112
        %v2974 = vpop.permute.xlu0 %2973
        %v2976 = vsel %vm1490, %v2972, 0
        %v2979 = vsel %vm1490, %v2974, 0
        %2981 = vmatprep.subr.bf16.mxu0 0
        %2982 = vmatpush1.bf16.xpose.msra.mxu0 %v2979
        %2983 = vmatprep.subr.bf16.mxu0 0
        %2984 = vmatpush1.bf16.xpose.msra.mxu0 0
        %2985 = vmatprep.subr.bf16.mxu0 0
        %2986 = vmatpush1.bf16.xpose.msra.mxu0 0
        %2987 = vmatprep.subr.bf16.mxu0 0
        %2988 = vmatpush1.bf16.xpose.msra.mxu0 0
        %2989 = vmatprep.subr.bf16.mxu0 0
        %2990 = vmatpush1.bf16.xpose.msra.mxu0 0
        %2991 = vmatprep.subr.bf16.mxu0 0
        %2992 = vmatpush1.bf16.xpose.msra.mxu0 0
        %2993 = vmatprep.subr.bf16.mxu0 0
        %2994 = vmatpush1.bf16.xpose.msra.mxu0 0
        %2995 = vmatprep.subr.bf16.mxu0 0
        %2996 = vmatpush1.bf16.xpose.msra.mxu0 0
        %2997 = vmatprep.subr.bf16.mxu0 0
        %2998 = vmatpush1.bf16.xpose.msra.mxu0 0
        %2999 = vmatprep.subr.bf16.mxu0 0
        %3000 = vmatpush1.bf16.xpose.msra.mxu0 0
        %3001 = vmatprep.subr.bf16.mxu0 0
        %3002 = vmatpush1.bf16.xpose.msra.mxu0 0
        %3003 = vmatprep.subr.bf16.mxu0 0
        %3004 = vmatpush1.bf16.xpose.msra.mxu0 0
        %3005 = vmatprep.subr.bf16.mxu0 0
        %3006 = vmatpush1.bf16.xpose.msra.mxu0 0
        %3007 = vmatprep.subr.bf16.mxu0 0
        %3008 = vmatpush1.bf16.xpose.msra.mxu0 0
        %3009 = vmatprep.subr.bf16.mxu0 0
        %3010 = vmatpush1.bf16.xpose.msra.mxu0 0
        %3011 = vmatprep.subr.bf16.mxu0 0
        %3012 = vmatpush1.bf16.xpose.msra.mxu0 0
        %3013 = vmatprep.mubr.bf16.mxu0 0
        %3014 = vmatmul.mubr.bf16.gmra.mrb[0].mxu0 %v2976
        %v3015 = vpop.f32.mrb[0].mxu0
        %v3016 = vadd.f32 0.0, %v3015
        %v3017 = vpop.f32.mrb[0].mxu0
        %v3018 = vpop.f32.mrb[0].mxu0
        %v3019 = vpop.f32.mrb[0].mxu0
        %3020 = vdwg.mxu0
        %v3021 = vsel %vm2798, %v3016, -inf
        %3022 = vmax.xlane.f32.xlu0 %v3021
        %v3023 = vpop.xlane.xlu0 %3022
        %v3024 = vsub.f32 %v3016, %v3023
        %v3025 = vmul.f32 %v3024, 1.442695
        %v3026 = vpow.pop %v3025
        %v3027 = vsel %vm2798, %v3026, 0.0
        %3028 = vadd.xlane.f32.xlu0 %v3027
        %v3029 = vpop.xlane.xlu0 %3028
        %v3030 = vrcp.pop %v3029
        %v3031 = vmul.f32 %v3026, %v3030
        %v3032 = vpack.c.bf16 %v3031, %v3031
        %3033 = vrot.lane.b32.xlu0 %v2750, 112
        %v3034 = vpop.permute.xlu0 %3033
        %v3037 = vsel %vm2798, %v3032, 0
        %3039 = vmatprep.subr.bf16.mxu0 0
        %3040 = vmatpush1.bf16.msra.mxu0 %v3034
        %3041 = vmatprep.subr.bf16.mxu0 0
        %3042 = vmatpush1.bf16.msra.mxu0 0
        %3043 = vmatprep.subr.bf16.mxu0 0
        %3044 = vmatpush1.bf16.msra.mxu0 0
        %3045 = vmatprep.subr.bf16.mxu0 0
        %3046 = vmatpush1.bf16.msra.mxu0 0
        %3047 = vmatprep.subr.bf16.mxu0 0
        %3048 = vmatpush1.bf16.msra.mxu0 0
        %3049 = vmatprep.subr.bf16.mxu0 0
        %3050 = vmatpush1.bf16.msra.mxu0 0
        %3051 = vmatprep.subr.bf16.mxu0 0
        %3052 = vmatpush1.bf16.msra.mxu0 0
        %3053 = vmatprep.subr.bf16.mxu0 0
        %3054 = vmatpush1.bf16.msra.mxu0 0
        %3055 = vmatprep.subr.bf16.mxu0 0
        %3056 = vmatpush1.bf16.msra.mxu0 0
        %3057 = vmatprep.subr.bf16.mxu0 0
        %3058 = vmatpush1.bf16.msra.mxu0 0
        %3059 = vmatprep.subr.bf16.mxu0 0
        %3060 = vmatpush1.bf16.msra.mxu0 0
        %3061 = vmatprep.subr.bf16.mxu0 0
        %3062 = vmatpush1.bf16.msra.mxu0 0
        %3063 = vmatprep.subr.bf16.mxu0 0
        %3064 = vmatpush1.bf16.msra.mxu0 0
        %3065 = vmatprep.subr.bf16.mxu0 0
        %3066 = vmatpush1.bf16.msra.mxu0 0
        %3067 = vmatprep.subr.bf16.mxu0 0
        %3068 = vmatpush1.bf16.msra.mxu0 0
        %3069 = vmatprep.subr.bf16.mxu0 0
        %3070 = vmatpush1.bf16.msra.mxu0 0
        %3071 = vmatprep.mubr.bf16.mxu0 0
        %3072 = vmatmul.mubr.bf16.gmra.mrb[0].mxu0 %v3037
        %v3073 = vpop.f32.mrb[0].mxu0
        %v3074 = vadd.f32 0.0, %v3073
        %v3075 = vpop.f32.mrb[0].mxu0
        %v3076 = vpop.f32.mrb[0].mxu0
        %v3077 = vpop.f32.mrb[0].mxu0
        %3078 = vdwg.mxu0
        %3080 = vrot.lane.b32.xlu0 %v3074, 16
        %v3081 = vpop.permute.xlu0 %3080
        %3083 = vst.msk [vmem:[#allocation3] sm:$0xff] %vm1828, %v3081
        %3084 = vrot.lane.b32.xlu0 %v2747, 104
        %v3085 = vpop.permute.xlu0 %3084
        %3086 = vrot.lane.b32.xlu0 %v2748, 104
        %v3087 = vpop.permute.xlu0 %3086
        %v3089 = vsel %vm1490, %v3085, 0
        %v3092 = vsel %vm1490, %v3087, 0
        %3094 = vmatprep.subr.bf16.mxu0 0
        %3095 = vmatpush1.bf16.xpose.msra.mxu0 %v3092
        %3096 = vmatprep.subr.bf16.mxu0 0
        %3097 = vmatpush1.bf16.xpose.msra.mxu0 0
        %3098 = vmatprep.subr.bf16.mxu0 0
        %3099 = vmatpush1.bf16.xpose.msra.mxu0 0
        %3100 = vmatprep.subr.bf16.mxu0 0
        %3101 = vmatpush1.bf16.xpose.msra.mxu0 0
        %3102 = vmatprep.subr.bf16.mxu0 0
        %3103 = vmatpush1.bf16.xpose.msra.mxu0 0
        %3104 = vmatprep.subr.bf16.mxu0 0
        %3105 = vmatpush1.bf16.xpose.msra.mxu0 0
        %3106 = vmatprep.subr.bf16.mxu0 0
        %3107 = vmatpush1.bf16.xpose.msra.mxu0 0
        %3108 = vmatprep.subr.bf16.mxu0 0
        %3109 = vmatpush1.bf16.xpose.msra.mxu0 0
        %3110 = vmatprep.subr.bf16.mxu0 0
        %3111 = vmatpush1.bf16.xpose.msra.mxu0 0
        %3112 = vmatprep.subr.bf16.mxu0 0
        %3113 = vmatpush1.bf16.xpose.msra.mxu0 0
        %3114 = vmatprep.subr.bf16.mxu0 0
        %3115 = vmatpush1.bf16.xpose.msra.mxu0 0
        %3116 = vmatprep.subr.bf16.mxu0 0
        %3117 = vmatpush1.bf16.xpose.msra.mxu0 0
        %3118 = vmatprep.subr.bf16.mxu0 0
        %3119 = vmatpush1.bf16.xpose.msra.mxu0 0
        %3120 = vmatprep.subr.bf16.mxu0 0
        %3121 = vmatpush1.bf16.xpose.msra.mxu0 0
        %3122 = vmatprep.subr.bf16.mxu0 0
        %3123 = vmatpush1.bf16.xpose.msra.mxu0 0
        %3124 = vmatprep.subr.bf16.mxu0 0
        %3125 = vmatpush1.bf16.xpose.msra.mxu0 0
        %3126 = vmatprep.mubr.bf16.mxu0 0
        %3127 = vmatmul.mubr.bf16.gmra.mrb[0].mxu0 %v3089
        %v3128 = vpop.f32.mrb[0].mxu0
        %v3129 = vadd.f32 0.0, %v3128
        %v3130 = vpop.f32.mrb[0].mxu0
        %v3131 = vpop.f32.mrb[0].mxu0
        %v3132 = vpop.f32.mrb[0].mxu0
        %3133 = vdwg.mxu0
        %v3134 = vsel %vm2798, %v3129, -inf
        %3135 = vmax.xlane.f32.xlu0 %v3134
        %v3136 = vpop.xlane.xlu0 %3135
        %v3137 = vsub.f32 %v3129, %v3136
        %v3138 = vmul.f32 %v3137, 1.442695
        %v3139 = vpow.pop %v3138
        %v3140 = vsel %vm2798, %v3139, 0.0
        %3141 = vadd.xlane.f32.xlu0 %v3140
        %v3142 = vpop.xlane.xlu0 %3141
        %v3143 = vrcp.pop %v3142
        %v3144 = vmul.f32 %v3139, %v3143
        %v3145 = vpack.c.bf16 %v3144, %v3144
        %3146 = vrot.lane.b32.xlu0 %v2750, 104
        %v3147 = vpop.permute.xlu0 %3146
        %v3150 = vsel %vm2798, %v3145, 0
        %3152 = vmatprep.subr.bf16.mxu0 0
        %3153 = vmatpush1.bf16.msra.mxu0 %v3147
        %3154 = vmatprep.subr.bf16.mxu0 0
        %3155 = vmatpush1.bf16.msra.mxu0 0
        %3156 = vmatprep.subr.bf16.mxu0 0
        %3157 = vmatpush1.bf16.msra.mxu0 0
        %3158 = vmatprep.subr.bf16.mxu0 0
        %3159 = vmatpush1.bf16.msra.mxu0 0
        %3160 = vmatprep.subr.bf16.mxu0 0
        %3161 = vmatpush1.bf16.msra.mxu0 0
        %3162 = vmatprep.subr.bf16.mxu0 0
        %3163 = vmatpush1.bf16.msra.mxu0 0
        %3164 = vmatprep.subr.bf16.mxu0 0
        %3165 = vmatpush1.bf16.msra.mxu0 0
        %3166 = vmatprep.subr.bf16.mxu0 0
        %3167 = vmatpush1.bf16.msra.mxu0 0
        %3168 = vmatprep.subr.bf16.mxu0 0
        %3169 = vmatpush1.bf16.msra.mxu0 0
        %3170 = vmatprep.subr.bf16.mxu0 0
        %3171 = vmatpush1.bf16.msra.mxu0 0
        %3172 = vmatprep.subr.bf16.mxu0 0
        %3173 = vmatpush1.bf16.msra.mxu0 0
        %3174 = vmatprep.subr.bf16.mxu0 0
        %3175 = vmatpush1.bf16.msra.mxu0 0
        %3176 = vmatprep.subr.bf16.mxu0 0
        %3177 = vmatpush1.bf16.msra.mxu0 0
        %3178 = vmatprep.subr.bf16.mxu0 0
        %3179 = vmatpush1.bf16.msra.mxu0 0
        %3180 = vmatprep.subr.bf16.mxu0 0
        %3181 = vmatpush1.bf16.msra.mxu0 0
        %3182 = vmatprep.subr.bf16.mxu0 0
        %3183 = vmatpush1.bf16.msra.mxu0 0
        %3184 = vmatprep.mubr.bf16.mxu0 0
        %3185 = vmatmul.mubr.bf16.gmra.mrb[0].mxu0 %v3150
        %v3186 = vpop.f32.mrb[0].mxu0
        %v3187 = vadd.f32 0.0, %v3186
        %v3188 = vpop.f32.mrb[0].mxu0
        %v3189 = vpop.f32.mrb[0].mxu0
        %v3190 = vpop.f32.mrb[0].mxu0
        %3191 = vdwg.mxu0
        %3193 = vrot.lane.b32.xlu0 %v3187, 24
        %v3194 = vpop.permute.xlu0 %3193
        %3196 = vst.msk [vmem:[#allocation3] sm:$0xff] %vm1944, %v3194
        %v3197 = vrot.slane %v2747, 4
        %v3199 = vsel %vm1490, %v3197, 0
        %v3202 = vsel %vm1490, %v2749, 0
        %3204 = vmatprep.subr.bf16.mxu0 0
        %3205 = vmatpush1.bf16.xpose.msra.mxu0 %v3202
        %3206 = vmatprep.subr.bf16.mxu0 0
        %3207 = vmatpush1.bf16.xpose.msra.mxu0 0
        %3208 = vmatprep.subr.bf16.mxu0 0
        %3209 = vmatpush1.bf16.xpose.msra.mxu0 0
        %3210 = vmatprep.subr.bf16.mxu0 0
        %3211 = vmatpush1.bf16.xpose.msra.mxu0 0
        %3212 = vmatprep.subr.bf16.mxu0 0
        %3213 = vmatpush1.bf16.xpose.msra.mxu0 0
        %3214 = vmatprep.subr.bf16.mxu0 0
        %3215 = vmatpush1.bf16.xpose.msra.mxu0 0
        %3216 = vmatprep.subr.bf16.mxu0 0
        %3217 = vmatpush1.bf16.xpose.msra.mxu0 0
        %3218 = vmatprep.subr.bf16.mxu0 0
        %3219 = vmatpush1.bf16.xpose.msra.mxu0 0
        %3220 = vmatprep.subr.bf16.mxu0 0
        %3221 = vmatpush1.bf16.xpose.msra.mxu0 0
        %3222 = vmatprep.subr.bf16.mxu0 0
        %3223 = vmatpush1.bf16.xpose.msra.mxu0 0
        %3224 = vmatprep.subr.bf16.mxu0 0
        %3225 = vmatpush1.bf16.xpose.msra.mxu0 0
        %3226 = vmatprep.subr.bf16.mxu0 0
        %3227 = vmatpush1.bf16.xpose.msra.mxu0 0
        %3228 = vmatprep.subr.bf16.mxu0 0
        %3229 = vmatpush1.bf16.xpose.msra.mxu0 0
        %3230 = vmatprep.subr.bf16.mxu0 0
        %3231 = vmatpush1.bf16.xpose.msra.mxu0 0
        %3232 = vmatprep.subr.bf16.mxu0 0
        %3233 = vmatpush1.bf16.xpose.msra.mxu0 0
        %3234 = vmatprep.subr.bf16.mxu0 0
        %3235 = vmatpush1.bf16.xpose.msra.mxu0 0
        %3236 = vmatprep.mubr.bf16.mxu0 0
        %3237 = vmatmul.mubr.bf16.gmra.mrb[0].mxu0 %v3199
        %v3238 = vpop.f32.mrb[0].mxu0
        %v3239 = vadd.f32 0.0, %v3238
        %v3240 = vpop.f32.mrb[0].mxu0
        %v3241 = vpop.f32.mrb[0].mxu0
        %v3242 = vpop.f32.mrb[0].mxu0
        %3243 = vdwg.mxu0
        %v3244 = vsel %vm2798, %v3239, -inf
        %3245 = vmax.xlane.f32.xlu0 %v3244
        %v3246 = vpop.xlane.xlu0 %3245
        %v3247 = vsub.f32 %v3239, %v3246
        %v3248 = vmul.f32 %v3247, 1.442695
        %v3249 = vpow.pop %v3248
        %v3250 = vsel %vm2798, %v3249, 0.0
        %3251 = vadd.xlane.f32.xlu0 %v3250
        %v3252 = vpop.xlane.xlu0 %3251
        %v3253 = vrcp.pop %v3252
        %v3254 = vmul.f32 %v3249, %v3253
        %v3255 = vpack.c.bf16 %v3254, %v3254
        %v3257 = vsel %vm2798, %v3255, 0
        %3259 = vmatprep.subr.bf16.mxu0 0
        %3260 = vmatpush1.bf16.msra.mxu0 %v2751
        %3261 = vmatprep.subr.bf16.mxu0 0
        %3262 = vmatpush1.bf16.msra.mxu0 0
        %3263 = vmatprep.subr.bf16.mxu0 0
        %3264 = vmatpush1.bf16.msra.mxu0 0
        %3265 = vmatprep.subr.bf16.mxu0 0
        %3266 = vmatpush1.bf16.msra.mxu0 0
        %3267 = vmatprep.subr.bf16.mxu0 0
        %3268 = vmatpush1.bf16.msra.mxu0 0
        %3269 = vmatprep.subr.bf16.mxu0 0
        %3270 = vmatpush1.bf16.msra.mxu0 0
        %3271 = vmatprep.subr.bf16.mxu0 0
        %3272 = vmatpush1.bf16.msra.mxu0 0
        %3273 = vmatprep.subr.bf16.mxu0 0
        %3274 = vmatpush1.bf16.msra.mxu0 0
        %3275 = vmatprep.subr.bf16.mxu0 0
        %3276 = vmatpush1.bf16.msra.mxu0 0
        %3277 = vmatprep.subr.bf16.mxu0 0
        %3278 = vmatpush1.bf16.msra.mxu0 0
        %3279 = vmatprep.subr.bf16.mxu0 0
        %3280 = vmatpush1.bf16.msra.mxu0 0
        %3281 = vmatprep.subr.bf16.mxu0 0
        %3282 = vmatpush1.bf16.msra.mxu0 0
        %3283 = vmatprep.subr.bf16.mxu0 0
        %3284 = vmatpush1.bf16.msra.mxu0 0
        %3285 = vmatprep.subr.bf16.mxu0 0
        %3286 = vmatpush1.bf16.msra.mxu0 0
        %3287 = vmatprep.subr.bf16.mxu0 0
        %3288 = vmatpush1.bf16.msra.mxu0 0
        %3289 = vmatprep.subr.bf16.mxu0 0
        %3290 = vmatpush1.bf16.msra.mxu0 0
        %3291 = vmatprep.mubr.bf16.mxu0 0
        %3292 = vmatmul.mubr.bf16.gmra.mrb[0].mxu0 %v3257
        %v3293 = vpop.f32.mrb[0].mxu0
        %v3294 = vadd.f32 0.0, %v3293
        %v3295 = vpop.f32.mrb[0].mxu0
        %v3296 = vpop.f32.mrb[0].mxu0
        %v3297 = vpop.f32.mrb[0].mxu0
        %3298 = vdwg.mxu0
        %3299 = vst.msk [vmem:[#allocation3 + $0x8] sm:$0xff] %vm1490, %v3294
        %3300 = vrot.lane.b32.xlu0 %v3197, 120
        %v3301 = vpop.permute.xlu0 %3300
        %3303 = vrot.lane.b32.xlu0 %v2749, 120
        %v3304 = vpop.permute.xlu0 %3303
        %v3306 = vsel %vm1490, %v3301, 0
        %v3309 = vsel %vm1490, %v3304, 0
        %3311 = vmatprep.subr.bf16.mxu0 0
        %3312 = vmatpush1.bf16.xpose.msra.mxu0 %v3309
        %3313 = vmatprep.subr.bf16.mxu0 0
        %3314 = vmatpush1.bf16.xpose.msra.mxu0 0
        %3315 = vmatprep.subr.bf16.mxu0 0
        %3316 = vmatpush1.bf16.xpose.msra.mxu0 0
        %3317 = vmatprep.subr.bf16.mxu0 0
        %3318 = vmatpush1.bf16.xpose.msra.mxu0 0
        %3319 = vmatprep.subr.bf16.mxu0 0
        %3320 = vmatpush1.bf16.xpose.msra.mxu0 0
        %3321 = vmatprep.subr.bf16.mxu0 0
        %3322 = vmatpush1.bf16.xpose.msra.mxu0 0
        %3323 = vmatprep.subr.bf16.mxu0 0
        %3324 = vmatpush1.bf16.xpose.msra.mxu0 0
        %3325 = vmatprep.subr.bf16.mxu0 0
        %3326 = vmatpush1.bf16.xpose.msra.mxu0 0
        %3327 = vmatprep.subr.bf16.mxu0 0
        %3328 = vmatpush1.bf16.xpose.msra.mxu0 0
        %3329 = vmatprep.subr.bf16.mxu0 0
        %3330 = vmatpush1.bf16.xpose.msra.mxu0 0
        %3331 = vmatprep.subr.bf16.mxu0 0
        %3332 = vmatpush1.bf16.xpose.msra.mxu0 0
        %3333 = vmatprep.subr.bf16.mxu0 0
        %3334 = vmatpush1.bf16.xpose.msra.mxu0 0
        %3335 = vmatprep.subr.bf16.mxu0 0
        %3336 = vmatpush1.bf16.xpose.msra.mxu0 0
        %3337 = vmatprep.subr.bf16.mxu0 0
        %3338 = vmatpush1.bf16.xpose.msra.mxu0 0
        %3339 = vmatprep.subr.bf16.mxu0 0
        %3340 = vmatpush1.bf16.xpose.msra.mxu0 0
        %3341 = vmatprep.subr.bf16.mxu0 0
        %3342 = vmatpush1.bf16.xpose.msra.mxu0 0
        %3343 = vmatprep.mubr.bf16.mxu0 0
        %3344 = vmatmul.mubr.bf16.gmra.mrb[0].mxu0 %v3306
        %v3345 = vpop.f32.mrb[0].mxu0
        %v3346 = vadd.f32 0.0, %v3345
        %v3347 = vpop.f32.mrb[0].mxu0
        %v3348 = vpop.f32.mrb[0].mxu0
        %v3349 = vpop.f32.mrb[0].mxu0
        %3350 = vdwg.mxu0
        %v3351 = vsel %vm2798, %v3346, -inf
        %3352 = vmax.xlane.f32.xlu0 %v3351
        %v3353 = vpop.xlane.xlu0 %3352
        %v3354 = vsub.f32 %v3346, %v3353
        %v3355 = vmul.f32 %v3354, 1.442695
        %v3356 = vpow.pop %v3355
        %v3357 = vsel %vm2798, %v3356, 0.0
        %3358 = vadd.xlane.f32.xlu0 %v3357
        %v3359 = vpop.xlane.xlu0 %3358
        %v3360 = vrcp.pop %v3359
        %v3361 = vmul.f32 %v3356, %v3360
        %v3362 = vpack.c.bf16 %v3361, %v3361
        %3364 = vrot.lane.b32.xlu0 %v2751, 120
        %v3365 = vpop.permute.xlu0 %3364
        %v3368 = vsel %vm2798, %v3362, 0
        %3370 = vmatprep.subr.bf16.mxu0 0
        %3371 = vmatpush1.bf16.msra.mxu0 %v3365
        %3372 = vmatprep.subr.bf16.mxu0 0
        %3373 = vmatpush1.bf16.msra.mxu0 0
        %3374 = vmatprep.subr.bf16.mxu0 0
        %3375 = vmatpush1.bf16.msra.mxu0 0
        %3376 = vmatprep.subr.bf16.mxu0 0
        %3377 = vmatpush1.bf16.msra.mxu0 0
        %3378 = vmatprep.subr.bf16.mxu0 0
        %3379 = vmatpush1.bf16.msra.mxu0 0
        %3380 = vmatprep.subr.bf16.mxu0 0
        %3381 = vmatpush1.bf16.msra.mxu0 0
        %3382 = vmatprep.subr.bf16.mxu0 0
        %3383 = vmatpush1.bf16.msra.mxu0 0
        %3384 = vmatprep.subr.bf16.mxu0 0
        %3385 = vmatpush1.bf16.msra.mxu0 0
        %3386 = vmatprep.subr.bf16.mxu0 0
        %3387 = vmatpush1.bf16.msra.mxu0 0
        %3388 = vmatprep.subr.bf16.mxu0 0
        %3389 = vmatpush1.bf16.msra.mxu0 0
        %3390 = vmatprep.subr.bf16.mxu0 0
        %3391 = vmatpush1.bf16.msra.mxu0 0
        %3392 = vmatprep.subr.bf16.mxu0 0
        %3393 = vmatpush1.bf16.msra.mxu0 0
        %3394 = vmatprep.subr.bf16.mxu0 0
        %3395 = vmatpush1.bf16.msra.mxu0 0
        %3396 = vmatprep.subr.bf16.mxu0 0
        %3397 = vmatpush1.bf16.msra.mxu0 0
        %3398 = vmatprep.subr.bf16.mxu0 0
        %3399 = vmatpush1.bf16.msra.mxu0 0
        %3400 = vmatprep.subr.bf16.mxu0 0
        %3401 = vmatpush1.bf16.msra.mxu0 0
        %3402 = vmatprep.mubr.bf16.mxu0 0
        %3403 = vmatmul.mubr.bf16.gmra.mrb[0].mxu0 %v3368
        %v3404 = vpop.f32.mrb[0].mxu0
        %v3405 = vadd.f32 0.0, %v3404
        %v3406 = vpop.f32.mrb[0].mxu0
        %v3407 = vpop.f32.mrb[0].mxu0
        %v3408 = vpop.f32.mrb[0].mxu0
        %3409 = vdwg.mxu0
        %3411 = vrot.lane.b32.xlu0 %v3405, 8
        %v3412 = vpop.permute.xlu0 %3411
        %3414 = vst.msk [vmem:[#allocation3 + $0x8] sm:$0xff] %vm1712, %v3412
        %3415 = vrot.lane.b32.xlu0 %v3197, 112
        %v3416 = vpop.permute.xlu0 %3415
        %3417 = vrot.lane.b32.xlu0 %v2749, 112
        %v3418 = vpop.permute.xlu0 %3417
        %v3420 = vsel %vm1490, %v3416, 0
        %v3423 = vsel %vm1490, %v3418, 0
        %3425 = vmatprep.subr.bf16.mxu0 0
        %3426 = vmatpush1.bf16.xpose.msra.mxu0 %v3423
        %3427 = vmatprep.subr.bf16.mxu0 0
        %3428 = vmatpush1.bf16.xpose.msra.mxu0 0
        %3429 = vmatprep.subr.bf16.mxu0 0
        %3430 = vmatpush1.bf16.xpose.msra.mxu0 0
        %3431 = vmatprep.subr.bf16.mxu0 0
        %3432 = vmatpush1.bf16.xpose.msra.mxu0 0
        %3433 = vmatprep.subr.bf16.mxu0 0
        %3434 = vmatpush1.bf16.xpose.msra.mxu0 0
        %3435 = vmatprep.subr.bf16.mxu0 0
        %3436 = vmatpush1.bf16.xpose.msra.mxu0 0
        %3437 = vmatprep.subr.bf16.mxu0 0
        %3438 = vmatpush1.bf16.xpose.msra.mxu0 0
        %3439 = vmatprep.subr.bf16.mxu0 0
        %3440 = vmatpush1.bf16.xpose.msra.mxu0 0
        %3441 = vmatprep.subr.bf16.mxu0 0
        %3442 = vmatpush1.bf16.xpose.msra.mxu0 0
        %3443 = vmatprep.subr.bf16.mxu0 0
        %3444 = vmatpush1.bf16.xpose.msra.mxu0 0
        %3445 = vmatprep.subr.bf16.mxu0 0
        %3446 = vmatpush1.bf16.xpose.msra.mxu0 0
        %3447 = vmatprep.subr.bf16.mxu0 0
        %3448 = vmatpush1.bf16.xpose.msra.mxu0 0
        %3449 = vmatprep.subr.bf16.mxu0 0
        %3450 = vmatpush1.bf16.xpose.msra.mxu0 0
        %3451 = vmatprep.subr.bf16.mxu0 0
        %3452 = vmatpush1.bf16.xpose.msra.mxu0 0
        %3453 = vmatprep.subr.bf16.mxu0 0
        %3454 = vmatpush1.bf16.xpose.msra.mxu0 0
        %3455 = vmatprep.subr.bf16.mxu0 0
        %3456 = vmatpush1.bf16.xpose.msra.mxu0 0
        %3457 = vmatprep.mubr.bf16.mxu0 0
        %3458 = vmatmul.mubr.bf16.gmra.mrb[0].mxu0 %v3420
        %v3459 = vpop.f32.mrb[0].mxu0
        %v3460 = vadd.f32 0.0, %v3459
        %v3461 = vpop.f32.mrb[0].mxu0
        %v3462 = vpop.f32.mrb[0].mxu0
        %v3463 = vpop.f32.mrb[0].mxu0
        %3464 = vdwg.mxu0
        %v3465 = vsel %vm2798, %v3460, -inf
        %3466 = vmax.xlane.f32.xlu0 %v3465
        %v3467 = vpop.xlane.xlu0 %3466
        %v3468 = vsub.f32 %v3460, %v3467
        %v3469 = vmul.f32 %v3468, 1.442695
        %v3470 = vpow.pop %v3469
        %v3471 = vsel %vm2798, %v3470, 0.0
        %3472 = vadd.xlane.f32.xlu0 %v3471
        %v3473 = vpop.xlane.xlu0 %3472
        %v3474 = vrcp.pop %v3473
        %v3475 = vmul.f32 %v3470, %v3474
        %v3476 = vpack.c.bf16 %v3475, %v3475
        %3477 = vrot.lane.b32.xlu0 %v2751, 112
        %v3478 = vpop.permute.xlu0 %3477
        %v3481 = vsel %vm2798, %v3476, 0
        %3483 = vmatprep.subr.bf16.mxu0 0
        %3484 = vmatpush1.bf16.msra.mxu0 %v3478
        %3485 = vmatprep.subr.bf16.mxu0 0
        %3486 = vmatpush1.bf16.msra.mxu0 0
        %3487 = vmatprep.subr.bf16.mxu0 0
        %3488 = vmatpush1.bf16.msra.mxu0 0
        %3489 = vmatprep.subr.bf16.mxu0 0
        %3490 = vmatpush1.bf16.msra.mxu0 0
        %3491 = vmatprep.subr.bf16.mxu0 0
        %3492 = vmatpush1.bf16.msra.mxu0 0
        %3493 = vmatprep.subr.bf16.mxu0 0
        %3494 = vmatpush1.bf16.msra.mxu0 0
        %3495 = vmatprep.subr.bf16.mxu0 0
        %3496 = vmatpush1.bf16.msra.mxu0 0
        %3497 = vmatprep.subr.bf16.mxu0 0
        %3498 = vmatpush1.bf16.msra.mxu0 0
        %3499 = vmatprep.subr.bf16.mxu0 0
        %3500 = vmatpush1.bf16.msra.mxu0 0
        %3501 = vmatprep.subr.bf16.mxu0 0
        %3502 = vmatpush1.bf16.msra.mxu0 0
        %3503 = vmatprep.subr.bf16.mxu0 0
        %3504 = vmatpush1.bf16.msra.mxu0 0
        %3505 = vmatprep.subr.bf16.mxu0 0
        %3506 = vmatpush1.bf16.msra.mxu0 0
        %3507 = vmatprep.subr.bf16.mxu0 0
        %3508 = vmatpush1.bf16.msra.mxu0 0
        %3509 = vmatprep.subr.bf16.mxu0 0
        %3510 = vmatpush1.bf16.msra.mxu0 0
        %3511 = vmatprep.subr.bf16.mxu0 0
        %3512 = vmatpush1.bf16.msra.mxu0 0
        %3513 = vmatprep.subr.bf16.mxu0 0
        %3514 = vmatpush1.bf16.msra.mxu0 0
        %3515 = vmatprep.mubr.bf16.mxu0 0
        %3516 = vmatmul.mubr.bf16.gmra.mrb[0].mxu0 %v3481
        %v3517 = vpop.f32.mrb[0].mxu0
        %v3518 = vadd.f32 0.0, %v3517
        %v3519 = vpop.f32.mrb[0].mxu0
        %v3520 = vpop.f32.mrb[0].mxu0
        %v3521 = vpop.f32.mrb[0].mxu0
        %3522 = vdwg.mxu0
        %3524 = vrot.lane.b32.xlu0 %v3518, 16
        %v3525 = vpop.permute.xlu0 %3524
        %3527 = vst.msk [vmem:[#allocation3 + $0x8] sm:$0xff] %vm1828, %v3525
        %3528 = vrot.lane.b32.xlu0 %v3197, 104
        %v3529 = vpop.permute.xlu0 %3528
        %3530 = vrot.lane.b32.xlu0 %v2749, 104
        %v3531 = vpop.permute.xlu0 %3530
        %v3533 = vsel %vm1490, %v3529, 0
        %v3536 = vsel %vm1490, %v3531, 0
        %3538 = vmatprep.subr.bf16.mxu0 0
        %3539 = vmatpush1.bf16.xpose.msra.mxu0 %v3536
        %3540 = vmatprep.subr.bf16.mxu0 0
        %3541 = vmatpush1.bf16.xpose.msra.mxu0 0
        %3542 = vmatprep.subr.bf16.mxu0 0
        %3543 = vmatpush1.bf16.xpose.msra.mxu0 0
        %3544 = vmatprep.subr.bf16.mxu0 0
        %3545 = vmatpush1.bf16.xpose.msra.mxu0 0
        %3546 = vmatprep.subr.bf16.mxu0 0
        %3547 = vmatpush1.bf16.xpose.msra.mxu0 0
        %3548 = vmatprep.subr.bf16.mxu0 0
        %3549 = vmatpush1.bf16.xpose.msra.mxu0 0
        %3550 = vmatprep.subr.bf16.mxu0 0
        %3551 = vmatpush1.bf16.xpose.msra.mxu0 0
        %3552 = vmatprep.subr.bf16.mxu0 0
        %3553 = vmatpush1.bf16.xpose.msra.mxu0 0
        %3554 = vmatprep.subr.bf16.mxu0 0
        %3555 = vmatpush1.bf16.xpose.msra.mxu0 0
        %3556 = vmatprep.subr.bf16.mxu0 0
        %3557 = vmatpush1.bf16.xpose.msra.mxu0 0
        %3558 = vmatprep.subr.bf16.mxu0 0
        %3559 = vmatpush1.bf16.xpose.msra.mxu0 0
        %3560 = vmatprep.subr.bf16.mxu0 0
        %3561 = vmatpush1.bf16.xpose.msra.mxu0 0
        %3562 = vmatprep.subr.bf16.mxu0 0
        %3563 = vmatpush1.bf16.xpose.msra.mxu0 0
        %3564 = vmatprep.subr.bf16.mxu0 0
        %3565 = vmatpush1.bf16.xpose.msra.mxu0 0
        %3566 = vmatprep.subr.bf16.mxu0 0
        %3567 = vmatpush1.bf16.xpose.msra.mxu0 0
        %3568 = vmatprep.subr.bf16.mxu0 0
        %3569 = vmatpush1.bf16.xpose.msra.mxu0 0
        %3570 = vmatprep.mubr.bf16.mxu0 0
        %3571 = vmatmul.mubr.bf16.gmra.mrb[0].mxu0 %v3533
        %v3572 = vpop.f32.mrb[0].mxu0
        %v3573 = vadd.f32 0.0, %v3572
        %v3574 = vpop.f32.mrb[0].mxu0
        %v3575 = vpop.f32.mrb[0].mxu0
        %v3576 = vpop.f32.mrb[0].mxu0
        %3577 = vdwg.mxu0
        %v3578 = vsel %vm2798, %v3573, -inf
        %3579 = vmax.xlane.f32.xlu0 %v3578
        %v3580 = vpop.xlane.xlu0 %3579
        %v3581 = vsub.f32 %v3573, %v3580
        %v3582 = vmul.f32 %v3581, 1.442695
        %v3583 = vpow.pop %v3582
        %v3584 = vsel %vm2798, %v3583, 0.0
        %3585 = vadd.xlane.f32.xlu0 %v3584
        %v3586 = vpop.xlane.xlu0 %3585
        %v3587 = vrcp.pop %v3586
        %v3588 = vmul.f32 %v3583, %v3587
        %v3589 = vpack.c.bf16 %v3588, %v3588
        %3590 = vrot.lane.b32.xlu0 %v2751, 104
        %v3591 = vpop.permute.xlu0 %3590
        %v3594 = vsel %vm2798, %v3589, 0
        %3596 = vmatprep.subr.bf16.mxu0 0
        %3597 = vmatpush1.bf16.msra.mxu0 %v3591
        %3598 = vmatprep.subr.bf16.mxu0 0
        %3599 = vmatpush1.bf16.msra.mxu0 0
        %3600 = vmatprep.subr.bf16.mxu0 0
        %3601 = vmatpush1.bf16.msra.mxu0 0
        %3602 = vmatprep.subr.bf16.mxu0 0
        %3603 = vmatpush1.bf16.msra.mxu0 0
        %3604 = vmatprep.subr.bf16.mxu0 0
        %3605 = vmatpush1.bf16.msra.mxu0 0
        %3606 = vmatprep.subr.bf16.mxu0 0
        %3607 = vmatpush1.bf16.msra.mxu0 0
        %3608 = vmatprep.subr.bf16.mxu0 0
        %3609 = vmatpush1.bf16.msra.mxu0 0
        %3610 = vmatprep.subr.bf16.mxu0 0
        %3611 = vmatpush1.bf16.msra.mxu0 0
        %3612 = vmatprep.subr.bf16.mxu0 0
        %3613 = vmatpush1.bf16.msra.mxu0 0
        %3614 = vmatprep.subr.bf16.mxu0 0
        %3615 = vmatpush1.bf16.msra.mxu0 0
        %3616 = vmatprep.subr.bf16.mxu0 0
        %3617 = vmatpush1.bf16.msra.mxu0 0
        %3618 = vmatprep.subr.bf16.mxu0 0
        %3619 = vmatpush1.bf16.msra.mxu0 0
        %3620 = vmatprep.subr.bf16.mxu0 0
        %3621 = vmatpush1.bf16.msra.mxu0 0
        %3622 = vmatprep.subr.bf16.mxu0 0
        %3623 = vmatpush1.bf16.msra.mxu0 0
        %3624 = vmatprep.subr.bf16.mxu0 0
        %3625 = vmatpush1.bf16.msra.mxu0 0
        %3626 = vmatprep.subr.bf16.mxu0 0
        %3627 = vmatpush1.bf16.msra.mxu0 0
        %3628 = vmatprep.mubr.bf16.mxu0 0
        %3629 = vmatmul.mubr.bf16.gmra.mrb[0].mxu0 %v3594
        %v3630 = vpop.f32.mrb[0].mxu0
        %v3631 = vadd.f32 0.0, %v3630
        %v3632 = vpop.f32.mrb[0].mxu0
        %v3633 = vpop.f32.mrb[0].mxu0
        %v3634 = vpop.f32.mrb[0].mxu0
        %3635 = vdwg.mxu0
        %3637 = vrot.lane.b32.xlu0 %v3631, 24
        %v3638 = vpop.permute.xlu0 %3637
        %3640 = vst.msk [vmem:[#allocation3 + $0x8] sm:$0xff] %vm1944, %v3638
        %v3641 = vld [vmem:[#allocation3] sm:$0xff]
        %v3642 = vld [vmem:[#allocation3 + $0x8] sm:$0xff]
        %v3643 = vpack.c.bf16 %v3642, %v3641
        %v3645 = vlaneseq
        %v3646 = vshrl.u32 %v3645, 7
        %v3647 = vsub.s32 0, %v3646
        %v3648 = vrot.slane %v2746, %v3647
        %v3654 = vunpack.c.l.b16 %v2742
        %v3655 = vunpack.c.l.b16 %v2743
        %v3656 = vunpack.c.l.b16 %v2744
        %v3657 = vunpack.c.l.b16 %v2745
        %v3658 = vpack.c.b16 %v3655, %v3654
        %v3659 = vpack.c.b16 %v3657, %v3656
        %v3663 = vsel %vm1367, %v3643, 0
        %3665 = vmatprep.subr.bf16.mxu0 0
        %3666 = vmatpush1.bf16.msra.mxu0 %v3658
        %3667 = vmatprep.subr.bf16.mxu0 0
        %3668 = vmatpush1.bf16.msra.mxu0 %v3659
        %3669 = vmatprep.subr.bf16.mxu0 0
        %3670 = vmatpush1.bf16.msra.mxu0 0
        %3671 = vmatprep.subr.bf16.mxu0 0
        %3672 = vmatpush1.bf16.msra.mxu0 0
        %3673 = vmatprep.subr.bf16.mxu0 0
        %3674 = vmatpush1.bf16.msra.mxu0 0
        %3675 = vmatprep.subr.bf16.mxu0 0
        %3676 = vmatpush1.bf16.msra.mxu0 0
        %3677 = vmatprep.subr.bf16.mxu0 0
        %3678 = vmatpush1.bf16.msra.mxu0 0
        %3679 = vmatprep.subr.bf16.mxu0 0
        %3680 = vmatpush1.bf16.msra.mxu0 0
        %3681 = vmatprep.subr.bf16.mxu0 0
        %3682 = vmatpush1.bf16.msra.mxu0 0
        %3683 = vmatprep.subr.bf16.mxu0 0
        %3684 = vmatpush1.bf16.msra.mxu0 0
        %3685 = vmatprep.subr.bf16.mxu0 0
        %3686 = vmatpush1.bf16.msra.mxu0 0
        %3687 = vmatprep.subr.bf16.mxu0 0
        %3688 = vmatpush1.bf16.msra.mxu0 0
        %3689 = vmatprep.subr.bf16.mxu0 0
        %3690 = vmatpush1.bf16.msra.mxu0 0
        %3691 = vmatprep.subr.bf16.mxu0 0
        %3692 = vmatpush1.bf16.msra.mxu0 0
        %3693 = vmatprep.subr.bf16.mxu0 0
        %3694 = vmatpush1.bf16.msra.mxu0 0
        %3695 = vmatprep.subr.bf16.mxu0 0
        %3696 = vmatpush1.bf16.msra.mxu0 0
        %3697 = vmatprep.mubr.bf16.mxu0 0
        %3698 = vmatmul.mubr.bf16.gmra.mrb[0].mxu0 %v3663
        %v3699 = vpop.f32.mrb[0].mxu0
        %v3700 = vadd.f32 %v3648, %v3699
        %v3701 = vpop.f32.mrb[0].mxu0
        %v3702 = vpop.f32.mrb[0].mxu0
        %v3703 = vadd.f32 %v3648, %v3702
        %v3704 = vpop.f32.mrb[0].mxu0
        %3705 = vdwg.mxu0
        %v3706 = vadd.f32 %v2510, %v3700
        %v3707 = vadd.f32 %v2511, %v3703
        %s3708 = scalar_lea.vmem %s1299, 1
        %v3709 = vld [vmem:[%s3708] sm:$0x1]
        %s3710 = scalar_lea.vmem %s1303, 1
        %v3711 = vld [vmem:[%s3710] sm:$0x1]
        %v3712 = vsel %vm1367, %v3706, 0.0
        %3713 = vadd.xlane.f32.xlu0 %v3712
        %v3714 = vpop.xlane.xlu0 %3713
        %v3715 = vsel %vm1367, %v3707, 0.0
        %3716 = vadd.xlane.f32.xlu0 %v3715
        %v3717 = vpop.xlane.xlu0 %3716
        %v3718 = vmul.f32 %v3714, %v2475
        %v3719 = vmul.f32 %v3717, %v2475
        %v3720 = vsub.f32 %v3706, %v3718
        %v3721 = vsub.f32 %v3707, %v3719
        %v3722 = vmul.f32 %v3720, %v3720
        %v3723 = vmul.f32 %v3721, %v3721
        %v3724 = vsel %vm1367, %v3722, 0.0
        %3725 = vadd.xlane.f32.xlu0 %v3724
        %v3726 = vpop.xlane.xlu0 %3725
        %v3727 = vsel %vm1367, %v3723, 0.0
        %3728 = vadd.xlane.f32.xlu0 %v3727
        %v3729 = vpop.xlane.xlu0 %3728
        %v3730 = vmul.f32 %v3726, %v2475
        %v3731 = vmul.f32 %v3729, %v2475
        %v3732 = vadd.f32 %v3730, 1e-05
        %v3733 = vadd.f32 %v3731, 1e-05
        %v3734 = vrsqrt.pop %v3732
        %v3735 = vrsqrt.pop %v3733
        %v3736 = vmul.f32 %v3720, %v3734
        %v3737 = vmul.f32 %v3721, %v3735
        %v3739 = vlaneseq
        %v3740 = vshrl.u32 %v3739, 7
        %v3741 = vsub.s32 0, %v3740
        %v3742 = vrot.slane %v3709, %v3741
        %v3744 = vmul.f32 %v3736, %v3742
        %v3745 = vmul.f32 %v3737, %v3742
        %v3747 = vlaneseq
        %v3748 = vshrl.u32 %v3747, 7
        %v3749 = vsub.s32 0, %v3748
        %v3750 = vrot.slane %v3711, %v3749
        %v3752 = vadd.f32 %v3744, %v3750
        %v3753 = vadd.f32 %v3745, %v3750
        %v3754 = vld [vmem:[%s1290] sm:$0xf]
        %v3755 = vld [vmem:[%s1290 + $0x4] sm:$0xf]
        %v3756 = vld [vmem:[%s1290 + $0x8] sm:$0xf]
        %v3757 = vld [vmem:[%s1290 + $0xc] sm:$0xf]
        %v3758 = vpack.c.bf16 %v3753, %v3752
        %v3759 = vld [vmem:[%s1038] sm:$0x1]
        %v3761 = vlaneseq
        %v3762 = vshrl.u32 %v3761, 7
        %v3763 = vsub.s32 0, %v3762
        %v3764 = vrot.slane %v3759, %v3763
        %v3770 = vunpack.c.l.b16 %v3754
        %v3771 = vunpack.c.l.b16 %v3755
        %v3772 = vunpack.c.l.b16 %v3756
        %v3773 = vunpack.c.l.b16 %v3757
        %v3774 = vpack.c.b16 %v3771, %v3770
        %v3775 = vpack.c.b16 %v3773, %v3772
        %v3779 = vsel %vm1367, %v3758, 0
        %3781 = vmatprep.subr.bf16.mxu0 0
        %3782 = vmatpush1.bf16.msra.mxu0 %v3774
        %3783 = vmatprep.subr.bf16.mxu0 0
        %3784 = vmatpush1.bf16.msra.mxu0 %v3775
        %3785 = vmatprep.subr.bf16.mxu0 0
        %3786 = vmatpush1.bf16.msra.mxu0 0
        %3787 = vmatprep.subr.bf16.mxu0 0
        %3788 = vmatpush1.bf16.msra.mxu0 0
        %3789 = vmatprep.subr.bf16.mxu0 0
        %3790 = vmatpush1.bf16.msra.mxu0 0
        %3791 = vmatprep.subr.bf16.mxu0 0
        %3792 = vmatpush1.bf16.msra.mxu0 0
        %3793 = vmatprep.subr.bf16.mxu0 0
        %3794 = vmatpush1.bf16.msra.mxu0 0
        %3795 = vmatprep.subr.bf16.mxu0 0
        %3796 = vmatpush1.bf16.msra.mxu0 0
        %3797 = vmatprep.subr.bf16.mxu0 0
        %3798 = vmatpush1.bf16.msra.mxu0 0
        %3799 = vmatprep.subr.bf16.mxu0 0
        %3800 = vmatpush1.bf16.msra.mxu0 0
        %3801 = vmatprep.subr.bf16.mxu0 0
        %3802 = vmatpush1.bf16.msra.mxu0 0
        %3803 = vmatprep.subr.bf16.mxu0 0
        %3804 = vmatpush1.bf16.msra.mxu0 0
        %3805 = vmatprep.subr.bf16.mxu0 0
        %3806 = vmatpush1.bf16.msra.mxu0 0
        %3807 = vmatprep.subr.bf16.mxu0 0
        %3808 = vmatpush1.bf16.msra.mxu0 0
        %3809 = vmatprep.subr.bf16.mxu0 0
        %3810 = vmatpush1.bf16.msra.mxu0 0
        %3811 = vmatprep.subr.bf16.mxu0 0
        %3812 = vmatpush1.bf16.msra.mxu0 0
        %3813 = vmatprep.mubr.bf16.mxu0 0
        %3814 = vmatmul.mubr.bf16.gmra.mrb[0].mxu0 %v3779
        %v3815 = vpop.f32.mrb[0].mxu0
        %v3816 = vadd.f32 %v3764, %v3815
        %v3817 = vpop.f32.mrb[0].mxu0
        %v3818 = vpop.f32.mrb[0].mxu0
        %v3819 = vadd.f32 %v3764, %v3818
        %v3820 = vpop.f32.mrb[0].mxu0
        %3821 = vdwg.mxu0
        %v3822 = vmax.f32 %v3816, 0.0
        %v3823 = vmax.f32 %v3819, 0.0
        %v3824 = vld [vmem:[%s1295] sm:$0xf]
        %v3825 = vld [vmem:[%s1295 + $0x4] sm:$0xf]
        %v3826 = vld [vmem:[%s1295 + $0x8] sm:$0xf]
        %v3827 = vld [vmem:[%s1295 + $0xc] sm:$0xf]
        %v3828 = vld [vmem:[%s1295 + $0x10] sm:$0xf]
        %v3829 = vld [vmem:[%s1295 + $0x14] sm:$0xf]
        %v3830 = vld [vmem:[%s1295 + $0x18] sm:$0xf]
        %v3831 = vld [vmem:[%s1295 + $0x1c] sm:$0xf]
        %v3832 = vpack.c.bf16 %v3823, %v3822
        %v3833 = vld [vmem:[%s1046] sm:$0x1]
        %v3835 = vlaneseq
        %v3836 = vshrl.u32 %v3835, 7
        %v3837 = vsub.s32 0, %v3836
        %v3838 = vrot.slane %v3833, %v3837
        %v3848 = vunpack.c.l.b16 %v3824
        %v3849 = vunpack.c.l.b16 %v3825
        %v3850 = vunpack.c.l.b16 %v3826
        %v3851 = vunpack.c.l.b16 %v3827
        %v3852 = vunpack.c.l.b16 %v3828
        %v3853 = vunpack.c.l.b16 %v3829
        %v3854 = vunpack.c.l.b16 %v3830
        %v3855 = vunpack.c.l.b16 %v3831
        %v3856 = vpack.c.b16 %v3849, %v3848
        %v3857 = vpack.c.b16 %v3851, %v3850
        %v3858 = vpack.c.b16 %v3853, %v3852
        %v3859 = vpack.c.b16 %v3855, %v3854
        %vm3864 = vcmask 523264
        %v3866 = vsel %vm3864, %v3832, 0
        %3868 = vmatprep.subr.bf16.mxu0 0
        %3869 = vmatpush1.bf16.msra.mxu0 %v3856
        %3870 = vmatprep.subr.bf16.mxu0 0
        %3871 = vmatpush1.bf16.msra.mxu0 %v3857
        %3872 = vmatprep.subr.bf16.mxu0 0
        %3873 = vmatpush1.bf16.msra.mxu0 %v3858
        %3874 = vmatprep.subr.bf16.mxu0 0
        %3875 = vmatpush1.bf16.msra.mxu0 %v3859
        %3876 = vmatprep.subr.bf16.mxu0 0
        %3877 = vmatpush1.bf16.msra.mxu0 0
        %3878 = vmatprep.subr.bf16.mxu0 0
        %3879 = vmatpush1.bf16.msra.mxu0 0
        %3880 = vmatprep.subr.bf16.mxu0 0
        %3881 = vmatpush1.bf16.msra.mxu0 0
        %3882 = vmatprep.subr.bf16.mxu0 0
        %3883 = vmatpush1.bf16.msra.mxu0 0
        %3884 = vmatprep.subr.bf16.mxu0 0
        %3885 = vmatpush1.bf16.msra.mxu0 0
        %3886 = vmatprep.subr.bf16.mxu0 0
        %3887 = vmatpush1.bf16.msra.mxu0 0
        %3888 = vmatprep.subr.bf16.mxu0 0
        %3889 = vmatpush1.bf16.msra.mxu0 0
        %3890 = vmatprep.subr.bf16.mxu0 0
        %3891 = vmatpush1.bf16.msra.mxu0 0
        %3892 = vmatprep.subr.bf16.mxu0 0
        %3893 = vmatpush1.bf16.msra.mxu0 0
        %3894 = vmatprep.subr.bf16.mxu0 0
        %3895 = vmatpush1.bf16.msra.mxu0 0
        %3896 = vmatprep.subr.bf16.mxu0 0
        %3897 = vmatpush1.bf16.msra.mxu0 0
        %3898 = vmatprep.subr.bf16.mxu0 0
        %3899 = vmatpush1.bf16.msra.mxu0 0
        %3900 = vmatprep.mubr.bf16.mxu0 0
        %3901 = vmatmul.mubr.bf16.gmra.mrb[0].mxu0 %v3866
        %v3902 = vpop.f32.mrb[0].mxu0
        %v3903 = vadd.f32 %v3838, %v3902
        %v3904 = vpop.f32.mrb[0].mxu0
        %v3905 = vpop.f32.mrb[0].mxu0
        %v3906 = vadd.f32 %v3838, %v3905
        %v3907 = vpop.f32.mrb[0].mxu0
        %3908 = vdwg.mxu0
        %v3909 = vadd.f32 %v3752, %v3903
        %v3910 = vadd.f32 %v3753, %v3906
        %s3911 = scalar_lea.vmem %s1299, 2
        %v3912 = vld [vmem:[%s3911] sm:$0x1]
        %s3913 = scalar_lea.vmem %s1303, 2
        %v3914 = vld [vmem:[%s3913] sm:$0x1]
        %v3915 = vsel %vm1367, %v3909, 0.0
        %3916 = vadd.xlane.f32.xlu0 %v3915
        %v3917 = vpop.xlane.xlu0 %3916
        %v3918 = vsel %vm1367, %v3910, 0.0
        %3919 = vadd.xlane.f32.xlu0 %v3918
        %v3920 = vpop.xlane.xlu0 %3919
        %v3921 = vmul.f32 %v3917, %v2475
        %v3922 = vmul.f32 %v3920, %v2475
        %v3923 = vsub.f32 %v3909, %v3921
        %v3924 = vsub.f32 %v3910, %v3922
        %v3925 = vmul.f32 %v3923, %v3923
        %v3926 = vmul.f32 %v3924, %v3924
        %v3927 = vsel %vm1367, %v3925, 0.0
        %3928 = vadd.xlane.f32.xlu0 %v3927
        %v3929 = vpop.xlane.xlu0 %3928
        %v3930 = vsel %vm1367, %v3926, 0.0
        %3931 = vadd.xlane.f32.xlu0 %v3930
        %v3932 = vpop.xlane.xlu0 %3931
        %v3933 = vmul.f32 %v3929, %v2475
        %v3934 = vmul.f32 %v3932, %v2475
        %v3935 = vadd.f32 %v3933, 1e-05
        %v3936 = vadd.f32 %v3934, 1e-05
        %v3937 = vrsqrt.pop %v3935
        %v3938 = vrsqrt.pop %v3936
        %v3939 = vmul.f32 %v3923, %v3937
        %v3940 = vmul.f32 %v3924, %v3938
        %v3942 = vlaneseq
        %v3943 = vshrl.u32 %v3942, 7
        %v3944 = vsub.s32 0, %v3943
        %v3945 = vrot.slane %v3912, %v3944
        %v3947 = vmul.f32 %v3939, %v3945
        %v3948 = vmul.f32 %v3940, %v3945
        %v3950 = vlaneseq
        %v3951 = vshrl.u32 %v3950, 7
        %v3952 = vsub.s32 0, %v3951
        %v3953 = vrot.slane %v3914, %v3952
        %v3955 = vadd.f32 %v3947, %v3953
        %v3956 = vadd.f32 %v3948, %v3953
        %3957 = vst.msk [vmem:[#allocation2] sm:$0xff] %vm1367, %v3955
        %3958 = vst.msk [vmem:[#allocation2 + $0x8] sm:$0xff] %vm1367, %v3956
        %s3959 = scalar_lea.vmem %s1299, 3
        %v3960 = vld [vmem:[%s3959] sm:$0x1]
        %s3961 = scalar_lea.vmem %s1303, 3
        %v3962 = vld [vmem:[%s3961] sm:$0x1]
        %v3963 = vsel %vm1367, %v3955, 0.0
        %3964 = vadd.xlane.f32.xlu0 %v3963
        %v3965 = vpop.xlane.xlu0 %3964
        %v3966 = vsel %vm1367, %v3956, 0.0
        %3967 = vadd.xlane.f32.xlu0 %v3966
        %v3968 = vpop.xlane.xlu0 %3967
        %v3969 = vmul.f32 %v3965, %v2475
        %v3970 = vmul.f32 %v3968, %v2475
        %v3971 = vsub.f32 %v3955, %v3969
        %v3972 = vsub.f32 %v3956, %v3970
        %v3973 = vmul.f32 %v3971, %v3971
        %v3974 = vmul.f32 %v3972, %v3972
        %v3975 = vsel %vm1367, %v3973, 0.0
        %3976 = vadd.xlane.f32.xlu0 %v3975
        %v3977 = vpop.xlane.xlu0 %3976
        %v3978 = vsel %vm1367, %v3974, 0.0
        %3979 = vadd.xlane.f32.xlu0 %v3978
        %v3980 = vpop.xlane.xlu0 %3979
        %v3981 = vmul.f32 %v3977, %v2475
        %v3982 = vmul.f32 %v3980, %v2475
        %v3983 = vadd.f32 %v3981, 1e-05
        %v3984 = vadd.f32 %v3982, 1e-05
        %v3985 = vrsqrt.pop %v3983
        %v3986 = vrsqrt.pop %v3984
        %v3987 = vmul.f32 %v3971, %v3985
        %v3988 = vmul.f32 %v3972, %v3986
        %v3990 = vlaneseq
        %v3991 = vshrl.u32 %v3990, 7
        %v3992 = vsub.s32 0, %v3991
        %v3993 = vrot.slane %v3960, %v3992
        %v3995 = vmul.f32 %v3987, %v3993
        %v3996 = vmul.f32 %v3988, %v3993
        %v3998 = vlaneseq
        %v3999 = vshrl.u32 %v3998, 7
        %v4000 = vsub.s32 0, %v3999
        %v4001 = vrot.slane %v3962, %v4000
        %v4003 = vadd.f32 %v3995, %v4001
        %v4004 = vadd.f32 %v3996, %v4001
        %4005 = vst.msk [vmem:[%s1312] sm:$0xff] %vm1367, %v4003
        %4006 = vst.msk [vmem:[%s1312 + $0x8] sm:$0xff] %vm1367, %v4004
        %p4007 = scmp.eq.s32.totalorder %s55, 1
        // Predicated region
        $region145: #{transformer_decoder_forward.1} parent=115 // pred_check
          %p4008 = pneg %p4007
        $region146: #{transformer_decoder_forward.1} parent=115 // pred_check_branch
          %4010 = sbr.rel (%p4008) target = $region148
        $region147: #{transformer_decoder_forward.1} parent=115 // pred_region
          %4011 = vst.msk [vmem:[#allocation15] sm:$0xff] %vm1367, %v3955
          %4012 = vst.msk [vmem:[#allocation15 + $0x8] sm:$0xff] %vm1367, %v3956
        $region148: #{transformer_decoder_forward.1} parent=115 // pred_fallthru
          _
        %s4013 = smul.u32 2, %s54
        %p4014 = scmp.lt.s32.totalorder %s55, 1
        %s4015 = scalar_select %p4014, %s55, 1
        %p4016 = scmp.lt.s32.totalorder %s4013, 1
        %s4017 = scalar_select %p4016, %s4013, 1
        %s4018 = smul.addr %s4015, 2
        %s4019 = sadd.s32 %s4017, %s4018
        %s4020 = smul.addr %s4019, 8
        %s4021 = scalar_lea.vmem %s24, %s4020
        // Predicated region
        $region149: #{transformer_decoder_forward.1} parent=115 // pred_check
          %p4022 = pneg %p706
        $region150: #{transformer_decoder_forward.1} parent=115 // pred_check_branch
          %4024 = sbr.rel (%p4022) target = $region152
        $region151: #{transformer_decoder_forward.1} parent=115 // pred_region
          %s4025 = smul.u32 2, %s54
        $region152: #{transformer_decoder_forward.1} parent=115 // pred_fallthru
          _
        // Predicated region
        $region153: #{transformer_decoder_forward.1} parent=115 // pred_check
          %p4026 = pneg %p732
        $region154: #{transformer_decoder_forward.1} parent=115 // pred_check_branch
          %4028 = sbr.rel (%p4026) target = $region156
        $region155: #{transformer_decoder_forward.1} parent=115 // pred_region
          %s4029 = smul.u32 2, %s54
          %s4031 = ssub.s32 256, 256
          %4032 = vsyncadd [#allocation6], %s4031
          %s4033 = smul.addr %s4029, 128
          %s4034 = scalar_lea.hbm %s25, %s4033
          %s4035 = sshll.u32 [#allocation15], 4
          %s4036 = int_to_ptr.vmem [resolvable:$true] %s4035
          %4041 = dma.vmem_to_hbm [thread:$0]  %s4036, 256, %s4034, [#allocation6], 128, 128, 8
        $region156: #{transformer_decoder_forward.1} parent=115 // pred_fallthru
          _
        // Predicated region
        $region157: #{transformer_decoder_forward.1} parent=115 // pred_check
          %p4042 = pneg %p732
        $region158: #{transformer_decoder_forward.1} parent=115 // pred_check_branch
          %4044 = sbr.rel (%p4042) target = $region160
        $region159: #{transformer_decoder_forward.1} parent=115 // pred_region
          %4045 = dma.done [#allocation6], 256
        $region160: #{transformer_decoder_forward.1} parent=115 // pred_fallthru
          _
      $region116: #{transformer_decoder_forward.1} parent=5 // pred_fallthru
        _
      %p4046 = scmp.le.s32.totalorder 2, %s45
      // Predicated region
      $region161: #{transformer_decoder_forward.1} parent=5 // pred_check
        %p4047 = pneg %p4046
      $region162: #{transformer_decoder_forward.1} parent=5 // pred_check_branch
        %4049 = sbr.rel (%p4047) target = $region164
      $region163: #{transformer_decoder_forward.1} parent=5 // pred_region
        %s4050 = ssub.s32 %s45, 2
        // Predicated region
        $region165: #{transformer_decoder_forward.1} parent=163 // pred_check
          %p4051 = pneg %p712
        $region166: #{transformer_decoder_forward.1} parent=163 // pred_check_branch
          %4053 = sbr.rel (%p4051) target = $region168
        $region167: #{transformer_decoder_forward.1} parent=163 // pred_region
          %s4054 = smul.u32 2, %s56
          %p4055 = scmp.lt.s32.totalorder %s57, 1
          %s4056 = scalar_select %p4055, %s57, 1
          %p4057 = scmp.lt.s32.totalorder %s4054, 1
          %s4058 = scalar_select %p4057, %s4054, 1
          %s4059 = smul.addr %s4056, 2
          %s4060 = sadd.s32 %s4058, %s4059
          %s4061 = smul.addr %s4060, 8
          %s4062 = scalar_lea.vmem %s24, %s4061
        $region168: #{transformer_decoder_forward.1} parent=163 // pred_fallthru
          _
      $region164: #{transformer_decoder_forward.1} parent=5 // pred_fallthru
        _
    $region6: #{transformer_decoder_forward.1} parent=1 // loop_footer
      %s49 = sadd.s32 1, %s45
    $region7: #{transformer_decoder_forward.1} parent=1 // loop_footer_branch
      %44 = sbr.rel target = $region3
    $region8: #{transformer_decoder_forward.1} parent=1 // loop_exit
      _
    %4063 = vsyncpa [#allocation5], 1
    %s4064 = scalar_lea.sflag [#allocation5], 1
    %4065 = vsyncpa %s4064, 1
    %4066 = vsyncpa [#allocation8], 1
    %s4067 = scalar_lea.sflag [#allocation8], 1
    %4068 = vsyncpa %s4067, 1
    %4069 = vsyncpa [#allocation11], 1
    %s4070 = scalar_lea.sflag [#allocation11], 1
    %4071 = vsyncpa %s4070, 1
    %4072 = vsyncpa [#allocation14], 1
    %s4073 = scalar_lea.sflag [#allocation14], 1
    %4074 = vsyncpa %s4073, 1
    %4075 = vsyncpa [#allocation6], 1
    %s4076 = scalar_lea.sflag [#allocation6], 1
    %4077 = vsyncpa %s4076, 1

</llo_original>
